<compile_context>
chip_gen: v7x
topology: tpu7x:2x2x1
jax: 0.10.0
libtpu: 0.0.40
codegen_flags: <defaults>
</compile_context>

<pallas_src>
import functools
import math

import numpy as np
import jax
import jax.numpy as jnp
from jax import lax
from jax.experimental import pallas as pl
from jax.experimental.pallas import tpu as pltpu


# ---------------------------------------------------------------------------
# small helpers
# ---------------------------------------------------------------------------
def _round_up(a, b):
    return (a + b - 1) // b * b


def _i32(v):
    """Python int -> int32 constant with two's-complement wraparound."""
    v &= 0xFFFFFFFF
    if v >= (1 << 31):
        v -= 1 << 32
    return jnp.int32(v)


def _lsr(x, n):
    """Logical right shift for int32 (arithmetic shift + mask)."""
    return (x >> n) & ((1 << (32 - n)) - 1)


# ---------------------------------------------------------------------------
# one-time host-side parameter packing (numpy, exact affine algebra)
# ---------------------------------------------------------------------------
def _conv_matrix(w, b, lin, *, pool_before):
    """Affine map  flatten(conv1d(pool2?(h))) = M @ flatten(h) + c
    for h of shape (Cin, lin) flattened row-major (index ci*lin + l)."""
    w = np.asarray(w, np.float64)
    b = np.asarray(b, np.float64)
    cout, cin, k = w.shape
    lp = lin // 2 if pool_before else lin
    lout = lp - k + 1
    m = np.zeros((cout * lout, cin * lin), np.float64)
    c = np.zeros((cout * lout,), np.float64)
    for co in range(cout):
        for t in range(lout):
            row = co * lout + t
            c[row] = b[co]
            for ci in range(cin):
                base = ci * lin
                for kk in range(k):
                    if pool_before:
                        s = 2 * (t + kk)          # pool taps 2(t+k), 2(t+k)+1
                        m[row, base + s] += 0.5 * w[co, ci, kk]
                        m[row, base + s + 1] += 0.5 * w[co, ci, kk]
                    else:
                        m[row, base + t + kk] += w[co, ci, kk]
    return m, c


def pack_fully_conv_net_params(params, *, mean, std, input_dims):
    """One-time repack of the torch-style conv weights into per-stage dense
    matrices (layout: h_next = relu(M @ h + c), batch on the trailing axis)."""
    inv_std = 1.0 / float(std)
    l0 = int(input_dims)

    m1, c1 = _conv_matrix(params["w1"], params["b1"], l0, pool_before=False)
    # Fold input normalization (x - mean) * inv_std into stage 1 (free).
    c1 = c1 - float(mean) * inv_std * m1.sum(axis=1)
    m1 = m1 * inv_std
    l1 = l0 - 9 + 1                      # per-channel length of h1 (un-pooled)

    m2, c2 = _conv_matrix(params["w2"], params["b2"], l1, pool_before=True)
    l2 = l1 // 2 - 7 + 1
    m3, c3 = _conv_matrix(params["w3"], params["b3"], l2, pool_before=True)
    l3 = l2 // 2 - 7 + 1
    m4, c4 = _conv_matrix(params["w4"], params["b4"], l3, pool_before=True)
    l4 = l3 // 2 - 5 + 1
    m5, c5 = _conv_matrix(params["w5"], params["b5"], l4, pool_before=True)
    l5 = l4 // 2 - 3 + 1

    # head (k=1 conv) + adaptive_avg_pool1d(., 1):
    #   out[o] = bh[o] + sum_{c,l} (wh[o,c]/L5) * h5[c*L5 + l]
    wh = np.asarray(params["wh"], np.float64)[:, :, 0]        # (out_dims, 12)
    bh = np.asarray(params["bh"], np.float64)
    mh = np.repeat(wh, l5, axis=1) / float(l5)                # (out_dims, 12*L5)
    ch = bh

    f32 = lambda a: jnp.asarray(np.asarray(a), jnp.float32)
    col = lambda a: jnp.asarray(np.asarray(a).reshape(-1, 1), jnp.float32)
    return {"m1": f32(m1), "c1": col(c1), "m2": f32(m2), "c2": col(c2),
            "m3": f32(m3), "c3": col(c3), "m4": f32(m4), "c4": col(c4),
            "m5": f32(m5), "c5": col(c5), "mh": f32(mh), "ch": col(ch)}


# ---------------------------------------------------------------------------
# the fused kernel
# ---------------------------------------------------------------------------
def _fully_conv_net_kernel(seed_ref, x_ref,
                           m1, c1, m2, c2, m3, c3, m4, c4, m5, c5, mh, ch,
                           o_ref, *, p, training):
    # x tile: (TILE_B, L0).  One in-kernel transpose puts batch on lanes so the
    # rest of the kernel (elementwise + output store) is fully lane-dense.
    h = jnp.transpose(x_ref[...].astype(jnp.float32))          # (L0, TILE_B)

    def stage(h, m_ref, c_ref):
        y = jnp.dot(m_ref[...], h, preferred_element_type=jnp.float32) + c_ref[...]
        return jnp.maximum(y, jnp.float32(0.0))

    h = stage(h, m1, c1)      # conv1 (+norm fold)            -> (2*248, B)
    h = stage(h, m2, c2)      # pool1 folded into conv2       -> (2*118, B)
    h = stage(h, m3, c3)      # pool2 folded into conv3       -> (4*53 , B)
    h = stage(h, m4, c4)      # pool3 folded into conv4       -> (8*22 , B)
    h = stage(h, m5, c5)      # pool4 folded into conv5       -> (12*9 , B)

    if training and p >= 1.0:                                  # NaN guard
        h = jnp.zeros_like(h)
    elif training and p > 0.0:
        # Inverted dropout with a counter-hash PRNG (murmur fmix32).  `seed` is
        # a runtime scalar (scalar prefetch), so reseeding never recompiles.
        # The stream index mixes the GLOBAL sample id -> independent masks per
        # sample within and across tiles.
        tile_b = h.shape[1]
        feat = lax.broadcasted_iota(jnp.int32, h.shape, 0)
        samp = (lax.broadcasted_iota(jnp.int32, h.shape, 1)
                + pl.program_id(0) * tile_b)
        idx = samp * jnp.int32(h.shape[0]) + feat
        z = (idx ^ seed_ref[0]) * _i32(0x9E3779B1)
        z = z ^ _lsr(z, 16)
        z = z * _i32(0x85EBCA6B)
        z = z ^ _lsr(z, 13)
        z = z * _i32(0xC2B2AE35)
        z = z ^ _lsr(z, 16)
        u = _lsr(z, 9).astype(jnp.float32) * jnp.float32(1.0 / (1 << 23))  # [0,1)
        keep = u >= jnp.float32(p)
        h = jnp.where(keep, h * jnp.float32(1.0 / (1.0 - p)), jnp.float32(0.0))

    # head + global mean, already folded into (out_dims, 12*9) -> lane-dense store.
    o_ref[...] = (jnp.dot(mh[...], h, preferred_element_type=jnp.float32)
                  + ch[...]).astype(o_ref.dtype)


def fully_conv_net_forward(x, packed, *, dropout_p=0.5, seed=0, training=False):
    """Pallas FullyConvNet forward.  x: (N, 1, L) -> (N, out_dims) float32."""
    n = x.shape[0]
    l0 = packed["m1"].shape[1]
    out_dims = packed["mh"].shape[0]
    x2 = x.reshape(n, l0).astype(jnp.float32)

    # Batch tile: multiple of 8 (sublane granularity pre-transpose), and either
    # a multiple of 128 or the whole padded batch so the lane-dense
    # (out_dims, TILE_B) output block satisfies the TPU block-shape rule.
    if n <= 256:
        tile_b = _round_up(max(n, 8), 8)       # single grid step
    elif n <= 1024:
        tile_b = 128                           # >=3 steps -> feeds both v7x TCs
    else:
        tile_b = 256
    n_pad = _round_up(n, tile_b)
    if n_pad != n:
        x2 = jnp.pad(x2, ((0, n_pad - n), (0, 0)))   # padded rows are discarded

    names = ("m1", "c1", "m2", "c2", "m3", "c3", "m4", "c4", "m5", "c5", "mh", "ch")
    param_ops = [packed[k] for k in names]
    param_specs = [pl.BlockSpec(op.shape, lambda i, s: (0, 0)) for op in param_ops]

    kernel = functools.partial(_fully_conv_net_kernel,
                               p=float(dropout_p), training=bool(training))
    seed_arr = jnp.asarray([seed], dtype=jnp.int32)

    out = pl.pallas_call(
        kernel,
        out_shape=jax.ShapeDtypeStruct((out_dims, n_pad), jnp.float32),
        grid_spec=pltpu.PrefetchScalarGridSpec(
            num_scalar_prefetch=1,
            grid=(n_pad // tile_b,),
            in_specs=[pl.BlockSpec((tile_b, l0), lambda i, s: (i, 0))] + param_specs,
            out_specs=pl.BlockSpec((out_dims, tile_b), lambda i, s: (0, i)),
        ),
        compiler_params=pltpu.CompilerParams(
            dimension_semantics=("parallel",)),
    )(seed_arr, x2, *param_ops)

    return out[:, :n].T                         # tiny wrapper-side slice/transpose


# ---------------------------------------------------------------------------
# torch-style parameter init + float64 NumPy reference (eval mode)
# ---------------------------------------------------------------------------
def init_fully_conv_net_params(key, out_dims=1):
    def conv_init(k, cout, cin, ksize):
        kw, kb = jax.random.split(k)
        bound = 1.0 / math.sqrt(cin * ksize)
        w = jax.random.uniform(kw, (cout, cin, ksize), jnp.float32, -bound, bound)
        b = jax.random.uniform(kb, (cout,), jnp.float32, -bound, bound)
        return w, b

    keys = jax.random.split(key, 6)
    p = {}
    p["w1"], p["b1"] = conv_init(keys[0], 2, 1, 9)
    p["w2"], p["b2"] = conv_init(keys[1], 2, 2, 7)
    p["w3"], p["b3"] = conv_init(keys[2], 4, 2, 7)
    p["w4"], p["b4"] = conv_init(keys[3], 8, 4, 5)
    p["w5"], p["b5"] = conv_init(keys[4], 12, 8, 3)
    p["wh"], p["bh"] = conv_init(keys[5], out_dims, 12, 1)
    return p


def reference_forward_np(x, params, *, mean, std):
    """Float64 NumPy reference (eval mode: dropout = identity)."""
    x = np.asarray(x, np.float64)

    def conv(h, w, b):
        w = np.asarray(w, np.float64); b = np.asarray(b, np.float64)
        k = w.shape[2]
        lout = h.shape[2] - k + 1
        out = np.zeros((h.shape[0], w.shape[0], lout), np.float64)
        for kk in range(k):
            out += np.einsum("ncl,oc->nol", h[:, :, kk:kk + lout], w[:, :, kk])
        return out + b.reshape(1, -1, 1)

    def pool2(h):
        lp = h.shape[2] // 2
        return 0.5 * (h[:, :, 0:2 * lp:2] + h[:, :, 1:2 * lp:2])

    relu = lambda v: np.maximum(v, 0.0)
    h = (x - mean) / std
    h = pool2(relu(conv(h, params["w1"], params["b1"])))
    h = pool2(relu(conv(h, params["w2"], params["b2"])))
    h = pool2(relu(conv(h, params["w3"], params["b3"])))
    h = pool2(relu(conv(h, params["w4"], params["b4"])))
    h = relu(conv(h, params["w5"], params["b5"]))
    h = conv(h, params["wh"], params["bh"])
    return h.mean(axis=-1)                      # (N, out_dims)


if __name__ == "__main__":
    key = jax.random.PRNGKey(0)
    pkey, xkey = jax.random.split(key)

    batch, input_dims, out_dims = 4, 256, 3
    mean, std = 0.25, 1.5

    params = init_fully_conv_net_params(pkey, out_dims=out_dims)
    x = jax.random.normal(xkey, (batch, 1, input_dims), dtype=jnp.float32)

    packed = pack_fully_conv_net_params(params, mean=mean, std=std,
                                        input_dims=input_dims)

    # Eval mode (dropout disabled) vs float64 NumPy reference.
    y_eval = fully_conv_net_forward(x, packed, dropout_p=0.5, training=False)
    y_eval = np.asarray(jax.block_until_ready(y_eval))
    y_ref = reference_forward_np(np.asarray(x), params, mean=mean, std=std)
    assert y_eval.shape == (batch, out_dims)
    assert np.allclose(y_eval, y_ref, rtol=1e-2, atol=1e-2), \
        float(np.max(np.abs(y_eval - y_ref)))

    # Training mode: exercises the in-kernel dropout path with two different
    # runtime seeds (no retrace / recompile between them).
    y_tr0 = fully_conv_net_forward(x, packed, dropout_p=0.5, seed=1, training=True)
    y_tr1 = fully_conv_net_forward(x, packed, dropout_p=0.5, seed=2, training=True)
    y_tr0 = np.asarray(jax.block_until_ready(y_tr0))
    y_tr1 = np.asarray(jax.block_until_ready(y_tr1))
    assert y_tr0.shape == (batch, out_dims)
    assert np.all(np.isfinite(y_tr0)) and np.all(np.isfinite(y_tr1))

    print("KERNEL_OK")
</pallas_src>

<mosaic_0001>
module attributes {stable_mosaic.version = 11 : i64} {
  func.func @_fully_conv_net_kernel(%arg0: i32, %arg1: memref<1xi32, #tpu.memory_space<smem>>, %arg2: memref<8x256xf32, #tpu.memory_space<vmem>>, %arg3: memref<496x256xf32, #tpu.memory_space<vmem>>, %arg4: memref<496x1xf32, #tpu.memory_space<vmem>>, %arg5: memref<236x496xf32, #tpu.memory_space<vmem>>, %arg6: memref<236x1xf32, #tpu.memory_space<vmem>>, %arg7: memref<212x236xf32, #tpu.memory_space<vmem>>, %arg8: memref<212x1xf32, #tpu.memory_space<vmem>>, %arg9: memref<176x212xf32, #tpu.memory_space<vmem>>, %arg10: memref<176x1xf32, #tpu.memory_space<vmem>>, %arg11: memref<108x176xf32, #tpu.memory_space<vmem>>, %arg12: memref<108x1xf32, #tpu.memory_space<vmem>>, %arg13: memref<3x108xf32, #tpu.memory_space<vmem>>, %arg14: memref<3x1xf32, #tpu.memory_space<vmem>>, %arg15: memref<3x8xf32, #tpu.memory_space<vmem>>) attributes {dimension_semantics = [#tpu.dimension_semantics<parallel>], iteration_bounds = array<i64: 1>, scalar_prefetch = 1 : i64, scratch_operands = 0 : i64, tpu.core_type = #tpu.core_type<tc>, window_params = [{transform_indices = @transform_0, window_bounds = array<i64: 8, 256>}, {pipeline_mode = #tpu.pipeline_mode<synchronous>, transform_indices = @transform_1, window_bounds = array<i64: 496, 256>}, {pipeline_mode = #tpu.pipeline_mode<synchronous>, transform_indices = @transform_2, window_bounds = array<i64: 496, 1>}, {pipeline_mode = #tpu.pipeline_mode<synchronous>, transform_indices = @transform_3, window_bounds = array<i64: 236, 496>}, {pipeline_mode = #tpu.pipeline_mode<synchronous>, transform_indices = @transform_4, window_bounds = array<i64: 236, 1>}, {pipeline_mode = #tpu.pipeline_mode<synchronous>, transform_indices = @transform_5, window_bounds = array<i64: 212, 236>}, {pipeline_mode = #tpu.pipeline_mode<synchronous>, transform_indices = @transform_6, window_bounds = array<i64: 212, 1>}, {pipeline_mode = #tpu.pipeline_mode<synchronous>, transform_indices = @transform_7, window_bounds = array<i64: 176, 212>}, {pipeline_mode = #tpu.pipeline_mode<synchronous>, transform_indices = @transform_8, window_bounds = array<i64: 176, 1>}, {pipeline_mode = #tpu.pipeline_mode<synchronous>, transform_indices = @transform_9, window_bounds = array<i64: 108, 176>}, {pipeline_mode = #tpu.pipeline_mode<synchronous>, transform_indices = @transform_10, window_bounds = array<i64: 108, 1>}, {pipeline_mode = #tpu.pipeline_mode<synchronous>, transform_indices = @transform_11, window_bounds = array<i64: 3, 108>}, {pipeline_mode = #tpu.pipeline_mode<synchronous>, transform_indices = @transform_12, window_bounds = array<i64: 3, 1>}, {transform_indices = @transform_13, window_bounds = array<i64: 3, 8>}]} {
    %c0 = arith.constant 0 : index
    %c0_0 = arith.constant 0 : index
    %0 = vector.load %arg2[%c0, %c0_0] : memref<8x256xf32, #tpu.memory_space<vmem>>, vector<8x256xf32>
    %1 = tpu.transpose %0, [1, 0] : vector<8x256xf32> -> vector<256x8xf32>
    %c0_1 = arith.constant 0 : index
    %c0_2 = arith.constant 0 : index
    %2 = vector.load %arg3[%c0_1, %c0_2] : memref<496x256xf32, #tpu.memory_space<vmem>>, vector<496x256xf32>
    %cst = arith.constant dense<0.000000e+00> : vector<496x8xf32>
    %3 = tpu.matmul %2, %1, %cst {dimension_numbers = #tpu.dot_dimension_numbers<[1], [0], [0], [1], [0, 0, 1, 1], [], []>} : vector<496x256xf32>, vector<256x8xf32>, vector<496x8xf32> -> vector<496x8xf32>
    %c0_3 = arith.constant 0 : index
    %c0_4 = arith.constant 0 : index
    %4 = vector.load %arg4[%c0_3, %c0_4] : memref<496x1xf32, #tpu.memory_space<vmem>>, vector<496x1xf32>
    %5 = vector.broadcast %4 : vector<496x1xf32> to vector<496x8xf32>
    %6 = arith.addf %3, %5 : vector<496x8xf32>
    %cst_5 = arith.constant 0.000000e+00 : f32
    %7 = vector.broadcast %cst_5 : f32 to vector<496x8xf32>
    %8 = arith.maximumf %6, %7 : vector<496x8xf32>
    %c0_6 = arith.constant 0 : index
    %c0_7 = arith.constant 0 : index
    %9 = vector.load %arg5[%c0_6, %c0_7] : memref<236x496xf32, #tpu.memory_space<vmem>>, vector<236x496xf32>
    %cst_8 = arith.constant dense<0.000000e+00> : vector<236x8xf32>
    %10 = tpu.matmul %9, %8, %cst_8 {dimension_numbers = #tpu.dot_dimension_numbers<[1], [0], [0], [1], [0, 0, 1, 1], [], []>} : vector<236x496xf32>, vector<496x8xf32>, vector<236x8xf32> -> vector<236x8xf32>
    %c0_9 = arith.constant 0 : index
    %c0_10 = arith.constant 0 : index
    %11 = vector.load %arg6[%c0_9, %c0_10] : memref<236x1xf32, #tpu.memory_space<vmem>>, vector<236x1xf32>
    %12 = vector.broadcast %11 : vector<236x1xf32> to vector<236x8xf32>
    %13 = arith.addf %10, %12 : vector<236x8xf32>
    %cst_11 = arith.constant 0.000000e+00 : f32
    %14 = vector.broadcast %cst_11 : f32 to vector<236x8xf32>
    %15 = arith.maximumf %13, %14 : vector<236x8xf32>
    %c0_12 = arith.constant 0 : index
    %c0_13 = arith.constant 0 : index
    %16 = vector.load %arg7[%c0_12, %c0_13] : memref<212x236xf32, #tpu.memory_space<vmem>>, vector<212x236xf32>
    %cst_14 = arith.constant dense<0.000000e+00> : vector<212x8xf32>
    %17 = tpu.matmul %16, %15, %cst_14 {dimension_numbers = #tpu.dot_dimension_numbers<[1], [0], [0], [1], [0, 0, 1, 1], [], []>} : vector<212x236xf32>, vector<236x8xf32>, vector<212x8xf32> -> vector<212x8xf32>
    %c0_15 = arith.constant 0 : index
    %c0_16 = arith.constant 0 : index
    %18 = vector.load %arg8[%c0_15, %c0_16] : memref<212x1xf32, #tpu.memory_space<vmem>>, vector<212x1xf32>
    %19 = vector.broadcast %18 : vector<212x1xf32> to vector<212x8xf32>
    %20 = arith.addf %17, %19 : vector<212x8xf32>
    %cst_17 = arith.constant 0.000000e+00 : f32
    %21 = vector.broadcast %cst_17 : f32 to vector<212x8xf32>
    %22 = arith.maximumf %20, %21 : vector<212x8xf32>
    %c0_18 = arith.constant 0 : index
    %c0_19 = arith.constant 0 : index
    %23 = vector.load %arg9[%c0_18, %c0_19] : memref<176x212xf32, #tpu.memory_space<vmem>>, vector<176x212xf32>
    %cst_20 = arith.constant dense<0.000000e+00> : vector<176x8xf32>
    %24 = tpu.matmul %23, %22, %cst_20 {dimension_numbers = #tpu.dot_dimension_numbers<[1], [0], [0], [1], [0, 0, 1, 1], [], []>} : vector<176x212xf32>, vector<212x8xf32>, vector<176x8xf32> -> vector<176x8xf32>
    %c0_21 = arith.constant 0 : index
    %c0_22 = arith.constant 0 : index
    %25 = vector.load %arg10[%c0_21, %c0_22] : memref<176x1xf32, #tpu.memory_space<vmem>>, vector<176x1xf32>
    %26 = vector.broadcast %25 : vector<176x1xf32> to vector<176x8xf32>
    %27 = arith.addf %24, %26 : vector<176x8xf32>
    %cst_23 = arith.constant 0.000000e+00 : f32
    %28 = vector.broadcast %cst_23 : f32 to vector<176x8xf32>
    %29 = arith.maximumf %27, %28 : vector<176x8xf32>
    %c0_24 = arith.constant 0 : index
    %c0_25 = arith.constant 0 : index
    %30 = vector.load %arg11[%c0_24, %c0_25] : memref<108x176xf32, #tpu.memory_space<vmem>>, vector<108x176xf32>
    %cst_26 = arith.constant dense<0.000000e+00> : vector<108x8xf32>
    %31 = tpu.matmul %30, %29, %cst_26 {dimension_numbers = #tpu.dot_dimension_numbers<[1], [0], [0], [1], [0, 0, 1, 1], [], []>} : vector<108x176xf32>, vector<176x8xf32>, vector<108x8xf32> -> vector<108x8xf32>
    %c0_27 = arith.constant 0 : index
    %c0_28 = arith.constant 0 : index
    %32 = vector.load %arg12[%c0_27, %c0_28] : memref<108x1xf32, #tpu.memory_space<vmem>>, vector<108x1xf32>
    %33 = vector.broadcast %32 : vector<108x1xf32> to vector<108x8xf32>
    %34 = arith.addf %31, %33 : vector<108x8xf32>
    %cst_29 = arith.constant 0.000000e+00 : f32
    %35 = vector.broadcast %cst_29 : f32 to vector<108x8xf32>
    %36 = arith.maximumf %34, %35 : vector<108x8xf32>
    %c0_30 = arith.constant 0 : index
    %c0_31 = arith.constant 0 : index
    %37 = vector.load %arg13[%c0_30, %c0_31] : memref<3x108xf32, #tpu.memory_space<vmem>>, vector<3x108xf32>
    %cst_32 = arith.constant dense<0.000000e+00> : vector<3x8xf32>
    %38 = tpu.matmul %37, %36, %cst_32 {dimension_numbers = #tpu.dot_dimension_numbers<[1], [0], [0], [1], [0, 0, 1, 1], [], []>} : vector<3x108xf32>, vector<108x8xf32>, vector<3x8xf32> -> vector<3x8xf32>
    %c0_33 = arith.constant 0 : index
    %c0_34 = arith.constant 0 : index
    %39 = vector.load %arg14[%c0_33, %c0_34] : memref<3x1xf32, #tpu.memory_space<vmem>>, vector<3x1xf32>
    %40 = vector.broadcast %39 : vector<3x1xf32> to vector<3x8xf32>
    %41 = arith.addf %38, %40 : vector<3x8xf32>
    %c0_35 = arith.constant 0 : index
    %c0_36 = arith.constant 0 : index
    %42 = vector.load %arg15[%c0_35, %c0_36] : memref<3x8xf32, #tpu.memory_space<vmem>>, vector<3x8xf32>
    tpu.vector_store %arg15[%c0_35, %c0_36], %41 {strides = array<i32>} : memref<3x8xf32, #tpu.memory_space<vmem>>, vector<3x8xf32>,
    return
  }
  func.func @transform_0(%arg0: i32, %arg1: memref<1xi32, #tpu.memory_space<smem>>) -> (i32, i32) {
    %c0_i32 = arith.constant 0 : i32
    %c0_i32_0 = arith.constant 0 : i32
    return %arg0, %c0_i32 : i32, i32
  }
  func.func @transform_1(%arg0: i32, %arg1: memref<1xi32, #tpu.memory_space<smem>>) -> (i32, i32) {
    %c0_i32 = arith.constant 0 : i32
    %c0_i32_0 = arith.constant 0 : i32
    %c0_i32_1 = arith.constant 0 : i32
    return %c0_i32, %c0_i32_0 : i32, i32
  }
  func.func @transform_2(%arg0: i32, %arg1: memref<1xi32, #tpu.memory_space<smem>>) -> (i32, i32) {
    %c0_i32 = arith.constant 0 : i32
    %c0_i32_0 = arith.constant 0 : i32
    %c0_i32_1 = arith.constant 0 : i32
    return %c0_i32, %c0_i32_0 : i32, i32
  }
  func.func @transform_3(%arg0: i32, %arg1: memref<1xi32, #tpu.memory_space<smem>>) -> (i32, i32) {
    %c0_i32 = arith.constant 0 : i32
    %c0_i32_0 = arith.constant 0 : i32
    %c0_i32_1 = arith.constant 0 : i32
    return %c0_i32, %c0_i32_0 : i32, i32
  }
  func.func @transform_4(%arg0: i32, %arg1: memref<1xi32, #tpu.memory_space<smem>>) -> (i32, i32) {
    %c0_i32 = arith.constant 0 : i32
    %c0_i32_0 = arith.constant 0 : i32
    %c0_i32_1 = arith.constant 0 : i32
    return %c0_i32, %c0_i32_0 : i32, i32
  }
  func.func @transform_5(%arg0: i32, %arg1: memref<1xi32, #tpu.memory_space<smem>>) -> (i32, i32) {
    %c0_i32 = arith.constant 0 : i32
    %c0_i32_0 = arith.constant 0 : i32
    %c0_i32_1 = arith.constant 0 : i32
    return %c0_i32, %c0_i32_0 : i32, i32
  }
  func.func @transform_6(%arg0: i32, %arg1: memref<1xi32, #tpu.memory_space<smem>>) -> (i32, i32) {
    %c0_i32 = arith.constant 0 : i32
    %c0_i32_0 = arith.constant 0 : i32
    %c0_i32_1 = arith.constant 0 : i32
    return %c0_i32, %c0_i32_0 : i32, i32
  }
  func.func @transform_7(%arg0: i32, %arg1: memref<1xi32, #tpu.memory_space<smem>>) -> (i32, i32) {
    %c0_i32 = arith.constant 0 : i32
    %c0_i32_0 = arith.constant 0 : i32
    %c0_i32_1 = arith.constant 0 : i32
    return %c0_i32, %c0_i32_0 : i32, i32
  }
  func.func @transform_8(%arg0: i32, %arg1: memref<1xi32, #tpu.memory_space<smem>>) -> (i32, i32) {
    %c0_i32 = arith.constant 0 : i32
    %c0_i32_0 = arith.constant 0 : i32
    %c0_i32_1 = arith.constant 0 : i32
    return %c0_i32, %c0_i32_0 : i32, i32
  }
  func.func @transform_9(%arg0: i32, %arg1: memref<1xi32, #tpu.memory_space<smem>>) -> (i32, i32) {
    %c0_i32 = arith.constant 0 : i32
    %c0_i32_0 = arith.constant 0 : i32
    %c0_i32_1 = arith.constant 0 : i32
    return %c0_i32, %c0_i32_0 : i32, i32
  }
  func.func @transform_10(%arg0: i32, %arg1: memref<1xi32, #tpu.memory_space<smem>>) -> (i32, i32) {
    %c0_i32 = arith.constant 0 : i32
    %c0_i32_0 = arith.constant 0 : i32
    %c0_i32_1 = arith.constant 0 : i32
    return %c0_i32, %c0_i32_0 : i32, i32
  }
  func.func @transform_11(%arg0: i32, %arg1: memref<1xi32, #tpu.memory_space<smem>>) -> (i32, i32) {
    %c0_i32 = arith.constant 0 : i32
    %c0_i32_0 = arith.constant 0 : i32
    %c0_i32_1 = arith.constant 0 : i32
    return %c0_i32, %c0_i32_0 : i32, i32
  }
  func.func @transform_12(%arg0: i32, %arg1: memref<1xi32, #tpu.memory_space<smem>>) -> (i32, i32) {
    %c0_i32 = arith.constant 0 : i32
    %c0_i32_0 = arith.constant 0 : i32
    %c0_i32_1 = arith.constant 0 : i32
    return %c0_i32, %c0_i32_0 : i32, i32
  }
  func.func @transform_13(%arg0: i32, %arg1: memref<1xi32, #tpu.memory_space<smem>>) -> (i32, i32) {
    %c0_i32 = arith.constant 0 : i32
    %c0_i32_0 = arith.constant 0 : i32
    return %c0_i32, %arg0 : i32, i32
  }
}

</mosaic_0001>

<llo_original>
// kernel: tpu_custom_call.1
$region0: #{tpu_custom_call.1}
  #allocation0 [shape = 'u32[]', space=smem, size = 0x4, offset = 0x4, fixed_abs, tag = 'smem constant byte address 0x4 - core index']
  #allocation1 [shape = 'u32[144,128]{1,0:T(1,128)}', space=vmem, size = 0x12000, scoped, tag = 'internal scratch']
  #allocation2 [shape = 's32[1]{0}', space=sflag, size = 0x4, scoped, tag = 'scoped memory for tpu_custom_call.1']
  #allocation3 [shape = 's32[1]{0:T(128)S(6)}', space=smem, size = 0x200, scoped, tag = 'prefetched SMEM operand 0']
  %s0 = inlined_call_operand.<no memory space> [shape: s32[1], index: 0, kind: input, shape index: {}]
  %s1 = inlined_call_operand.vmem [shape: f32[8,256], index: 1, kind: input, shape index: {}]
  %s2 = inlined_call_operand.vmem [shape: f32[496,256], index: 2, kind: input, shape index: {}]
  %s3 = inlined_call_operand.vmem [shape: f32[496,1], index: 3, kind: input, shape index: {}]
  %s4 = inlined_call_operand.hbm [shape: f32[236,496], index: 4, kind: input, shape index: {}]
  %s5 = inlined_call_operand.vmem [shape: f32[236,1], index: 5, kind: input, shape index: {}]
  %s6 = inlined_call_operand.vmem [shape: f32[212,236], index: 6, kind: input, shape index: {}]
  %s7 = inlined_call_operand.vmem [shape: f32[212,1], index: 7, kind: input, shape index: {}]
  %s8 = inlined_call_operand.hbm [shape: f32[176,212], index: 8, kind: input, shape index: {}]
  %s9 = inlined_call_operand.vmem [shape: f32[176,1], index: 9, kind: input, shape index: {}]
  %s10 = inlined_call_operand.vmem [shape: f32[108,176], index: 10, kind: input, shape index: {}]
  %s11 = inlined_call_operand.vmem [shape: f32[108,1], index: 11, kind: input, shape index: {}]
  %s12 = inlined_call_operand.vmem [shape: f32[3,108], index: 12, kind: input, shape index: {}]
  %s13 = inlined_call_operand.vmem [shape: f32[3,1], index: 13, kind: input, shape index: {}]
  %s14 = inlined_call_operand.hbm [shape: f32[3,8], index: 14, kind: output, shape index: {}]
  %s15 = sld [smem:[#allocation0]]
  $region70: #{tpu_custom_call.1} parent=0
    _
  %s17 = ssub.s32 1, %s15
  %s18 = scalar_select 0, %s17, %s15
  %19 = sst [smem:[#allocation3]] %s0
  $region1: #{tpu_custom_call.1} parent=0
    #allocation4 [shape = 'u8[491520]{0}', space=vmem, size = 0x78000, scoped, tag = 'input window, operand 4, single buffered']
    #allocation5 [shape = 's32[1]{0}', space=sflag, size = 0x4, scoped, tag = 'scoped memory for tpu_custom_call.1']
    #allocation6 [shape = 's32[1]{0}', space=sflag, size = 0x4, scoped, tag = 'scoped memory for tpu_custom_call.1']
    #allocation7 [shape = 'u8[180224]{0}', space=vmem, size = 0x2c000, scoped, tag = 'input window, operand 8, single buffered']
    #allocation8 [shape = 's32[1]{0}', space=sflag, size = 0x4, scoped, tag = 'scoped memory for tpu_custom_call.1']
    #allocation9 [shape = 'u8[2048]{0}', space=vmem, size = 0x800, scoped, tag = 'output window, operand 0, single buffered']
    %20 = vsyncpa [#allocation5], 0
    %21 = vsyncpa [#allocation8], 0
    %22 = vsyncpa [#allocation6], 0
    // Predicated region
    $region2: #{tpu_custom_call.1} parent=1 // pred_check
      _
    $region3: #{tpu_custom_call.1} parent=1 // pred_check_branch
      %24 = sbr.rel (0) target = $region5
    $region4: #{tpu_custom_call.1} parent=1 // pred_region
      _
    $region5: #{tpu_custom_call.1} parent=1 // pred_fallthru
      _
    // Predicated region
    $region6: #{tpu_custom_call.1} parent=1 // pred_check
      _
    $region7: #{tpu_custom_call.1} parent=1 // pred_check_branch
      %26 = sbr.rel (0) target = $region9
    $region8: #{tpu_custom_call.1} parent=1 // pred_region
      _
    $region9: #{tpu_custom_call.1} parent=1 // pred_fallthru
      _
    // Predicated region
    $region10: #{tpu_custom_call.1} parent=1 // pred_check
      _
    $region11: #{tpu_custom_call.1} parent=1 // pred_check_branch
      %28 = sbr.rel (0) target = $region13
    $region12: #{tpu_custom_call.1} parent=1 // pred_region
      _
    $region13: #{tpu_custom_call.1} parent=1 // pred_fallthru
      _
    // Predicated region
    $region14: #{tpu_custom_call.1} parent=1 // pred_check
      _
    $region15: #{tpu_custom_call.1} parent=1 // pred_check_branch
      %30 = sbr.rel (0) target = $region17
    $region16: #{tpu_custom_call.1} parent=1 // pred_region
      %s32 = ssub.s32 15360, 15360
      %33 = vsyncadd [#allocation5], %s32
      %s34 = sshll.u32 [#allocation4], 4
      %s35 = int_to_ptr.vmem [resolvable:$true] %s34
      %40 = dma.hbm_to_vmem [thread:$0]  %s4, 15360, %s35, [#allocation5], 512, 512, 32
    $region17: #{tpu_custom_call.1} parent=1 // pred_fallthru
      _
    // Predicated region
    $region18: #{tpu_custom_call.1} parent=1 // pred_check
      _
    $region19: #{tpu_custom_call.1} parent=1 // pred_check_branch
      %42 = sbr.rel (0) target = $region21
    $region20: #{tpu_custom_call.1} parent=1 // pred_region
      _
    $region21: #{tpu_custom_call.1} parent=1 // pred_fallthru
      _
    // Predicated region
    $region22: #{tpu_custom_call.1} parent=1 // pred_check
      _
    $region23: #{tpu_custom_call.1} parent=1 // pred_check_branch
      %44 = sbr.rel (0) target = $region25
    $region24: #{tpu_custom_call.1} parent=1 // pred_region
      _
    $region25: #{tpu_custom_call.1} parent=1 // pred_fallthru
      _
    // Predicated region
    $region26: #{tpu_custom_call.1} parent=1 // pred_check
      _
    $region27: #{tpu_custom_call.1} parent=1 // pred_check_branch
      %46 = sbr.rel (0) target = $region29
    $region28: #{tpu_custom_call.1} parent=1 // pred_region
      _
    $region29: #{tpu_custom_call.1} parent=1 // pred_fallthru
      _
    // Predicated region
    $region30: #{tpu_custom_call.1} parent=1 // pred_check
      _
    $region31: #{tpu_custom_call.1} parent=1 // pred_check_branch
      %48 = sbr.rel (0) target = $region33
    $region32: #{tpu_custom_call.1} parent=1 // pred_region
      %s50 = ssub.s32 5632, 5632
      %51 = vsyncadd [#allocation8], %s50
      %s52 = sshll.u32 [#allocation7], 4
      %s53 = int_to_ptr.vmem [resolvable:$true] %s52
      %58 = dma.hbm_to_vmem [thread:$0]  %s8, 5632, %s53, [#allocation8], 256, 256, 16
    $region33: #{tpu_custom_call.1} parent=1 // pred_fallthru
      _
    // Predicated region
    $region34: #{tpu_custom_call.1} parent=1 // pred_check
      _
    $region35: #{tpu_custom_call.1} parent=1 // pred_check_branch
      %60 = sbr.rel (0) target = $region37
    $region36: #{tpu_custom_call.1} parent=1 // pred_region
      _
    $region37: #{tpu_custom_call.1} parent=1 // pred_fallthru
      _
    // Predicated region
    $region38: #{tpu_custom_call.1} parent=1 // pred_check
      _
    $region39: #{tpu_custom_call.1} parent=1 // pred_check_branch
      %62 = sbr.rel (0) target = $region41
    $region40: #{tpu_custom_call.1} parent=1 // pred_region
      _
    $region41: #{tpu_custom_call.1} parent=1 // pred_fallthru
      _
    // Predicated region
    $region42: #{tpu_custom_call.1} parent=1 // pred_check
      _
    $region43: #{tpu_custom_call.1} parent=1 // pred_check_branch
      %64 = sbr.rel (0) target = $region45
    $region44: #{tpu_custom_call.1} parent=1 // pred_region
      _
    $region45: #{tpu_custom_call.1} parent=1 // pred_fallthru
      _
    // Predicated region
    $region46: #{tpu_custom_call.1} parent=1 // pred_check
      _
    $region47: #{tpu_custom_call.1} parent=1 // pred_check_branch
      %66 = sbr.rel (0) target = $region49
    $region48: #{tpu_custom_call.1} parent=1 // pred_region
      _
    $region49: #{tpu_custom_call.1} parent=1 // pred_fallthru
      _
    // Predicated region
    $region50: #{tpu_custom_call.1} parent=1 // pred_check
      _
    $region51: #{tpu_custom_call.1} parent=1 // pred_check_branch
      %68 = sbr.rel (0) target = $region53
    $region52: #{tpu_custom_call.1} parent=1 // pred_region
      _
    $region53: #{tpu_custom_call.1} parent=1 // pred_fallthru
      _
    // Predicated region
    $region54: #{tpu_custom_call.1} parent=1 // pred_check
      _
    $region55: #{tpu_custom_call.1} parent=1 // pred_check_branch
      %70 = sbr.rel (0) target = $region57
    $region56: #{tpu_custom_call.1} parent=1 // pred_region
      %71 = dma.done [#allocation5], 15360
    $region57: #{tpu_custom_call.1} parent=1 // pred_fallthru
      _
    // Predicated region
    $region58: #{tpu_custom_call.1} parent=1 // pred_check
      _
    $region59: #{tpu_custom_call.1} parent=1 // pred_check_branch
      %73 = sbr.rel (0) target = $region61
    $region60: #{tpu_custom_call.1} parent=1 // pred_region
      %74 = dma.done [#allocation8], 5632
    $region61: #{tpu_custom_call.1} parent=1 // pred_fallthru
      _
    %v75 = vld [vmem:[%s1] sm:$0xff]
    %v76 = vld [vmem:[%s1 + $0x8] sm:$0xff]
    %v77 = vld [vmem:[%s2] sm:$0xff]
    %v78 = vld [vmem:[%s2 + $0x8] sm:$0xff]
    %v79 = vld [vmem:[%s2 + $0x10] sm:$0xff]
    %v80 = vld [vmem:[%s2 + $0x18] sm:$0xff]
    %v81 = vld [vmem:[%s2 + $0x20] sm:$0xff]
    %v82 = vld [vmem:[%s2 + $0x28] sm:$0xff]
    %v83 = vld [vmem:[%s2 + $0x30] sm:$0xff]
    %v84 = vld [vmem:[%s2 + $0x38] sm:$0xff]
    %v85 = vld [vmem:[%s2 + $0x40] sm:$0xff]
    %v86 = vld [vmem:[%s2 + $0x48] sm:$0xff]
    %v87 = vld [vmem:[%s2 + $0x50] sm:$0xff]
    %v88 = vld [vmem:[%s2 + $0x58] sm:$0xff]
    %v89 = vld [vmem:[%s2 + $0x60] sm:$0xff]
    %v90 = vld [vmem:[%s2 + $0x68] sm:$0xff]
    %v91 = vld [vmem:[%s2 + $0x70] sm:$0xff]
    %v92 = vld [vmem:[%s2 + $0x78] sm:$0xff]
    %v93 = vld [vmem:[%s2 + $0x80] sm:$0xff]
    %v94 = vld [vmem:[%s2 + $0x88] sm:$0xff]
    %v95 = vld [vmem:[%s2 + $0x90] sm:$0xff]
    %v96 = vld [vmem:[%s2 + $0x98] sm:$0xff]
    %v97 = vld [vmem:[%s2 + $0xa0] sm:$0xff]
    %v98 = vld [vmem:[%s2 + $0xa8] sm:$0xff]
    %v99 = vld [vmem:[%s2 + $0xb0] sm:$0xff]
    %v100 = vld [vmem:[%s2 + $0xb8] sm:$0xff]
    %v101 = vld [vmem:[%s2 + $0xc0] sm:$0xff]
    %v102 = vld [vmem:[%s2 + $0xc8] sm:$0xff]
    %v103 = vld [vmem:[%s2 + $0xd0] sm:$0xff]
    %v104 = vld [vmem:[%s2 + $0xd8] sm:$0xff]
    %v105 = vld [vmem:[%s2 + $0xe0] sm:$0xff]
    %v106 = vld [vmem:[%s2 + $0xe8] sm:$0xff]
    %v107 = vld [vmem:[%s2 + $0xf0] sm:$0xff]
    %v108 = vld [vmem:[%s2 + $0xf8] sm:$0xff]
    %v109 = vld [vmem:[%s2 + $0x100] sm:$0xff]
    %v110 = vld [vmem:[%s2 + $0x108] sm:$0xff]
    %v111 = vld [vmem:[%s2 + $0x110] sm:$0xff]
    %v112 = vld [vmem:[%s2 + $0x118] sm:$0xff]
    %v113 = vld [vmem:[%s2 + $0x120] sm:$0xff]
    %v114 = vld [vmem:[%s2 + $0x128] sm:$0xff]
    %v115 = vld [vmem:[%s2 + $0x130] sm:$0xff]
    %v116 = vld [vmem:[%s2 + $0x138] sm:$0xff]
    %v117 = vld [vmem:[%s2 + $0x140] sm:$0xff]
    %v118 = vld [vmem:[%s2 + $0x148] sm:$0xff]
    %v119 = vld [vmem:[%s2 + $0x150] sm:$0xff]
    %v120 = vld [vmem:[%s2 + $0x158] sm:$0xff]
    %v121 = vld [vmem:[%s2 + $0x160] sm:$0xff]
    %v122 = vld [vmem:[%s2 + $0x168] sm:$0xff]
    %v123 = vld [vmem:[%s2 + $0x170] sm:$0xff]
    %v124 = vld [vmem:[%s2 + $0x178] sm:$0xff]
    %v125 = vld [vmem:[%s2 + $0x180] sm:$0xff]
    %v126 = vld [vmem:[%s2 + $0x188] sm:$0xff]
    %v127 = vld [vmem:[%s2 + $0x190] sm:$0xff]
    %v128 = vld [vmem:[%s2 + $0x198] sm:$0xff]
    %v129 = vld [vmem:[%s2 + $0x1a0] sm:$0xff]
    %v130 = vld [vmem:[%s2 + $0x1a8] sm:$0xff]
    %v131 = vld [vmem:[%s2 + $0x1b0] sm:$0xff]
    %v132 = vld [vmem:[%s2 + $0x1b8] sm:$0xff]
    %v133 = vld [vmem:[%s2 + $0x1c0] sm:$0xff]
    %v134 = vld [vmem:[%s2 + $0x1c8] sm:$0xff]
    %v135 = vld [vmem:[%s2 + $0x1d0] sm:$0xff]
    %v136 = vld [vmem:[%s2 + $0x1d8] sm:$0xff]
    %v137 = vld [vmem:[%s2 + $0x1e0] sm:$0xff]
    %v138 = vld [vmem:[%s2 + $0x1e8] sm:$0xff]
    %v139 = vld [vmem:[%s2 + $0x1f0] sm:$0xff]
    %v140 = vld [vmem:[%s2 + $0x1f8] sm:$0xff]
    %v141 = vld [vmem:[%s2 + $0x200] sm:$0xff]
    %v142 = vld [vmem:[%s2 + $0x208] sm:$0xff]
    %v143 = vld [vmem:[%s2 + $0x210] sm:$0xff]
    %v144 = vld [vmem:[%s2 + $0x218] sm:$0xff]
    %v145 = vld [vmem:[%s2 + $0x220] sm:$0xff]
    %v146 = vld [vmem:[%s2 + $0x228] sm:$0xff]
    %v147 = vld [vmem:[%s2 + $0x230] sm:$0xff]
    %v148 = vld [vmem:[%s2 + $0x238] sm:$0xff]
    %v149 = vld [vmem:[%s2 + $0x240] sm:$0xff]
    %v150 = vld [vmem:[%s2 + $0x248] sm:$0xff]
    %v151 = vld [vmem:[%s2 + $0x250] sm:$0xff]
    %v152 = vld [vmem:[%s2 + $0x258] sm:$0xff]
    %v153 = vld [vmem:[%s2 + $0x260] sm:$0xff]
    %v154 = vld [vmem:[%s2 + $0x268] sm:$0xff]
    %v155 = vld [vmem:[%s2 + $0x270] sm:$0xff]
    %v156 = vld [vmem:[%s2 + $0x278] sm:$0xff]
    %v157 = vld [vmem:[%s2 + $0x280] sm:$0xff]
    %v158 = vld [vmem:[%s2 + $0x288] sm:$0xff]
    %v159 = vld [vmem:[%s2 + $0x290] sm:$0xff]
    %v160 = vld [vmem:[%s2 + $0x298] sm:$0xff]
    %v161 = vld [vmem:[%s2 + $0x2a0] sm:$0xff]
    %v162 = vld [vmem:[%s2 + $0x2a8] sm:$0xff]
    %v163 = vld [vmem:[%s2 + $0x2b0] sm:$0xff]
    %v164 = vld [vmem:[%s2 + $0x2b8] sm:$0xff]
    %v165 = vld [vmem:[%s2 + $0x2c0] sm:$0xff]
    %v166 = vld [vmem:[%s2 + $0x2c8] sm:$0xff]
    %v167 = vld [vmem:[%s2 + $0x2d0] sm:$0xff]
    %v168 = vld [vmem:[%s2 + $0x2d8] sm:$0xff]
    %v169 = vld [vmem:[%s2 + $0x2e0] sm:$0xff]
    %v170 = vld [vmem:[%s2 + $0x2e8] sm:$0xff]
    %v171 = vld [vmem:[%s2 + $0x2f0] sm:$0xff]
    %v172 = vld [vmem:[%s2 + $0x2f8] sm:$0xff]
    %v173 = vld [vmem:[%s2 + $0x300] sm:$0xff]
    %v174 = vld [vmem:[%s2 + $0x308] sm:$0xff]
    %v175 = vld [vmem:[%s2 + $0x310] sm:$0xff]
    %v176 = vld [vmem:[%s2 + $0x318] sm:$0xff]
    %v177 = vld [vmem:[%s2 + $0x320] sm:$0xff]
    %v178 = vld [vmem:[%s2 + $0x328] sm:$0xff]
    %v179 = vld [vmem:[%s2 + $0x330] sm:$0xff]
    %v180 = vld [vmem:[%s2 + $0x338] sm:$0xff]
    %v181 = vld [vmem:[%s2 + $0x340] sm:$0xff]
    %v182 = vld [vmem:[%s2 + $0x348] sm:$0xff]
    %v183 = vld [vmem:[%s2 + $0x350] sm:$0xff]
    %v184 = vld [vmem:[%s2 + $0x358] sm:$0xff]
    %v185 = vld [vmem:[%s2 + $0x360] sm:$0xff]
    %v186 = vld [vmem:[%s2 + $0x368] sm:$0xff]
    %v187 = vld [vmem:[%s2 + $0x370] sm:$0xff]
    %v188 = vld [vmem:[%s2 + $0x378] sm:$0xff]
    %v189 = vld [vmem:[%s2 + $0x380] sm:$0xff]
    %v190 = vld [vmem:[%s2 + $0x388] sm:$0xff]
    %v191 = vld [vmem:[%s2 + $0x390] sm:$0xff]
    %v192 = vld [vmem:[%s2 + $0x398] sm:$0xff]
    %v193 = vld [vmem:[%s2 + $0x3a0] sm:$0xff]
    %v194 = vld [vmem:[%s2 + $0x3a8] sm:$0xff]
    %v195 = vld [vmem:[%s2 + $0x3b0] sm:$0xff]
    %v196 = vld [vmem:[%s2 + $0x3b8] sm:$0xff]
    %v197 = vld [vmem:[%s2 + $0x3c0] sm:$0xff]
    %v198 = vld [vmem:[%s2 + $0x3c8] sm:$0xff]
    %v199 = vld [vmem:[%s2 + $0x3d0] sm:$0xff]
    %v200 = vld [vmem:[%s2 + $0x3d8] sm:$0xff]
    %v201 = vld [vmem:[%s3] sm:$0xff]
    %v202 = vld [vmem:[%s3 + $0x8] sm:$0xff]
    %v203 = vld [vmem:[%s3 + $0x10] sm:$0xff]
    %v204 = vld [vmem:[%s3 + $0x18] sm:$0xff]
    %v205 = vld [vmem:[%s3 + $0x20] sm:$0xff]
    %v206 = vld [vmem:[%s3 + $0x28] sm:$0xff]
    %v207 = vld [vmem:[%s3 + $0x30] sm:$0xff]
    %v208 = vld [vmem:[%s3 + $0x38] sm:$0xff]
    %v209 = vld [vmem:[%s3 + $0x40] sm:$0xff]
    %v210 = vld [vmem:[%s3 + $0x48] sm:$0xff]
    %v211 = vld [vmem:[%s3 + $0x50] sm:$0xff]
    %v212 = vld [vmem:[%s3 + $0x58] sm:$0xff]
    %v213 = vld [vmem:[%s3 + $0x60] sm:$0xff]
    %v214 = vld [vmem:[%s3 + $0x68] sm:$0xff]
    %v215 = vld [vmem:[%s3 + $0x70] sm:$0xff]
    %v216 = vld [vmem:[%s3 + $0x78] sm:$0xff]
    %v217 = vld [vmem:[%s3 + $0x80] sm:$0xff]
    %v218 = vld [vmem:[%s3 + $0x88] sm:$0xff]
    %v219 = vld [vmem:[%s3 + $0x90] sm:$0xff]
    %v220 = vld [vmem:[%s3 + $0x98] sm:$0xff]
    %v221 = vld [vmem:[%s3 + $0xa0] sm:$0xff]
    %v222 = vld [vmem:[%s3 + $0xa8] sm:$0xff]
    %v223 = vld [vmem:[%s3 + $0xb0] sm:$0xff]
    %v224 = vld [vmem:[%s3 + $0xb8] sm:$0xff]
    %v225 = vld [vmem:[%s3 + $0xc0] sm:$0xff]
    %v226 = vld [vmem:[%s3 + $0xc8] sm:$0xff]
    %v227 = vld [vmem:[%s3 + $0xd0] sm:$0xff]
    %v228 = vld [vmem:[%s3 + $0xd8] sm:$0xff]
    %v229 = vld [vmem:[%s3 + $0xe0] sm:$0xff]
    %v230 = vld [vmem:[%s3 + $0xe8] sm:$0xff]
    %v231 = vld [vmem:[%s3 + $0xf0] sm:$0xff]
    %v232 = vld [vmem:[%s3 + $0xf8] sm:$0xff]
    %v233 = vld [vmem:[%s3 + $0x100] sm:$0xff]
    %v234 = vld [vmem:[%s3 + $0x108] sm:$0xff]
    %v235 = vld [vmem:[%s3 + $0x110] sm:$0xff]
    %v236 = vld [vmem:[%s3 + $0x118] sm:$0xff]
    %v237 = vld [vmem:[%s3 + $0x120] sm:$0xff]
    %v238 = vld [vmem:[%s3 + $0x128] sm:$0xff]
    %v239 = vld [vmem:[%s3 + $0x130] sm:$0xff]
    %v240 = vld [vmem:[%s3 + $0x138] sm:$0xff]
    %v241 = vld [vmem:[%s3 + $0x140] sm:$0xff]
    %v242 = vld [vmem:[%s3 + $0x148] sm:$0xff]
    %v243 = vld [vmem:[%s3 + $0x150] sm:$0xff]
    %v244 = vld [vmem:[%s3 + $0x158] sm:$0xff]
    %v245 = vld [vmem:[%s3 + $0x160] sm:$0xff]
    %v246 = vld [vmem:[%s3 + $0x168] sm:$0xff]
    %v247 = vld [vmem:[%s3 + $0x170] sm:$0xff]
    %v248 = vld [vmem:[%s3 + $0x178] sm:$0xff]
    %v249 = vld [vmem:[%s3 + $0x180] sm:$0xff]
    %v250 = vld [vmem:[%s3 + $0x188] sm:$0xff]
    %v251 = vld [vmem:[%s3 + $0x190] sm:$0xff]
    %v252 = vld [vmem:[%s3 + $0x198] sm:$0xff]
    %v253 = vld [vmem:[%s3 + $0x1a0] sm:$0xff]
    %v254 = vld [vmem:[%s3 + $0x1a8] sm:$0xff]
    %v255 = vld [vmem:[%s3 + $0x1b0] sm:$0xff]
    %v256 = vld [vmem:[%s3 + $0x1b8] sm:$0xff]
    %v257 = vld [vmem:[%s3 + $0x1c0] sm:$0xff]
    %v258 = vld [vmem:[%s3 + $0x1c8] sm:$0xff]
    %v259 = vld [vmem:[%s3 + $0x1d0] sm:$0xff]
    %v260 = vld [vmem:[%s3 + $0x1d8] sm:$0xff]
    %v261 = vld [vmem:[%s3 + $0x1e0] sm:$0xff]
    %v262 = vld [vmem:[%s3 + $0x1e8] sm:$0xff]
    %264 = vset.pattern.permute.xlu0 0
    %265 = vperm.xlu0 %264, %v201
    %v266 = vpop.permute.xlu0 %265
    %269 = vset.pattern.permute.xlu0 0
    %270 = vperm.xlu0 %269, %v202
    %v271 = vpop.permute.xlu0 %270
    %274 = vset.pattern.permute.xlu0 0
    %275 = vperm.xlu0 %274, %v203
    %v276 = vpop.permute.xlu0 %275
    %279 = vset.pattern.permute.xlu0 0
    %280 = vperm.xlu0 %279, %v204
    %v281 = vpop.permute.xlu0 %280
    %284 = vset.pattern.permute.xlu0 0
    %285 = vperm.xlu0 %284, %v205
    %v286 = vpop.permute.xlu0 %285
    %289 = vset.pattern.permute.xlu0 0
    %290 = vperm.xlu0 %289, %v206
    %v291 = vpop.permute.xlu0 %290
    %294 = vset.pattern.permute.xlu0 0
    %295 = vperm.xlu0 %294, %v207
    %v296 = vpop.permute.xlu0 %295
    %299 = vset.pattern.permute.xlu0 0
    %300 = vperm.xlu0 %299, %v208
    %v301 = vpop.permute.xlu0 %300
    %304 = vset.pattern.permute.xlu0 0
    %305 = vperm.xlu0 %304, %v209
    %v306 = vpop.permute.xlu0 %305
    %309 = vset.pattern.permute.xlu0 0
    %310 = vperm.xlu0 %309, %v210
    %v311 = vpop.permute.xlu0 %310
    %314 = vset.pattern.permute.xlu0 0
    %315 = vperm.xlu0 %314, %v211
    %v316 = vpop.permute.xlu0 %315
    %319 = vset.pattern.permute.xlu0 0
    %320 = vperm.xlu0 %319, %v212
    %v321 = vpop.permute.xlu0 %320
    %324 = vset.pattern.permute.xlu0 0
    %325 = vperm.xlu0 %324, %v213
    %v326 = vpop.permute.xlu0 %325
    %329 = vset.pattern.permute.xlu0 0
    %330 = vperm.xlu0 %329, %v214
    %v331 = vpop.permute.xlu0 %330
    %334 = vset.pattern.permute.xlu0 0
    %335 = vperm.xlu0 %334, %v215
    %v336 = vpop.permute.xlu0 %335
    %339 = vset.pattern.permute.xlu0 0
    %340 = vperm.xlu0 %339, %v216
    %v341 = vpop.permute.xlu0 %340
    %344 = vset.pattern.permute.xlu0 0
    %345 = vperm.xlu0 %344, %v217
    %v346 = vpop.permute.xlu0 %345
    %349 = vset.pattern.permute.xlu0 0
    %350 = vperm.xlu0 %349, %v218
    %v351 = vpop.permute.xlu0 %350
    %354 = vset.pattern.permute.xlu0 0
    %355 = vperm.xlu0 %354, %v219
    %v356 = vpop.permute.xlu0 %355
    %359 = vset.pattern.permute.xlu0 0
    %360 = vperm.xlu0 %359, %v220
    %v361 = vpop.permute.xlu0 %360
    %364 = vset.pattern.permute.xlu0 0
    %365 = vperm.xlu0 %364, %v221
    %v366 = vpop.permute.xlu0 %365
    %369 = vset.pattern.permute.xlu0 0
    %370 = vperm.xlu0 %369, %v222
    %v371 = vpop.permute.xlu0 %370
    %374 = vset.pattern.permute.xlu0 0
    %375 = vperm.xlu0 %374, %v223
    %v376 = vpop.permute.xlu0 %375
    %379 = vset.pattern.permute.xlu0 0
    %380 = vperm.xlu0 %379, %v224
    %v381 = vpop.permute.xlu0 %380
    %384 = vset.pattern.permute.xlu0 0
    %385 = vperm.xlu0 %384, %v225
    %v386 = vpop.permute.xlu0 %385
    %389 = vset.pattern.permute.xlu0 0
    %390 = vperm.xlu0 %389, %v226
    %v391 = vpop.permute.xlu0 %390
    %394 = vset.pattern.permute.xlu0 0
    %395 = vperm.xlu0 %394, %v227
    %v396 = vpop.permute.xlu0 %395
    %399 = vset.pattern.permute.xlu0 0
    %400 = vperm.xlu0 %399, %v228
    %v401 = vpop.permute.xlu0 %400
    %404 = vset.pattern.permute.xlu0 0
    %405 = vperm.xlu0 %404, %v229
    %v406 = vpop.permute.xlu0 %405
    %409 = vset.pattern.permute.xlu0 0
    %410 = vperm.xlu0 %409, %v230
    %v411 = vpop.permute.xlu0 %410
    %414 = vset.pattern.permute.xlu0 0
    %415 = vperm.xlu0 %414, %v231
    %v416 = vpop.permute.xlu0 %415
    %419 = vset.pattern.permute.xlu0 0
    %420 = vperm.xlu0 %419, %v232
    %v421 = vpop.permute.xlu0 %420
    %424 = vset.pattern.permute.xlu0 0
    %425 = vperm.xlu0 %424, %v233
    %v426 = vpop.permute.xlu0 %425
    %429 = vset.pattern.permute.xlu0 0
    %430 = vperm.xlu0 %429, %v234
    %v431 = vpop.permute.xlu0 %430
    %434 = vset.pattern.permute.xlu0 0
    %435 = vperm.xlu0 %434, %v235
    %v436 = vpop.permute.xlu0 %435
    %439 = vset.pattern.permute.xlu0 0
    %440 = vperm.xlu0 %439, %v236
    %v441 = vpop.permute.xlu0 %440
    %444 = vset.pattern.permute.xlu0 0
    %445 = vperm.xlu0 %444, %v237
    %v446 = vpop.permute.xlu0 %445
    %449 = vset.pattern.permute.xlu0 0
    %450 = vperm.xlu0 %449, %v238
    %v451 = vpop.permute.xlu0 %450
    %454 = vset.pattern.permute.xlu0 0
    %455 = vperm.xlu0 %454, %v239
    %v456 = vpop.permute.xlu0 %455
    %459 = vset.pattern.permute.xlu0 0
    %460 = vperm.xlu0 %459, %v240
    %v461 = vpop.permute.xlu0 %460
    %464 = vset.pattern.permute.xlu0 0
    %465 = vperm.xlu0 %464, %v241
    %v466 = vpop.permute.xlu0 %465
    %469 = vset.pattern.permute.xlu0 0
    %470 = vperm.xlu0 %469, %v242
    %v471 = vpop.permute.xlu0 %470
    %474 = vset.pattern.permute.xlu0 0
    %475 = vperm.xlu0 %474, %v243
    %v476 = vpop.permute.xlu0 %475
    %479 = vset.pattern.permute.xlu0 0
    %480 = vperm.xlu0 %479, %v244
    %v481 = vpop.permute.xlu0 %480
    %484 = vset.pattern.permute.xlu0 0
    %485 = vperm.xlu0 %484, %v245
    %v486 = vpop.permute.xlu0 %485
    %489 = vset.pattern.permute.xlu0 0
    %490 = vperm.xlu0 %489, %v246
    %v491 = vpop.permute.xlu0 %490
    %494 = vset.pattern.permute.xlu0 0
    %495 = vperm.xlu0 %494, %v247
    %v496 = vpop.permute.xlu0 %495
    %499 = vset.pattern.permute.xlu0 0
    %500 = vperm.xlu0 %499, %v248
    %v501 = vpop.permute.xlu0 %500
    %504 = vset.pattern.permute.xlu0 0
    %505 = vperm.xlu0 %504, %v249
    %v506 = vpop.permute.xlu0 %505
    %509 = vset.pattern.permute.xlu0 0
    %510 = vperm.xlu0 %509, %v250
    %v511 = vpop.permute.xlu0 %510
    %514 = vset.pattern.permute.xlu0 0
    %515 = vperm.xlu0 %514, %v251
    %v516 = vpop.permute.xlu0 %515
    %519 = vset.pattern.permute.xlu0 0
    %520 = vperm.xlu0 %519, %v252
    %v521 = vpop.permute.xlu0 %520
    %524 = vset.pattern.permute.xlu0 0
    %525 = vperm.xlu0 %524, %v253
    %v526 = vpop.permute.xlu0 %525
    %529 = vset.pattern.permute.xlu0 0
    %530 = vperm.xlu0 %529, %v254
    %v531 = vpop.permute.xlu0 %530
    %534 = vset.pattern.permute.xlu0 0
    %535 = vperm.xlu0 %534, %v255
    %v536 = vpop.permute.xlu0 %535
    %539 = vset.pattern.permute.xlu0 0
    %540 = vperm.xlu0 %539, %v256
    %v541 = vpop.permute.xlu0 %540
    %544 = vset.pattern.permute.xlu0 0
    %545 = vperm.xlu0 %544, %v257
    %v546 = vpop.permute.xlu0 %545
    %549 = vset.pattern.permute.xlu0 0
    %550 = vperm.xlu0 %549, %v258
    %v551 = vpop.permute.xlu0 %550
    %554 = vset.pattern.permute.xlu0 0
    %555 = vperm.xlu0 %554, %v259
    %v556 = vpop.permute.xlu0 %555
    %559 = vset.pattern.permute.xlu0 0
    %560 = vperm.xlu0 %559, %v260
    %v561 = vpop.permute.xlu0 %560
    %564 = vset.pattern.permute.xlu0 0
    %565 = vperm.xlu0 %564, %v261
    %v566 = vpop.permute.xlu0 %565
    %569 = vset.pattern.permute.xlu0 0
    %570 = vperm.xlu0 %569, %v262
    %v571 = vpop.permute.xlu0 %570
    %573 = vmatprep.subr.mxu0 %v76
    %574 = vmatpush1.xpose.msra.mxu0 %v75
    %575 = vmatprep.subr.mxu0 0.0
    %576 = vmatpush1.xpose.msra.mxu0 0.0
    %577 = vmatprep.subr.mxu0 0.0
    %578 = vmatpush1.xpose.msra.mxu0 0.0
    %579 = vmatprep.subr.mxu0 0.0
    %580 = vmatpush1.xpose.msra.mxu0 0.0
    %581 = vmatprep.subr.mxu0 0.0
    %582 = vmatpush1.xpose.msra.mxu0 0.0
    %583 = vmatprep.subr.mxu0 0.0
    %584 = vmatpush1.xpose.msra.mxu0 0.0
    %585 = vmatprep.subr.mxu0 0.0
    %586 = vmatpush1.xpose.msra.mxu0 0.0
    %587 = vmatprep.subr.mxu0 0.0
    %588 = vmatpush1.xpose.msra.mxu0 0.0
    %589 = vmatprep.subr.mxu0 0.0
    %590 = vmatpush1.xpose.msra.mxu0 0.0
    %591 = vmatprep.subr.mxu0 0.0
    %592 = vmatpush1.xpose.msra.mxu0 0.0
    %593 = vmatprep.subr.mxu0 0.0
    %594 = vmatpush1.xpose.msra.mxu0 0.0
    %595 = vmatprep.subr.mxu0 0.0
    %596 = vmatpush1.xpose.msra.mxu0 0.0
    %597 = vmatprep.subr.mxu0 0.0
    %598 = vmatpush1.xpose.msra.mxu0 0.0
    %599 = vmatprep.subr.mxu0 0.0
    %600 = vmatpush1.xpose.msra.mxu0 0.0
    %601 = vmatprep.subr.mxu0 0.0
    %602 = vmatpush1.xpose.msra.mxu0 0.0
    %603 = vmatprep.subr.mxu0 0.0
    %604 = vmatpush1.xpose.msra.mxu0 0.0
    %605 = vmatprep.subr.mxu0 0.0
    %606 = vmatpush1.xpose.msra.mxu0 0.0
    %607 = vmatprep.subr.mxu0 0.0
    %608 = vmatpush1.xpose.msra.mxu0 0.0
    %609 = vmatprep.subr.mxu0 0.0
    %610 = vmatpush1.xpose.msra.mxu0 0.0
    %611 = vmatprep.subr.mxu0 0.0
    %612 = vmatpush1.xpose.msra.mxu0 0.0
    %613 = vmatprep.subr.mxu0 0.0
    %614 = vmatpush1.xpose.msra.mxu0 0.0
    %615 = vmatprep.subr.mxu0 0.0
    %616 = vmatpush1.xpose.msra.mxu0 0.0
    %617 = vmatprep.subr.mxu0 0.0
    %618 = vmatpush1.xpose.msra.mxu0 0.0
    %619 = vmatprep.subr.mxu0 0.0
    %620 = vmatpush1.xpose.msra.mxu0 0.0
    %621 = vmatprep.subr.mxu0 0.0
    %622 = vmatpush1.xpose.msra.mxu0 0.0
    %623 = vmatprep.subr.mxu0 0.0
    %624 = vmatpush1.xpose.msra.mxu0 0.0
    %625 = vmatprep.subr.mxu0 0.0
    %626 = vmatpush1.xpose.msra.mxu0 0.0
    %627 = vmatprep.subr.mxu0 0.0
    %628 = vmatpush1.xpose.msra.mxu0 0.0
    %629 = vmatprep.subr.mxu0 0.0
    %630 = vmatpush1.xpose.msra.mxu0 0.0
    %631 = vmatprep.subr.mxu0 0.0
    %632 = vmatpush1.xpose.msra.mxu0 0.0
    %633 = vmatprep.subr.mxu0 0.0
    %634 = vmatpush1.xpose.msra.mxu0 0.0
    %635 = vmatprep.subr.mxu0 0.0
    %636 = vmatpush1.xpose.msra.mxu0 0.0
    %637 = vmatprep.mubr.f32.mxu0 %v78
    %638 = vmatmul.mubr.f32.gmra.mrb[0].mxu0 %v77
    %v639 = vpop.f32.mrb[0].mxu0
    %v640 = vadd.f32 %v266, %v639
    %v641 = vpop.f32.mrb[0].mxu0
    %642 = vmatprep.mubr.f32.mxu0 %v80
    %643 = vmatmul.mubr.f32.gmra.mrb[0].mxu0 %v79
    %v644 = vpop.f32.mrb[0].mxu0
    %v645 = vadd.f32 %v271, %v644
    %v646 = vpop.f32.mrb[0].mxu0
    %647 = vmatprep.mubr.f32.mxu0 %v82
    %648 = vmatmul.mubr.f32.gmra.mrb[0].mxu0 %v81
    %v649 = vpop.f32.mrb[0].mxu0
    %v650 = vadd.f32 %v276, %v649
    %v651 = vpop.f32.mrb[0].mxu0
    %652 = vmatprep.mubr.f32.mxu0 %v84
    %653 = vmatmul.mubr.f32.gmra.mrb[0].mxu0 %v83
    %v654 = vpop.f32.mrb[0].mxu0
    %v655 = vadd.f32 %v281, %v654
    %v656 = vpop.f32.mrb[0].mxu0
    %657 = vmatprep.mubr.f32.mxu0 %v86
    %658 = vmatmul.mubr.f32.gmra.mrb[0].mxu0 %v85
    %v659 = vpop.f32.mrb[0].mxu0
    %v660 = vadd.f32 %v286, %v659
    %v661 = vpop.f32.mrb[0].mxu0
    %662 = vmatprep.mubr.f32.mxu0 %v88
    %663 = vmatmul.mubr.f32.gmra.mrb[0].mxu0 %v87
    %v664 = vpop.f32.mrb[0].mxu0
    %v665 = vadd.f32 %v291, %v664
    %v666 = vpop.f32.mrb[0].mxu0
    %667 = vmatprep.mubr.f32.mxu0 %v90
    %668 = vmatmul.mubr.f32.gmra.mrb[0].mxu0 %v89
    %v669 = vpop.f32.mrb[0].mxu0
    %v670 = vadd.f32 %v296, %v669
    %v671 = vpop.f32.mrb[0].mxu0
    %672 = vmatprep.mubr.f32.mxu0 %v92
    %673 = vmatmul.mubr.f32.gmra.mrb[0].mxu0 %v91
    %v674 = vpop.f32.mrb[0].mxu0
    %v675 = vadd.f32 %v301, %v674
    %v676 = vpop.f32.mrb[0].mxu0
    %677 = vmatprep.mubr.f32.mxu0 %v94
    %678 = vmatmul.mubr.f32.gmra.mrb[0].mxu0 %v93
    %v679 = vpop.f32.mrb[0].mxu0
    %v680 = vadd.f32 %v306, %v679
    %v681 = vpop.f32.mrb[0].mxu0
    %682 = vmatprep.mubr.f32.mxu0 %v96
    %683 = vmatmul.mubr.f32.gmra.mrb[0].mxu0 %v95
    %v684 = vpop.f32.mrb[0].mxu0
    %v685 = vadd.f32 %v311, %v684
    %v686 = vpop.f32.mrb[0].mxu0
    %687 = vmatprep.mubr.f32.mxu0 %v98
    %688 = vmatmul.mubr.f32.gmra.mrb[0].mxu0 %v97
    %v689 = vpop.f32.mrb[0].mxu0
    %v690 = vadd.f32 %v316, %v689
    %v691 = vpop.f32.mrb[0].mxu0
    %692 = vmatprep.mubr.f32.mxu0 %v100
    %693 = vmatmul.mubr.f32.gmra.mrb[0].mxu0 %v99
    %v694 = vpop.f32.mrb[0].mxu0
    %v695 = vadd.f32 %v321, %v694
    %v696 = vpop.f32.mrb[0].mxu0
    %697 = vmatprep.mubr.f32.mxu0 %v102
    %698 = vmatmul.mubr.f32.gmra.mrb[0].mxu0 %v101
    %v699 = vpop.f32.mrb[0].mxu0
    %v700 = vadd.f32 %v326, %v699
    %v701 = vpop.f32.mrb[0].mxu0
    %702 = vmatprep.mubr.f32.mxu0 %v104
    %703 = vmatmul.mubr.f32.gmra.mrb[0].mxu0 %v103
    %v704 = vpop.f32.mrb[0].mxu0
    %v705 = vadd.f32 %v331, %v704
    %v706 = vpop.f32.mrb[0].mxu0
    %707 = vmatprep.mubr.f32.mxu0 %v106
    %708 = vmatmul.mubr.f32.gmra.mrb[0].mxu0 %v105
    %v709 = vpop.f32.mrb[0].mxu0
    %v710 = vadd.f32 %v336, %v709
    %v711 = vpop.f32.mrb[0].mxu0
    %712 = vmatprep.mubr.f32.mxu0 %v108
    %713 = vmatmul.mubr.f32.gmra.mrb[0].mxu0 %v107
    %v714 = vpop.f32.mrb[0].mxu0
    %v715 = vadd.f32 %v341, %v714
    %v716 = vpop.f32.mrb[0].mxu0
    %717 = vmatprep.mubr.f32.mxu0 %v110
    %718 = vmatmul.mubr.f32.gmra.mrb[0].mxu0 %v109
    %v719 = vpop.f32.mrb[0].mxu0
    %v720 = vadd.f32 %v346, %v719
    %v721 = vpop.f32.mrb[0].mxu0
    %722 = vmatprep.mubr.f32.mxu0 %v112
    %723 = vmatmul.mubr.f32.gmra.mrb[0].mxu0 %v111
    %v724 = vpop.f32.mrb[0].mxu0
    %v725 = vadd.f32 %v351, %v724
    %v726 = vpop.f32.mrb[0].mxu0
    %727 = vmatprep.mubr.f32.mxu0 %v114
    %728 = vmatmul.mubr.f32.gmra.mrb[0].mxu0 %v113
    %v729 = vpop.f32.mrb[0].mxu0
    %v730 = vadd.f32 %v356, %v729
    %v731 = vpop.f32.mrb[0].mxu0
    %732 = vmatprep.mubr.f32.mxu0 %v116
    %733 = vmatmul.mubr.f32.gmra.mrb[0].mxu0 %v115
    %v734 = vpop.f32.mrb[0].mxu0
    %v735 = vadd.f32 %v361, %v734
    %v736 = vpop.f32.mrb[0].mxu0
    %737 = vmatprep.mubr.f32.mxu0 %v118
    %738 = vmatmul.mubr.f32.gmra.mrb[0].mxu0 %v117
    %v739 = vpop.f32.mrb[0].mxu0
    %v740 = vadd.f32 %v366, %v739
    %v741 = vpop.f32.mrb[0].mxu0
    %742 = vmatprep.mubr.f32.mxu0 %v120
    %743 = vmatmul.mubr.f32.gmra.mrb[0].mxu0 %v119
    %v744 = vpop.f32.mrb[0].mxu0
    %v745 = vadd.f32 %v371, %v744
    %v746 = vpop.f32.mrb[0].mxu0
    %747 = vmatprep.mubr.f32.mxu0 %v122
    %748 = vmatmul.mubr.f32.gmra.mrb[0].mxu0 %v121
    %v749 = vpop.f32.mrb[0].mxu0
    %v750 = vadd.f32 %v376, %v749
    %v751 = vpop.f32.mrb[0].mxu0
    %752 = vmatprep.mubr.f32.mxu0 %v124
    %753 = vmatmul.mubr.f32.gmra.mrb[0].mxu0 %v123
    %v754 = vpop.f32.mrb[0].mxu0
    %v755 = vadd.f32 %v381, %v754
    %v756 = vpop.f32.mrb[0].mxu0
    %757 = vmatprep.mubr.f32.mxu0 %v126
    %758 = vmatmul.mubr.f32.gmra.mrb[0].mxu0 %v125
    %v759 = vpop.f32.mrb[0].mxu0
    %v760 = vadd.f32 %v386, %v759
    %v761 = vpop.f32.mrb[0].mxu0
    %762 = vmatprep.mubr.f32.mxu0 %v128
    %763 = vmatmul.mubr.f32.gmra.mrb[0].mxu0 %v127
    %v764 = vpop.f32.mrb[0].mxu0
    %v765 = vadd.f32 %v391, %v764
    %v766 = vpop.f32.mrb[0].mxu0
    %767 = vmatprep.mubr.f32.mxu0 %v130
    %768 = vmatmul.mubr.f32.gmra.mrb[0].mxu0 %v129
    %v769 = vpop.f32.mrb[0].mxu0
    %v770 = vadd.f32 %v396, %v769
    %v771 = vpop.f32.mrb[0].mxu0
    %772 = vmatprep.mubr.f32.mxu0 %v132
    %773 = vmatmul.mubr.f32.gmra.mrb[0].mxu0 %v131
    %v774 = vpop.f32.mrb[0].mxu0
    %v775 = vadd.f32 %v401, %v774
    %v776 = vpop.f32.mrb[0].mxu0
    %777 = vmatprep.mubr.f32.mxu0 %v134
    %778 = vmatmul.mubr.f32.gmra.mrb[0].mxu0 %v133
    %v779 = vpop.f32.mrb[0].mxu0
    %v780 = vadd.f32 %v406, %v779
    %v781 = vpop.f32.mrb[0].mxu0
    %782 = vmatprep.mubr.f32.mxu0 %v136
    %783 = vmatmul.mubr.f32.gmra.mrb[0].mxu0 %v135
    %v784 = vpop.f32.mrb[0].mxu0
    %v785 = vadd.f32 %v411, %v784
    %v786 = vpop.f32.mrb[0].mxu0
    %787 = vmatprep.mubr.f32.mxu0 %v138
    %788 = vmatmul.mubr.f32.gmra.mrb[0].mxu0 %v137
    %v789 = vpop.f32.mrb[0].mxu0
    %v790 = vadd.f32 %v416, %v789
    %v791 = vpop.f32.mrb[0].mxu0
    %792 = vmatprep.mubr.f32.mxu0 %v140
    %793 = vmatmul.mubr.f32.gmra.mrb[0].mxu0 %v139
    %v794 = vpop.f32.mrb[0].mxu0
    %v795 = vadd.f32 %v421, %v794
    %v796 = vpop.f32.mrb[0].mxu0
    %797 = vmatprep.mubr.f32.mxu0 %v142
    %798 = vmatmul.mubr.f32.gmra.mrb[0].mxu0 %v141
    %v799 = vpop.f32.mrb[0].mxu0
    %v800 = vadd.f32 %v426, %v799
    %v801 = vpop.f32.mrb[0].mxu0
    %802 = vmatprep.mubr.f32.mxu0 %v144
    %803 = vmatmul.mubr.f32.gmra.mrb[0].mxu0 %v143
    %v804 = vpop.f32.mrb[0].mxu0
    %v805 = vadd.f32 %v431, %v804
    %v806 = vpop.f32.mrb[0].mxu0
    %807 = vmatprep.mubr.f32.mxu0 %v146
    %808 = vmatmul.mubr.f32.gmra.mrb[0].mxu0 %v145
    %v809 = vpop.f32.mrb[0].mxu0
    %v810 = vadd.f32 %v436, %v809
    %v811 = vpop.f32.mrb[0].mxu0
    %812 = vmatprep.mubr.f32.mxu0 %v148
    %813 = vmatmul.mubr.f32.gmra.mrb[0].mxu0 %v147
    %v814 = vpop.f32.mrb[0].mxu0
    %v815 = vadd.f32 %v441, %v814
    %v816 = vpop.f32.mrb[0].mxu0
    %817 = vmatprep.mubr.f32.mxu0 %v150
    %818 = vmatmul.mubr.f32.gmra.mrb[0].mxu0 %v149
    %v819 = vpop.f32.mrb[0].mxu0
    %v820 = vadd.f32 %v446, %v819
    %v821 = vpop.f32.mrb[0].mxu0
    %822 = vmatprep.mubr.f32.mxu0 %v152
    %823 = vmatmul.mubr.f32.gmra.mrb[0].mxu0 %v151
    %v824 = vpop.f32.mrb[0].mxu0
    %v825 = vadd.f32 %v451, %v824
    %v826 = vpop.f32.mrb[0].mxu0
    %827 = vmatprep.mubr.f32.mxu0 %v154
    %828 = vmatmul.mubr.f32.gmra.mrb[0].mxu0 %v153
    %v829 = vpop.f32.mrb[0].mxu0
    %v830 = vadd.f32 %v456, %v829
    %v831 = vpop.f32.mrb[0].mxu0
    %832 = vmatprep.mubr.f32.mxu0 %v156
    %833 = vmatmul.mubr.f32.gmra.mrb[0].mxu0 %v155
    %v834 = vpop.f32.mrb[0].mxu0
    %v835 = vadd.f32 %v461, %v834
    %v836 = vpop.f32.mrb[0].mxu0
    %837 = vmatprep.mubr.f32.mxu0 %v158
    %838 = vmatmul.mubr.f32.gmra.mrb[0].mxu0 %v157
    %v839 = vpop.f32.mrb[0].mxu0
    %v840 = vadd.f32 %v466, %v839
    %v841 = vpop.f32.mrb[0].mxu0
    %842 = vmatprep.mubr.f32.mxu0 %v160
    %843 = vmatmul.mubr.f32.gmra.mrb[0].mxu0 %v159
    %v844 = vpop.f32.mrb[0].mxu0
    %v845 = vadd.f32 %v471, %v844
    %v846 = vpop.f32.mrb[0].mxu0
    %847 = vmatprep.mubr.f32.mxu0 %v162
    %848 = vmatmul.mubr.f32.gmra.mrb[0].mxu0 %v161
    %v849 = vpop.f32.mrb[0].mxu0
    %v850 = vadd.f32 %v476, %v849
    %v851 = vpop.f32.mrb[0].mxu0
    %852 = vmatprep.mubr.f32.mxu0 %v164
    %853 = vmatmul.mubr.f32.gmra.mrb[0].mxu0 %v163
    %v854 = vpop.f32.mrb[0].mxu0
    %v855 = vadd.f32 %v481, %v854
    %v856 = vpop.f32.mrb[0].mxu0
    %857 = vmatprep.mubr.f32.mxu0 %v166
    %858 = vmatmul.mubr.f32.gmra.mrb[0].mxu0 %v165
    %v859 = vpop.f32.mrb[0].mxu0
    %v860 = vadd.f32 %v486, %v859
    %v861 = vpop.f32.mrb[0].mxu0
    %862 = vmatprep.mubr.f32.mxu0 %v168
    %863 = vmatmul.mubr.f32.gmra.mrb[0].mxu0 %v167
    %v864 = vpop.f32.mrb[0].mxu0
    %v865 = vadd.f32 %v491, %v864
    %v866 = vpop.f32.mrb[0].mxu0
    %867 = vmatprep.mubr.f32.mxu0 %v170
    %868 = vmatmul.mubr.f32.gmra.mrb[0].mxu0 %v169
    %v869 = vpop.f32.mrb[0].mxu0
    %v870 = vadd.f32 %v496, %v869
    %v871 = vpop.f32.mrb[0].mxu0
    %872 = vmatprep.mubr.f32.mxu0 %v172
    %873 = vmatmul.mubr.f32.gmra.mrb[0].mxu0 %v171
    %v874 = vpop.f32.mrb[0].mxu0
    %v875 = vadd.f32 %v501, %v874
    %v876 = vpop.f32.mrb[0].mxu0
    %877 = vmatprep.mubr.f32.mxu0 %v174
    %878 = vmatmul.mubr.f32.gmra.mrb[0].mxu0 %v173
    %v879 = vpop.f32.mrb[0].mxu0
    %v880 = vadd.f32 %v506, %v879
    %v881 = vpop.f32.mrb[0].mxu0
    %882 = vmatprep.mubr.f32.mxu0 %v176
    %883 = vmatmul.mubr.f32.gmra.mrb[0].mxu0 %v175
    %v884 = vpop.f32.mrb[0].mxu0
    %v885 = vadd.f32 %v511, %v884
    %v886 = vpop.f32.mrb[0].mxu0
    %887 = vmatprep.mubr.f32.mxu0 %v178
    %888 = vmatmul.mubr.f32.gmra.mrb[0].mxu0 %v177
    %v889 = vpop.f32.mrb[0].mxu0
    %v890 = vadd.f32 %v516, %v889
    %v891 = vpop.f32.mrb[0].mxu0
    %892 = vmatprep.mubr.f32.mxu0 %v180
    %893 = vmatmul.mubr.f32.gmra.mrb[0].mxu0 %v179
    %v894 = vpop.f32.mrb[0].mxu0
    %v895 = vadd.f32 %v521, %v894
    %v896 = vpop.f32.mrb[0].mxu0
    %897 = vmatprep.mubr.f32.mxu0 %v182
    %898 = vmatmul.mubr.f32.gmra.mrb[0].mxu0 %v181
    %v899 = vpop.f32.mrb[0].mxu0
    %v900 = vadd.f32 %v526, %v899
    %v901 = vpop.f32.mrb[0].mxu0
    %902 = vmatprep.mubr.f32.mxu0 %v184
    %903 = vmatmul.mubr.f32.gmra.mrb[0].mxu0 %v183
    %v904 = vpop.f32.mrb[0].mxu0
    %v905 = vadd.f32 %v531, %v904
    %v906 = vpop.f32.mrb[0].mxu0
    %907 = vmatprep.mubr.f32.mxu0 %v186
    %908 = vmatmul.mubr.f32.gmra.mrb[0].mxu0 %v185
    %v909 = vpop.f32.mrb[0].mxu0
    %v910 = vadd.f32 %v536, %v909
    %v911 = vpop.f32.mrb[0].mxu0
    %912 = vmatprep.mubr.f32.mxu0 %v188
    %913 = vmatmul.mubr.f32.gmra.mrb[0].mxu0 %v187
    %v914 = vpop.f32.mrb[0].mxu0
    %v915 = vadd.f32 %v541, %v914
    %v916 = vpop.f32.mrb[0].mxu0
    %917 = vmatprep.mubr.f32.mxu0 %v190
    %918 = vmatmul.mubr.f32.gmra.mrb[0].mxu0 %v189
    %v919 = vpop.f32.mrb[0].mxu0
    %v920 = vadd.f32 %v546, %v919
    %v921 = vpop.f32.mrb[0].mxu0
    %922 = vmatprep.mubr.f32.mxu0 %v192
    %923 = vmatmul.mubr.f32.gmra.mrb[0].mxu0 %v191
    %v924 = vpop.f32.mrb[0].mxu0
    %v925 = vadd.f32 %v551, %v924
    %v926 = vpop.f32.mrb[0].mxu0
    %927 = vmatprep.mubr.f32.mxu0 %v194
    %928 = vmatmul.mubr.f32.gmra.mrb[0].mxu0 %v193
    %v929 = vpop.f32.mrb[0].mxu0
    %v930 = vadd.f32 %v556, %v929
    %v931 = vpop.f32.mrb[0].mxu0
    %932 = vmatprep.mubr.f32.mxu0 %v196
    %933 = vmatmul.mubr.f32.gmra.mrb[0].mxu0 %v195
    %v934 = vpop.f32.mrb[0].mxu0
    %v935 = vadd.f32 %v561, %v934
    %v936 = vpop.f32.mrb[0].mxu0
    %937 = vmatprep.mubr.f32.mxu0 %v198
    %938 = vmatmul.mubr.f32.gmra.mrb[0].mxu0 %v197
    %v939 = vpop.f32.mrb[0].mxu0
    %v940 = vadd.f32 %v566, %v939
    %v941 = vpop.f32.mrb[0].mxu0
    %942 = vmatprep.mubr.f32.mxu0 %v200
    %943 = vmatmul.mubr.f32.gmra.mrb[0].mxu0 %v199
    %v944 = vpop.f32.mrb[0].mxu0
    %v945 = vadd.f32 %v571, %v944
    %v946 = vpop.f32.mrb[0].mxu0
    %947 = vdwg.mxu0
    %v948 = vmax.f32 %v640, 0.0
    %v949 = vmax.f32 %v645, 0.0
    %v950 = vmax.f32 %v650, 0.0
    %v951 = vmax.f32 %v655, 0.0
    %v952 = vmax.f32 %v660, 0.0
    %v953 = vmax.f32 %v665, 0.0
    %v954 = vmax.f32 %v670, 0.0
    %v955 = vmax.f32 %v675, 0.0
    %v956 = vmax.f32 %v680, 0.0
    %v957 = vmax.f32 %v685, 0.0
    %v958 = vmax.f32 %v690, 0.0
    %v959 = vmax.f32 %v695, 0.0
    %v960 = vmax.f32 %v700, 0.0
    %v961 = vmax.f32 %v705, 0.0
    %v962 = vmax.f32 %v710, 0.0
    %v963 = vmax.f32 %v715, 0.0
    %v964 = vmax.f32 %v720, 0.0
    %v965 = vmax.f32 %v725, 0.0
    %v966 = vmax.f32 %v730, 0.0
    %v967 = vmax.f32 %v735, 0.0
    %v968 = vmax.f32 %v740, 0.0
    %v969 = vmax.f32 %v745, 0.0
    %v970 = vmax.f32 %v750, 0.0
    %v971 = vmax.f32 %v755, 0.0
    %v972 = vmax.f32 %v760, 0.0
    %v973 = vmax.f32 %v765, 0.0
    %v974 = vmax.f32 %v770, 0.0
    %v975 = vmax.f32 %v775, 0.0
    %v976 = vmax.f32 %v780, 0.0
    %v977 = vmax.f32 %v785, 0.0
    %v978 = vmax.f32 %v790, 0.0
    %v979 = vmax.f32 %v795, 0.0
    %v980 = vmax.f32 %v800, 0.0
    %v981 = vmax.f32 %v805, 0.0
    %v982 = vmax.f32 %v810, 0.0
    %v983 = vmax.f32 %v815, 0.0
    %v984 = vmax.f32 %v820, 0.0
    %v985 = vmax.f32 %v825, 0.0
    %v986 = vmax.f32 %v830, 0.0
    %v987 = vmax.f32 %v835, 0.0
    %v988 = vmax.f32 %v840, 0.0
    %v989 = vmax.f32 %v845, 0.0
    %v990 = vmax.f32 %v850, 0.0
    %v991 = vmax.f32 %v855, 0.0
    %v992 = vmax.f32 %v860, 0.0
    %v993 = vmax.f32 %v865, 0.0
    %v994 = vmax.f32 %v870, 0.0
    %v995 = vmax.f32 %v875, 0.0
    %v996 = vmax.f32 %v880, 0.0
    %v997 = vmax.f32 %v885, 0.0
    %v998 = vmax.f32 %v890, 0.0
    %v999 = vmax.f32 %v895, 0.0
    %v1000 = vmax.f32 %v900, 0.0
    %v1001 = vmax.f32 %v905, 0.0
    %v1002 = vmax.f32 %v910, 0.0
    %v1003 = vmax.f32 %v915, 0.0
    %v1004 = vmax.f32 %v920, 0.0
    %v1005 = vmax.f32 %v925, 0.0
    %v1006 = vmax.f32 %v930, 0.0
    %v1007 = vmax.f32 %v935, 0.0
    %v1008 = vmax.f32 %v940, 0.0
    %v1009 = vmax.f32 %v945, 0.0
    %v1010 = vld [vmem:[#allocation4] sm:$0xff]
    %v1011 = vld [vmem:[#allocation4 + $0x8] sm:$0xff]
    %v1012 = vld [vmem:[#allocation4 + $0x10] sm:$0xff]
    %v1013 = vld [vmem:[#allocation4 + $0x18] sm:$0xff]
    %v1014 = vld [vmem:[#allocation4 + $0x20] sm:$0xff]
    %v1015 = vld [vmem:[#allocation4 + $0x28] sm:$0xff]
    %v1016 = vld [vmem:[#allocation4 + $0x30] sm:$0xff]
    %v1017 = vld [vmem:[#allocation4 + $0x38] sm:$0xff]
    %v1018 = vld [vmem:[#allocation4 + $0x40] sm:$0xff]
    %v1019 = vld [vmem:[#allocation4 + $0x48] sm:$0xff]
    %v1020 = vld [vmem:[#allocation4 + $0x50] sm:$0xff]
    %v1021 = vld [vmem:[#allocation4 + $0x58] sm:$0xff]
    %v1022 = vld [vmem:[#allocation4 + $0x60] sm:$0xff]
    %v1023 = vld [vmem:[#allocation4 + $0x68] sm:$0xff]
    %v1024 = vld [vmem:[#allocation4 + $0x70] sm:$0xff]
    %v1025 = vld [vmem:[#allocation4 + $0x78] sm:$0xff]
    %v1026 = vld [vmem:[#allocation4 + $0x80] sm:$0xff]
    %v1027 = vld [vmem:[#allocation4 + $0x88] sm:$0xff]
    %v1028 = vld [vmem:[#allocation4 + $0x90] sm:$0xff]
    %v1029 = vld [vmem:[#allocation4 + $0x98] sm:$0xff]
    %v1030 = vld [vmem:[#allocation4 + $0xa0] sm:$0xff]
    %v1031 = vld [vmem:[#allocation4 + $0xa8] sm:$0xff]
    %v1032 = vld [vmem:[#allocation4 + $0xb0] sm:$0xff]
    %v1033 = vld [vmem:[#allocation4 + $0xb8] sm:$0xff]
    %v1034 = vld [vmem:[#allocation4 + $0xc0] sm:$0xff]
    %v1035 = vld [vmem:[#allocation4 + $0xc8] sm:$0xff]
    %v1036 = vld [vmem:[#allocation4 + $0xd0] sm:$0xff]
    %v1037 = vld [vmem:[#allocation4 + $0xd8] sm:$0xff]
    %v1038 = vld [vmem:[#allocation4 + $0xe0] sm:$0xff]
    %v1039 = vld [vmem:[#allocation4 + $0xe8] sm:$0xff]
    %v1040 = vld [vmem:[#allocation4 + $0xf0] sm:$0xff]
    %v1041 = vld [vmem:[#allocation4 + $0xf8] sm:$0xff]
    %v1042 = vld [vmem:[#allocation4 + $0x100] sm:$0xff]
    %v1043 = vld [vmem:[#allocation4 + $0x108] sm:$0xff]
    %v1044 = vld [vmem:[#allocation4 + $0x110] sm:$0xff]
    %v1045 = vld [vmem:[#allocation4 + $0x118] sm:$0xff]
    %v1046 = vld [vmem:[#allocation4 + $0x120] sm:$0xff]
    %v1047 = vld [vmem:[#allocation4 + $0x128] sm:$0xff]
    %v1048 = vld [vmem:[#allocation4 + $0x130] sm:$0xff]
    %v1049 = vld [vmem:[#allocation4 + $0x138] sm:$0xff]
    %v1050 = vld [vmem:[#allocation4 + $0x140] sm:$0xff]
    %v1051 = vld [vmem:[#allocation4 + $0x148] sm:$0xff]
    %v1052 = vld [vmem:[#allocation4 + $0x150] sm:$0xff]
    %v1053 = vld [vmem:[#allocation4 + $0x158] sm:$0xff]
    %v1054 = vld [vmem:[#allocation4 + $0x160] sm:$0xff]
    %v1055 = vld [vmem:[#allocation4 + $0x168] sm:$0xff]
    %v1056 = vld [vmem:[#allocation4 + $0x170] sm:$0xff]
    %v1057 = vld [vmem:[#allocation4 + $0x178] sm:$0xff]
    %v1058 = vld [vmem:[#allocation4 + $0x180] sm:$0xff]
    %v1059 = vld [vmem:[#allocation4 + $0x188] sm:$0xff]
    %v1060 = vld [vmem:[#allocation4 + $0x190] sm:$0xff]
    %v1061 = vld [vmem:[#allocation4 + $0x198] sm:$0xff]
    %v1062 = vld [vmem:[#allocation4 + $0x1a0] sm:$0xff]
    %v1063 = vld [vmem:[#allocation4 + $0x1a8] sm:$0xff]
    %v1064 = vld [vmem:[#allocation4 + $0x1b0] sm:$0xff]
    %v1065 = vld [vmem:[#allocation4 + $0x1b8] sm:$0xff]
    %v1066 = vld [vmem:[#allocation4 + $0x1c0] sm:$0xff]
    %v1067 = vld [vmem:[#allocation4 + $0x1c8] sm:$0xff]
    %v1068 = vld [vmem:[#allocation4 + $0x1d0] sm:$0xff]
    %v1069 = vld [vmem:[#allocation4 + $0x1d8] sm:$0xff]
    %v1070 = vld [vmem:[#allocation4 + $0x1e0] sm:$0xff]
    %v1071 = vld [vmem:[#allocation4 + $0x1e8] sm:$0xff]
    %v1072 = vld [vmem:[#allocation4 + $0x1f0] sm:$0xff]
    %v1073 = vld [vmem:[#allocation4 + $0x1f8] sm:$0xff]
    %v1074 = vld [vmem:[#allocation4 + $0x200] sm:$0xff]
    %v1075 = vld [vmem:[#allocation4 + $0x208] sm:$0xff]
    %v1076 = vld [vmem:[#allocation4 + $0x210] sm:$0xff]
    %v1077 = vld [vmem:[#allocation4 + $0x218] sm:$0xff]
    %v1078 = vld [vmem:[#allocation4 + $0x220] sm:$0xff]
    %v1079 = vld [vmem:[#allocation4 + $0x228] sm:$0xff]
    %v1080 = vld [vmem:[#allocation4 + $0x230] sm:$0xff]
    %v1081 = vld [vmem:[#allocation4 + $0x238] sm:$0xff]
    %v1082 = vld [vmem:[#allocation4 + $0x240] sm:$0xff]
    %v1083 = vld [vmem:[#allocation4 + $0x248] sm:$0xff]
    %v1084 = vld [vmem:[#allocation4 + $0x250] sm:$0xff]
    %v1085 = vld [vmem:[#allocation4 + $0x258] sm:$0xff]
    %v1086 = vld [vmem:[#allocation4 + $0x260] sm:$0xff]
    %v1087 = vld [vmem:[#allocation4 + $0x268] sm:$0xff]
    %v1088 = vld [vmem:[#allocation4 + $0x270] sm:$0xff]
    %v1089 = vld [vmem:[#allocation4 + $0x278] sm:$0xff]
    %v1090 = vld [vmem:[#allocation4 + $0x280] sm:$0xff]
    %v1091 = vld [vmem:[#allocation4 + $0x288] sm:$0xff]
    %v1092 = vld [vmem:[#allocation4 + $0x290] sm:$0xff]
    %v1093 = vld [vmem:[#allocation4 + $0x298] sm:$0xff]
    %v1094 = vld [vmem:[#allocation4 + $0x2a0] sm:$0xff]
    %v1095 = vld [vmem:[#allocation4 + $0x2a8] sm:$0xff]
    %v1096 = vld [vmem:[#allocation4 + $0x2b0] sm:$0xff]
    %v1097 = vld [vmem:[#allocation4 + $0x2b8] sm:$0xff]
    %v1098 = vld [vmem:[#allocation4 + $0x2c0] sm:$0xff]
    %v1099 = vld [vmem:[#allocation4 + $0x2c8] sm:$0xff]
    %v1100 = vld [vmem:[#allocation4 + $0x2d0] sm:$0xff]
    %v1101 = vld [vmem:[#allocation4 + $0x2d8] sm:$0xff]
    %v1102 = vld [vmem:[#allocation4 + $0x2e0] sm:$0xff]
    %v1103 = vld [vmem:[#allocation4 + $0x2e8] sm:$0xff]
    %v1104 = vld [vmem:[#allocation4 + $0x2f0] sm:$0xff]
    %v1105 = vld [vmem:[#allocation4 + $0x2f8] sm:$0xff]
    %v1106 = vld [vmem:[#allocation4 + $0x300] sm:$0xff]
    %v1107 = vld [vmem:[#allocation4 + $0x308] sm:$0xff]
    %v1108 = vld [vmem:[#allocation4 + $0x310] sm:$0xff]
    %v1109 = vld [vmem:[#allocation4 + $0x318] sm:$0xff]
    %v1110 = vld [vmem:[#allocation4 + $0x320] sm:$0xff]
    %v1111 = vld [vmem:[#allocation4 + $0x328] sm:$0xff]
    %v1112 = vld [vmem:[#allocation4 + $0x330] sm:$0xff]
    %v1113 = vld [vmem:[#allocation4 + $0x338] sm:$0xff]
    %v1114 = vld [vmem:[#allocation4 + $0x340] sm:$0xff]
    %v1115 = vld [vmem:[#allocation4 + $0x348] sm:$0xff]
    %v1116 = vld [vmem:[#allocation4 + $0x350] sm:$0xff]
    %v1117 = vld [vmem:[#allocation4 + $0x358] sm:$0xff]
    %v1118 = vld [vmem:[#allocation4 + $0x360] sm:$0xff]
    %v1119 = vld [vmem:[#allocation4 + $0x368] sm:$0xff]
    %v1120 = vld [vmem:[#allocation4 + $0x370] sm:$0xff]
    %v1121 = vld [vmem:[#allocation4 + $0x378] sm:$0xff]
    %v1122 = vld [vmem:[#allocation4 + $0x380] sm:$0xff]
    %v1123 = vld [vmem:[#allocation4 + $0x388] sm:$0xff]
    %v1124 = vld [vmem:[#allocation4 + $0x390] sm:$0xff]
    %v1125 = vld [vmem:[#allocation4 + $0x398] sm:$0xff]
    %v1126 = vld [vmem:[#allocation4 + $0x3a0] sm:$0xf]
    %v1127 = vld [vmem:[#allocation4 + $0x3a8] sm:$0xf]
    %v1128 = vld [vmem:[#allocation4 + $0x3b0] sm:$0xf]
    %v1129 = vld [vmem:[#allocation4 + $0x3b8] sm:$0xf]
    %v1130 = vld [vmem:[%s5] sm:$0xff]
    %v1131 = vld [vmem:[%s5 + $0x8] sm:$0xff]
    %v1132 = vld [vmem:[%s5 + $0x10] sm:$0xff]
    %v1133 = vld [vmem:[%s5 + $0x18] sm:$0xff]
    %v1134 = vld [vmem:[%s5 + $0x20] sm:$0xff]
    %v1135 = vld [vmem:[%s5 + $0x28] sm:$0xff]
    %v1136 = vld [vmem:[%s5 + $0x30] sm:$0xff]
    %v1137 = vld [vmem:[%s5 + $0x38] sm:$0xff]
    %v1138 = vld [vmem:[%s5 + $0x40] sm:$0xff]
    %v1139 = vld [vmem:[%s5 + $0x48] sm:$0xff]
    %v1140 = vld [vmem:[%s5 + $0x50] sm:$0xff]
    %v1141 = vld [vmem:[%s5 + $0x58] sm:$0xff]
    %v1142 = vld [vmem:[%s5 + $0x60] sm:$0xff]
    %v1143 = vld [vmem:[%s5 + $0x68] sm:$0xff]
    %v1144 = vld [vmem:[%s5 + $0x70] sm:$0xff]
    %v1145 = vld [vmem:[%s5 + $0x78] sm:$0xff]
    %v1146 = vld [vmem:[%s5 + $0x80] sm:$0xff]
    %v1147 = vld [vmem:[%s5 + $0x88] sm:$0xff]
    %v1148 = vld [vmem:[%s5 + $0x90] sm:$0xff]
    %v1149 = vld [vmem:[%s5 + $0x98] sm:$0xff]
    %v1150 = vld [vmem:[%s5 + $0xa0] sm:$0xff]
    %v1151 = vld [vmem:[%s5 + $0xa8] sm:$0xff]
    %v1152 = vld [vmem:[%s5 + $0xb0] sm:$0xff]
    %v1153 = vld [vmem:[%s5 + $0xb8] sm:$0xff]
    %v1154 = vld [vmem:[%s5 + $0xc0] sm:$0xff]
    %v1155 = vld [vmem:[%s5 + $0xc8] sm:$0xff]
    %v1156 = vld [vmem:[%s5 + $0xd0] sm:$0xff]
    %v1157 = vld [vmem:[%s5 + $0xd8] sm:$0xff]
    %v1158 = vld [vmem:[%s5 + $0xe0] sm:$0xff]
    %v1159 = vld [vmem:[%s5 + $0xe8] sm:$0xf]
    %1161 = vset.pattern.permute.xlu0 0
    %1162 = vperm.xlu0 %1161, %v1130
    %v1163 = vpop.permute.xlu0 %1162
    %1166 = vset.pattern.permute.xlu0 0
    %1167 = vperm.xlu0 %1166, %v1131
    %v1168 = vpop.permute.xlu0 %1167
    %1171 = vset.pattern.permute.xlu0 0
    %1172 = vperm.xlu0 %1171, %v1132
    %v1173 = vpop.permute.xlu0 %1172
    %1176 = vset.pattern.permute.xlu0 0
    %1177 = vperm.xlu0 %1176, %v1133
    %v1178 = vpop.permute.xlu0 %1177
    %1181 = vset.pattern.permute.xlu0 0
    %1182 = vperm.xlu0 %1181, %v1134
    %v1183 = vpop.permute.xlu0 %1182
    %1186 = vset.pattern.permute.xlu0 0
    %1187 = vperm.xlu0 %1186, %v1135
    %v1188 = vpop.permute.xlu0 %1187
    %1191 = vset.pattern.permute.xlu0 0
    %1192 = vperm.xlu0 %1191, %v1136
    %v1193 = vpop.permute.xlu0 %1192
    %1196 = vset.pattern.permute.xlu0 0
    %1197 = vperm.xlu0 %1196, %v1137
    %v1198 = vpop.permute.xlu0 %1197
    %1201 = vset.pattern.permute.xlu0 0
    %1202 = vperm.xlu0 %1201, %v1138
    %v1203 = vpop.permute.xlu0 %1202
    %1206 = vset.pattern.permute.xlu0 0
    %1207 = vperm.xlu0 %1206, %v1139
    %v1208 = vpop.permute.xlu0 %1207
    %1211 = vset.pattern.permute.xlu0 0
    %1212 = vperm.xlu0 %1211, %v1140
    %v1213 = vpop.permute.xlu0 %1212
    %1216 = vset.pattern.permute.xlu0 0
    %1217 = vperm.xlu0 %1216, %v1141
    %v1218 = vpop.permute.xlu0 %1217
    %1221 = vset.pattern.permute.xlu0 0
    %1222 = vperm.xlu0 %1221, %v1142
    %v1223 = vpop.permute.xlu0 %1222
    %1226 = vset.pattern.permute.xlu0 0
    %1227 = vperm.xlu0 %1226, %v1143
    %v1228 = vpop.permute.xlu0 %1227
    %1231 = vset.pattern.permute.xlu0 0
    %1232 = vperm.xlu0 %1231, %v1144
    %v1233 = vpop.permute.xlu0 %1232
    %1236 = vset.pattern.permute.xlu0 0
    %1237 = vperm.xlu0 %1236, %v1145
    %v1238 = vpop.permute.xlu0 %1237
    %1241 = vset.pattern.permute.xlu0 0
    %1242 = vperm.xlu0 %1241, %v1146
    %v1243 = vpop.permute.xlu0 %1242
    %1246 = vset.pattern.permute.xlu0 0
    %1247 = vperm.xlu0 %1246, %v1147
    %v1248 = vpop.permute.xlu0 %1247
    %1251 = vset.pattern.permute.xlu0 0
    %1252 = vperm.xlu0 %1251, %v1148
    %v1253 = vpop.permute.xlu0 %1252
    %1256 = vset.pattern.permute.xlu0 0
    %1257 = vperm.xlu0 %1256, %v1149
    %v1258 = vpop.permute.xlu0 %1257
    %1261 = vset.pattern.permute.xlu0 0
    %1262 = vperm.xlu0 %1261, %v1150
    %v1263 = vpop.permute.xlu0 %1262
    %1266 = vset.pattern.permute.xlu0 0
    %1267 = vperm.xlu0 %1266, %v1151
    %v1268 = vpop.permute.xlu0 %1267
    %1271 = vset.pattern.permute.xlu0 0
    %1272 = vperm.xlu0 %1271, %v1152
    %v1273 = vpop.permute.xlu0 %1272
    %1276 = vset.pattern.permute.xlu0 0
    %1277 = vperm.xlu0 %1276, %v1153
    %v1278 = vpop.permute.xlu0 %1277
    %1281 = vset.pattern.permute.xlu0 0
    %1282 = vperm.xlu0 %1281, %v1154
    %v1283 = vpop.permute.xlu0 %1282
    %1286 = vset.pattern.permute.xlu0 0
    %1287 = vperm.xlu0 %1286, %v1155
    %v1288 = vpop.permute.xlu0 %1287
    %1291 = vset.pattern.permute.xlu0 0
    %1292 = vperm.xlu0 %1291, %v1156
    %v1293 = vpop.permute.xlu0 %1292
    %1296 = vset.pattern.permute.xlu0 0
    %1297 = vperm.xlu0 %1296, %v1157
    %v1298 = vpop.permute.xlu0 %1297
    %1301 = vset.pattern.permute.xlu0 0
    %1302 = vperm.xlu0 %1301, %v1158
    %v1303 = vpop.permute.xlu0 %1302
    %1306 = vset.pattern.permute.xlu0 0
    %1307 = vperm.xlu0 %1306, %v1159
    %v1308 = vpop.permute.xlu0 %1307
    %vm1310 = vcmask 916480
    %v1312 = vsel %vm1310, %v1013, 0
    %v1315 = vsel %vm1310, %v1017, 0
    %v1318 = vsel %vm1310, %v1021, 0
    %v1321 = vsel %vm1310, %v1025, 0
    %v1324 = vsel %vm1310, %v1029, 0
    %v1327 = vsel %vm1310, %v1033, 0
    %v1330 = vsel %vm1310, %v1037, 0
    %v1333 = vsel %vm1310, %v1041, 0
    %v1336 = vsel %vm1310, %v1045, 0
    %v1339 = vsel %vm1310, %v1049, 0
    %v1342 = vsel %vm1310, %v1053, 0
    %v1345 = vsel %vm1310, %v1057, 0
    %v1348 = vsel %vm1310, %v1061, 0
    %v1351 = vsel %vm1310, %v1065, 0
    %v1354 = vsel %vm1310, %v1069, 0
    %v1357 = vsel %vm1310, %v1073, 0
    %v1360 = vsel %vm1310, %v1077, 0
    %v1363 = vsel %vm1310, %v1081, 0
    %v1366 = vsel %vm1310, %v1085, 0
    %v1369 = vsel %vm1310, %v1089, 0
    %v1372 = vsel %vm1310, %v1093, 0
    %v1375 = vsel %vm1310, %v1097, 0
    %v1378 = vsel %vm1310, %v1101, 0
    %v1381 = vsel %vm1310, %v1105, 0
    %v1384 = vsel %vm1310, %v1109, 0
    %v1387 = vsel %vm1310, %v1113, 0
    %v1390 = vsel %vm1310, %v1117, 0
    %v1393 = vsel %vm1310, %v1121, 0
    %v1396 = vsel %vm1310, %v1125, 0
    %v1399 = vsel %vm1310, %v1129, 0
    %1401 = vmatprep.subr.mxu0 0.0
    %1402 = vmatpush1.msra.mxu0 %v948
    %1403 = vmatprep.subr.mxu0 0.0
    %1404 = vmatpush1.msra.mxu0 %v949
    %1405 = vmatprep.subr.mxu0 0.0
    %1406 = vmatpush1.msra.mxu0 %v950
    %1407 = vmatprep.subr.mxu0 0.0
    %1408 = vmatpush1.msra.mxu0 %v951
    %1409 = vmatprep.subr.mxu0 0.0
    %1410 = vmatpush1.msra.mxu0 %v952
    %1411 = vmatprep.subr.mxu0 0.0
    %1412 = vmatpush1.msra.mxu0 %v953
    %1413 = vmatprep.subr.mxu0 0.0
    %1414 = vmatpush1.msra.mxu0 %v954
    %1415 = vmatprep.subr.mxu0 0.0
    %1416 = vmatpush1.msra.mxu0 %v955
    %1417 = vmatprep.subr.mxu0 0.0
    %1418 = vmatpush1.msra.mxu0 %v956
    %1419 = vmatprep.subr.mxu0 0.0
    %1420 = vmatpush1.msra.mxu0 %v957
    %1421 = vmatprep.subr.mxu0 0.0
    %1422 = vmatpush1.msra.mxu0 %v958
    %1423 = vmatprep.subr.mxu0 0.0
    %1424 = vmatpush1.msra.mxu0 %v959
    %1425 = vmatprep.subr.mxu0 0.0
    %1426 = vmatpush1.msra.mxu0 %v960
    %1427 = vmatprep.subr.mxu0 0.0
    %1428 = vmatpush1.msra.mxu0 %v961
    %1429 = vmatprep.subr.mxu0 0.0
    %1430 = vmatpush1.msra.mxu0 %v962
    %1431 = vmatprep.subr.mxu0 0.0
    %1432 = vmatpush1.msra.mxu0 %v963
    %1433 = vmatprep.subr.mxu0 0.0
    %1434 = vmatpush1.msra.mxu0 %v964
    %1435 = vmatprep.subr.mxu0 0.0
    %1436 = vmatpush1.msra.mxu0 %v965
    %1437 = vmatprep.subr.mxu0 0.0
    %1438 = vmatpush1.msra.mxu0 %v966
    %1439 = vmatprep.subr.mxu0 0.0
    %1440 = vmatpush1.msra.mxu0 %v967
    %1441 = vmatprep.subr.mxu0 0.0
    %1442 = vmatpush1.msra.mxu0 %v968
    %1443 = vmatprep.subr.mxu0 0.0
    %1444 = vmatpush1.msra.mxu0 %v969
    %1445 = vmatprep.subr.mxu0 0.0
    %1446 = vmatpush1.msra.mxu0 %v970
    %1447 = vmatprep.subr.mxu0 0.0
    %1448 = vmatpush1.msra.mxu0 %v971
    %1449 = vmatprep.subr.mxu0 0.0
    %1450 = vmatpush1.msra.mxu0 %v972
    %1451 = vmatprep.subr.mxu0 0.0
    %1452 = vmatpush1.msra.mxu0 %v973
    %1453 = vmatprep.subr.mxu0 0.0
    %1454 = vmatpush1.msra.mxu0 %v974
    %1455 = vmatprep.subr.mxu0 0.0
    %1456 = vmatpush1.msra.mxu0 %v975
    %1457 = vmatprep.subr.mxu0 0.0
    %1458 = vmatpush1.msra.mxu0 %v976
    %1459 = vmatprep.subr.mxu0 0.0
    %1460 = vmatpush1.msra.mxu0 %v977
    %1461 = vmatprep.subr.mxu0 0.0
    %1462 = vmatpush1.msra.mxu0 %v978
    %1463 = vmatprep.subr.mxu0 0.0
    %1464 = vmatpush1.msra.mxu0 %v979
    %1465 = vmatprep.mubr.f32.mxu0 %v1011
    %1466 = vmatmul.mubr.f32.gmra.mrb[0].mxu0 %v1010
    %v1467 = vpop.f32.mrb[0].mxu0
    %v1468 = vadd.f32 %v1163, %v1467
    %v1469 = vpop.f32.mrb[0].mxu0
    %1470 = vmatprep.mubr.f32.mxu0 %v1015
    %1471 = vmatmul.mubr.f32.gmra.mrb[0].mxu0 %v1014
    %v1472 = vpop.f32.mrb[0].mxu0
    %v1473 = vadd.f32 %v1168, %v1472
    %v1474 = vpop.f32.mrb[0].mxu0
    %1475 = vmatprep.mubr.f32.mxu0 %v1019
    %1476 = vmatmul.mubr.f32.gmra.mrb[0].mxu0 %v1018
    %v1477 = vpop.f32.mrb[0].mxu0
    %v1478 = vadd.f32 %v1173, %v1477
    %v1479 = vpop.f32.mrb[0].mxu0
    %1480 = vmatprep.mubr.f32.mxu0 %v1023
    %1481 = vmatmul.mubr.f32.gmra.mrb[0].mxu0 %v1022
    %v1482 = vpop.f32.mrb[0].mxu0
    %v1483 = vadd.f32 %v1178, %v1482
    %v1484 = vpop.f32.mrb[0].mxu0
    %1485 = vmatprep.mubr.f32.mxu0 %v1027
    %1486 = vmatmul.mubr.f32.gmra.mrb[0].mxu0 %v1026
    %v1487 = vpop.f32.mrb[0].mxu0
    %v1488 = vadd.f32 %v1183, %v1487
    %v1489 = vpop.f32.mrb[0].mxu0
    %1490 = vmatprep.mubr.f32.mxu0 %v1031
    %1491 = vmatmul.mubr.f32.gmra.mrb[0].mxu0 %v1030
    %v1492 = vpop.f32.mrb[0].mxu0
    %v1493 = vadd.f32 %v1188, %v1492
    %v1494 = vpop.f32.mrb[0].mxu0
    %1495 = vmatprep.mubr.f32.mxu0 %v1035
    %1496 = vmatmul.mubr.f32.gmra.mrb[0].mxu0 %v1034
    %v1497 = vpop.f32.mrb[0].mxu0
    %v1498 = vadd.f32 %v1193, %v1497
    %v1499 = vpop.f32.mrb[0].mxu0
    %1500 = vmatprep.mubr.f32.mxu0 %v1039
    %1501 = vmatmul.mubr.f32.gmra.mrb[0].mxu0 %v1038
    %v1502 = vpop.f32.mrb[0].mxu0
    %v1503 = vadd.f32 %v1198, %v1502
    %v1504 = vpop.f32.mrb[0].mxu0
    %1505 = vmatprep.mubr.f32.mxu0 %v1043
    %1506 = vmatmul.mubr.f32.gmra.mrb[0].mxu0 %v1042
    %v1507 = vpop.f32.mrb[0].mxu0
    %v1508 = vadd.f32 %v1203, %v1507
    %v1509 = vpop.f32.mrb[0].mxu0
    %1510 = vmatprep.mubr.f32.mxu0 %v1047
    %1511 = vmatmul.mubr.f32.gmra.mrb[0].mxu0 %v1046
    %v1512 = vpop.f32.mrb[0].mxu0
    %v1513 = vadd.f32 %v1208, %v1512
    %v1514 = vpop.f32.mrb[0].mxu0
    %1515 = vmatprep.mubr.f32.mxu0 %v1051
    %1516 = vmatmul.mubr.f32.gmra.mrb[0].mxu0 %v1050
    %v1517 = vpop.f32.mrb[0].mxu0
    %v1518 = vadd.f32 %v1213, %v1517
    %v1519 = vpop.f32.mrb[0].mxu0
    %1520 = vmatprep.mubr.f32.mxu0 %v1055
    %1521 = vmatmul.mubr.f32.gmra.mrb[0].mxu0 %v1054
    %v1522 = vpop.f32.mrb[0].mxu0
    %v1523 = vadd.f32 %v1218, %v1522
    %v1524 = vpop.f32.mrb[0].mxu0
    %1525 = vmatprep.mubr.f32.mxu0 %v1059
    %1526 = vmatmul.mubr.f32.gmra.mrb[0].mxu0 %v1058
    %v1527 = vpop.f32.mrb[0].mxu0
    %v1528 = vadd.f32 %v1223, %v1527
    %v1529 = vpop.f32.mrb[0].mxu0
    %1530 = vmatprep.mubr.f32.mxu0 %v1063
    %1531 = vmatmul.mubr.f32.gmra.mrb[0].mxu0 %v1062
    %v1532 = vpop.f32.mrb[0].mxu0
    %v1533 = vadd.f32 %v1228, %v1532
    %v1534 = vpop.f32.mrb[0].mxu0
    %1535 = vmatprep.mubr.f32.mxu0 %v1067
    %1536 = vmatmul.mubr.f32.gmra.mrb[0].mxu0 %v1066
    %v1537 = vpop.f32.mrb[0].mxu0
    %v1538 = vadd.f32 %v1233, %v1537
    %v1539 = vpop.f32.mrb[0].mxu0
    %1540 = vmatprep.mubr.f32.mxu0 %v1071
    %1541 = vmatmul.mubr.f32.gmra.mrb[0].mxu0 %v1070
    %v1542 = vpop.f32.mrb[0].mxu0
    %v1543 = vadd.f32 %v1238, %v1542
    %v1544 = vpop.f32.mrb[0].mxu0
    %1545 = vmatprep.mubr.f32.mxu0 %v1075
    %1546 = vmatmul.mubr.f32.gmra.mrb[0].mxu0 %v1074
    %v1547 = vpop.f32.mrb[0].mxu0
    %v1548 = vadd.f32 %v1243, %v1547
    %v1549 = vpop.f32.mrb[0].mxu0
    %1550 = vmatprep.mubr.f32.mxu0 %v1079
    %1551 = vmatmul.mubr.f32.gmra.mrb[0].mxu0 %v1078
    %v1552 = vpop.f32.mrb[0].mxu0
    %v1553 = vadd.f32 %v1248, %v1552
    %v1554 = vpop.f32.mrb[0].mxu0
    %1555 = vmatprep.mubr.f32.mxu0 %v1083
    %1556 = vmatmul.mubr.f32.gmra.mrb[0].mxu0 %v1082
    %v1557 = vpop.f32.mrb[0].mxu0
    %v1558 = vadd.f32 %v1253, %v1557
    %v1559 = vpop.f32.mrb[0].mxu0
    %1560 = vmatprep.mubr.f32.mxu0 %v1087
    %1561 = vmatmul.mubr.f32.gmra.mrb[0].mxu0 %v1086
    %v1562 = vpop.f32.mrb[0].mxu0
    %v1563 = vadd.f32 %v1258, %v1562
    %v1564 = vpop.f32.mrb[0].mxu0
    %1565 = vmatprep.mubr.f32.mxu0 %v1091
    %1566 = vmatmul.mubr.f32.gmra.mrb[0].mxu0 %v1090
    %v1567 = vpop.f32.mrb[0].mxu0
    %v1568 = vadd.f32 %v1263, %v1567
    %v1569 = vpop.f32.mrb[0].mxu0
    %1570 = vmatprep.mubr.f32.mxu0 %v1095
    %1571 = vmatmul.mubr.f32.gmra.mrb[0].mxu0 %v1094
    %v1572 = vpop.f32.mrb[0].mxu0
    %v1573 = vadd.f32 %v1268, %v1572
    %v1574 = vpop.f32.mrb[0].mxu0
    %1575 = vmatprep.mubr.f32.mxu0 %v1099
    %1576 = vmatmul.mubr.f32.gmra.mrb[0].mxu0 %v1098
    %v1577 = vpop.f32.mrb[0].mxu0
    %v1578 = vadd.f32 %v1273, %v1577
    %v1579 = vpop.f32.mrb[0].mxu0
    %1580 = vmatprep.mubr.f32.mxu0 %v1103
    %1581 = vmatmul.mubr.f32.gmra.mrb[0].mxu0 %v1102
    %v1582 = vpop.f32.mrb[0].mxu0
    %v1583 = vadd.f32 %v1278, %v1582
    %v1584 = vpop.f32.mrb[0].mxu0
    %1585 = vmatprep.mubr.f32.mxu0 %v1107
    %1586 = vmatmul.mubr.f32.gmra.mrb[0].mxu0 %v1106
    %v1587 = vpop.f32.mrb[0].mxu0
    %v1588 = vadd.f32 %v1283, %v1587
    %v1589 = vpop.f32.mrb[0].mxu0
    %1590 = vmatprep.mubr.f32.mxu0 %v1111
    %1591 = vmatmul.mubr.f32.gmra.mrb[0].mxu0 %v1110
    %v1592 = vpop.f32.mrb[0].mxu0
    %v1593 = vadd.f32 %v1288, %v1592
    %v1594 = vpop.f32.mrb[0].mxu0
    %1595 = vmatprep.mubr.f32.mxu0 %v1115
    %1596 = vmatmul.mubr.f32.gmra.mrb[0].mxu0 %v1114
    %v1597 = vpop.f32.mrb[0].mxu0
    %v1598 = vadd.f32 %v1293, %v1597
    %v1599 = vpop.f32.mrb[0].mxu0
    %1600 = vmatprep.mubr.f32.mxu0 %v1119
    %1601 = vmatmul.mubr.f32.gmra.mrb[0].mxu0 %v1118
    %v1602 = vpop.f32.mrb[0].mxu0
    %v1603 = vadd.f32 %v1298, %v1602
    %v1604 = vpop.f32.mrb[0].mxu0
    %1605 = vmatprep.mubr.f32.mxu0 %v1123
    %1606 = vmatmul.mubr.f32.gmra.mrb[0].mxu0 %v1122
    %v1607 = vpop.f32.mrb[0].mxu0
    %v1608 = vadd.f32 %v1303, %v1607
    %v1609 = vpop.f32.mrb[0].mxu0
    %1610 = vmatprep.mubr.f32.mxu0 %v1127
    %1611 = vmatmul.mubr.f32.gmra.mrb[0].mxu0 %v1126
    %v1612 = vpop.f32.mrb[0].mxu0
    %v1613 = vadd.f32 %v1308, %v1612
    %v1614 = vpop.f32.mrb[0].mxu0
    %1615 = vdwg.mxu0
    %1616 = vmatprep.subr.mxu0 0.0
    %1617 = vmatpush1.msra.mxu0 %v980
    %1618 = vmatprep.subr.mxu0 0.0
    %1619 = vmatpush1.msra.mxu0 %v981
    %1620 = vmatprep.subr.mxu0 0.0
    %1621 = vmatpush1.msra.mxu0 %v982
    %1622 = vmatprep.subr.mxu0 0.0
    %1623 = vmatpush1.msra.mxu0 %v983
    %1624 = vmatprep.subr.mxu0 0.0
    %1625 = vmatpush1.msra.mxu0 %v984
    %1626 = vmatprep.subr.mxu0 0.0
    %1627 = vmatpush1.msra.mxu0 %v985
    %1628 = vmatprep.subr.mxu0 0.0
    %1629 = vmatpush1.msra.mxu0 %v986
    %1630 = vmatprep.subr.mxu0 0.0
    %1631 = vmatpush1.msra.mxu0 %v987
    %1632 = vmatprep.subr.mxu0 0.0
    %1633 = vmatpush1.msra.mxu0 %v988
    %1634 = vmatprep.subr.mxu0 0.0
    %1635 = vmatpush1.msra.mxu0 %v989
    %1636 = vmatprep.subr.mxu0 0.0
    %1637 = vmatpush1.msra.mxu0 %v990
    %1638 = vmatprep.subr.mxu0 0.0
    %1639 = vmatpush1.msra.mxu0 %v991
    %1640 = vmatprep.subr.mxu0 0.0
    %1641 = vmatpush1.msra.mxu0 %v992
    %1642 = vmatprep.subr.mxu0 0.0
    %1643 = vmatpush1.msra.mxu0 %v993
    %1644 = vmatprep.subr.mxu0 0.0
    %1645 = vmatpush1.msra.mxu0 %v994
    %1646 = vmatprep.subr.mxu0 0.0
    %1647 = vmatpush1.msra.mxu0 %v995
    %1648 = vmatprep.subr.mxu0 0.0
    %1649 = vmatpush1.msra.mxu0 %v996
    %1650 = vmatprep.subr.mxu0 0.0
    %1651 = vmatpush1.msra.mxu0 %v997
    %1652 = vmatprep.subr.mxu0 0.0
    %1653 = vmatpush1.msra.mxu0 %v998
    %1654 = vmatprep.subr.mxu0 0.0
    %1655 = vmatpush1.msra.mxu0 %v999
    %1656 = vmatprep.subr.mxu0 0.0
    %1657 = vmatpush1.msra.mxu0 %v1000
    %1658 = vmatprep.subr.mxu0 0.0
    %1659 = vmatpush1.msra.mxu0 %v1001
    %1660 = vmatprep.subr.mxu0 0.0
    %1661 = vmatpush1.msra.mxu0 %v1002
    %1662 = vmatprep.subr.mxu0 0.0
    %1663 = vmatpush1.msra.mxu0 %v1003
    %1664 = vmatprep.subr.mxu0 0.0
    %1665 = vmatpush1.msra.mxu0 %v1004
    %1666 = vmatprep.subr.mxu0 0.0
    %1667 = vmatpush1.msra.mxu0 %v1005
    %1668 = vmatprep.subr.mxu0 0.0
    %1669 = vmatpush1.msra.mxu0 %v1006
    %1670 = vmatprep.subr.mxu0 0.0
    %1671 = vmatpush1.msra.mxu0 %v1007
    %1672 = vmatprep.subr.mxu0 0.0
    %1673 = vmatpush1.msra.mxu0 %v1008
    %1674 = vmatprep.subr.mxu0 0.0
    %1675 = vmatpush1.msra.mxu0 %v1009
    %1676 = vmatprep.subr.mxu0 0.0
    %1677 = vmatpush1.msra.mxu0 0.0
    %1678 = vmatprep.subr.mxu0 0.0
    %1679 = vmatpush1.msra.mxu0 0.0
    %1680 = vmatprep.mubr.f32.mxu0 %v1312
    %1681 = vmatmul.mubr.f32.gmra.mrb[0].mxu0 %v1012
    %v1682 = vpop.f32.mrb[0].mxu0
    %v1683 = vadd.f32 %v1468, %v1682
    %v1684 = vpop.f32.mrb[0].mxu0
    %1685 = vmatprep.mubr.f32.mxu0 %v1315
    %1686 = vmatmul.mubr.f32.gmra.mrb[0].mxu0 %v1016
    %v1687 = vpop.f32.mrb[0].mxu0
    %v1688 = vadd.f32 %v1473, %v1687
    %v1689 = vpop.f32.mrb[0].mxu0
    %1690 = vmatprep.mubr.f32.mxu0 %v1318
    %1691 = vmatmul.mubr.f32.gmra.mrb[0].mxu0 %v1020
    %v1692 = vpop.f32.mrb[0].mxu0
    %v1693 = vadd.f32 %v1478, %v1692
    %v1694 = vpop.f32.mrb[0].mxu0
    %1695 = vmatprep.mubr.f32.mxu0 %v1321
    %1696 = vmatmul.mubr.f32.gmra.mrb[0].mxu0 %v1024
    %v1697 = vpop.f32.mrb[0].mxu0
    %v1698 = vadd.f32 %v1483, %v1697
    %v1699 = vpop.f32.mrb[0].mxu0
    %1700 = vmatprep.mubr.f32.mxu0 %v1324
    %1701 = vmatmul.mubr.f32.gmra.mrb[0].mxu0 %v1028
    %v1702 = vpop.f32.mrb[0].mxu0
    %v1703 = vadd.f32 %v1488, %v1702
    %v1704 = vpop.f32.mrb[0].mxu0
    %1705 = vmatprep.mubr.f32.mxu0 %v1327
    %1706 = vmatmul.mubr.f32.gmra.mrb[0].mxu0 %v1032
    %v1707 = vpop.f32.mrb[0].mxu0
    %v1708 = vadd.f32 %v1493, %v1707
    %v1709 = vpop.f32.mrb[0].mxu0
    %1710 = vmatprep.mubr.f32.mxu0 %v1330
    %1711 = vmatmul.mubr.f32.gmra.mrb[0].mxu0 %v1036
    %v1712 = vpop.f32.mrb[0].mxu0
    %v1713 = vadd.f32 %v1498, %v1712
    %v1714 = vpop.f32.mrb[0].mxu0
    %1715 = vmatprep.mubr.f32.mxu0 %v1333
    %1716 = vmatmul.mubr.f32.gmra.mrb[0].mxu0 %v1040
    %v1717 = vpop.f32.mrb[0].mxu0
    %v1718 = vadd.f32 %v1503, %v1717
    %v1719 = vpop.f32.mrb[0].mxu0
    %1720 = vmatprep.mubr.f32.mxu0 %v1336
    %1721 = vmatmul.mubr.f32.gmra.mrb[0].mxu0 %v1044
    %v1722 = vpop.f32.mrb[0].mxu0
    %v1723 = vadd.f32 %v1508, %v1722
    %v1724 = vpop.f32.mrb[0].mxu0
    %1725 = vmatprep.mubr.f32.mxu0 %v1339
    %1726 = vmatmul.mubr.f32.gmra.mrb[0].mxu0 %v1048
    %v1727 = vpop.f32.mrb[0].mxu0
    %v1728 = vadd.f32 %v1513, %v1727
    %v1729 = vpop.f32.mrb[0].mxu0
    %1730 = vmatprep.mubr.f32.mxu0 %v1342
    %1731 = vmatmul.mubr.f32.gmra.mrb[0].mxu0 %v1052
    %v1732 = vpop.f32.mrb[0].mxu0
    %v1733 = vadd.f32 %v1518, %v1732
    %v1734 = vpop.f32.mrb[0].mxu0
    %1735 = vmatprep.mubr.f32.mxu0 %v1345
    %1736 = vmatmul.mubr.f32.gmra.mrb[0].mxu0 %v1056
    %v1737 = vpop.f32.mrb[0].mxu0
    %v1738 = vadd.f32 %v1523, %v1737
    %v1739 = vpop.f32.mrb[0].mxu0
    %1740 = vmatprep.mubr.f32.mxu0 %v1348
    %1741 = vmatmul.mubr.f32.gmra.mrb[0].mxu0 %v1060
    %v1742 = vpop.f32.mrb[0].mxu0
    %v1743 = vadd.f32 %v1528, %v1742
    %v1744 = vpop.f32.mrb[0].mxu0
    %1745 = vmatprep.mubr.f32.mxu0 %v1351
    %1746 = vmatmul.mubr.f32.gmra.mrb[0].mxu0 %v1064
    %v1747 = vpop.f32.mrb[0].mxu0
    %v1748 = vadd.f32 %v1533, %v1747
    %v1749 = vpop.f32.mrb[0].mxu0
    %1750 = vmatprep.mubr.f32.mxu0 %v1354
    %1751 = vmatmul.mubr.f32.gmra.mrb[0].mxu0 %v1068
    %v1752 = vpop.f32.mrb[0].mxu0
    %v1753 = vadd.f32 %v1538, %v1752
    %v1754 = vpop.f32.mrb[0].mxu0
    %1755 = vmatprep.mubr.f32.mxu0 %v1357
    %1756 = vmatmul.mubr.f32.gmra.mrb[0].mxu0 %v1072
    %v1757 = vpop.f32.mrb[0].mxu0
    %v1758 = vadd.f32 %v1543, %v1757
    %v1759 = vpop.f32.mrb[0].mxu0
    %1760 = vmatprep.mubr.f32.mxu0 %v1360
    %1761 = vmatmul.mubr.f32.gmra.mrb[0].mxu0 %v1076
    %v1762 = vpop.f32.mrb[0].mxu0
    %v1763 = vadd.f32 %v1548, %v1762
    %v1764 = vpop.f32.mrb[0].mxu0
    %1765 = vmatprep.mubr.f32.mxu0 %v1363
    %1766 = vmatmul.mubr.f32.gmra.mrb[0].mxu0 %v1080
    %v1767 = vpop.f32.mrb[0].mxu0
    %v1768 = vadd.f32 %v1553, %v1767
    %v1769 = vpop.f32.mrb[0].mxu0
    %1770 = vmatprep.mubr.f32.mxu0 %v1366
    %1771 = vmatmul.mubr.f32.gmra.mrb[0].mxu0 %v1084
    %v1772 = vpop.f32.mrb[0].mxu0
    %v1773 = vadd.f32 %v1558, %v1772
    %v1774 = vpop.f32.mrb[0].mxu0
    %1775 = vmatprep.mubr.f32.mxu0 %v1369
    %1776 = vmatmul.mubr.f32.gmra.mrb[0].mxu0 %v1088
    %v1777 = vpop.f32.mrb[0].mxu0
    %v1778 = vadd.f32 %v1563, %v1777
    %v1779 = vpop.f32.mrb[0].mxu0
    %1780 = vmatprep.mubr.f32.mxu0 %v1372
    %1781 = vmatmul.mubr.f32.gmra.mrb[0].mxu0 %v1092
    %v1782 = vpop.f32.mrb[0].mxu0
    %v1783 = vadd.f32 %v1568, %v1782
    %v1784 = vpop.f32.mrb[0].mxu0
    %1785 = vmatprep.mubr.f32.mxu0 %v1375
    %1786 = vmatmul.mubr.f32.gmra.mrb[0].mxu0 %v1096
    %v1787 = vpop.f32.mrb[0].mxu0
    %v1788 = vadd.f32 %v1573, %v1787
    %v1789 = vpop.f32.mrb[0].mxu0
    %1790 = vmatprep.mubr.f32.mxu0 %v1378
    %1791 = vmatmul.mubr.f32.gmra.mrb[0].mxu0 %v1100
    %v1792 = vpop.f32.mrb[0].mxu0
    %v1793 = vadd.f32 %v1578, %v1792
    %v1794 = vpop.f32.mrb[0].mxu0
    %1795 = vmatprep.mubr.f32.mxu0 %v1381
    %1796 = vmatmul.mubr.f32.gmra.mrb[0].mxu0 %v1104
    %v1797 = vpop.f32.mrb[0].mxu0
    %v1798 = vadd.f32 %v1583, %v1797
    %v1799 = vpop.f32.mrb[0].mxu0
    %1800 = vmatprep.mubr.f32.mxu0 %v1384
    %1801 = vmatmul.mubr.f32.gmra.mrb[0].mxu0 %v1108
    %v1802 = vpop.f32.mrb[0].mxu0
    %v1803 = vadd.f32 %v1588, %v1802
    %v1804 = vpop.f32.mrb[0].mxu0
    %1805 = vmatprep.mubr.f32.mxu0 %v1387
    %1806 = vmatmul.mubr.f32.gmra.mrb[0].mxu0 %v1112
    %v1807 = vpop.f32.mrb[0].mxu0
    %v1808 = vadd.f32 %v1593, %v1807
    %v1809 = vpop.f32.mrb[0].mxu0
    %1810 = vmatprep.mubr.f32.mxu0 %v1390
    %1811 = vmatmul.mubr.f32.gmra.mrb[0].mxu0 %v1116
    %v1812 = vpop.f32.mrb[0].mxu0
    %v1813 = vadd.f32 %v1598, %v1812
    %v1814 = vpop.f32.mrb[0].mxu0
    %1815 = vmatprep.mubr.f32.mxu0 %v1393
    %1816 = vmatmul.mubr.f32.gmra.mrb[0].mxu0 %v1120
    %v1817 = vpop.f32.mrb[0].mxu0
    %v1818 = vadd.f32 %v1603, %v1817
    %v1819 = vpop.f32.mrb[0].mxu0
    %1820 = vmatprep.mubr.f32.mxu0 %v1396
    %1821 = vmatmul.mubr.f32.gmra.mrb[0].mxu0 %v1124
    %v1822 = vpop.f32.mrb[0].mxu0
    %v1823 = vadd.f32 %v1608, %v1822
    %v1824 = vpop.f32.mrb[0].mxu0
    %1825 = vmatprep.mubr.f32.mxu0 %v1399
    %1826 = vmatmul.mubr.f32.gmra.mrb[0].mxu0 %v1128
    %v1827 = vpop.f32.mrb[0].mxu0
    %v1828 = vadd.f32 %v1613, %v1827
    %v1829 = vpop.f32.mrb[0].mxu0
    %1830 = vdwg.mxu0
    %v1831 = vmax.f32 %v1683, 0.0
    %v1832 = vmax.f32 %v1688, 0.0
    %v1833 = vmax.f32 %v1693, 0.0
    %v1834 = vmax.f32 %v1698, 0.0
    %v1835 = vmax.f32 %v1703, 0.0
    %v1836 = vmax.f32 %v1708, 0.0
    %v1837 = vmax.f32 %v1713, 0.0
    %v1838 = vmax.f32 %v1718, 0.0
    %v1839 = vmax.f32 %v1723, 0.0
    %v1840 = vmax.f32 %v1728, 0.0
    %v1841 = vmax.f32 %v1733, 0.0
    %v1842 = vmax.f32 %v1738, 0.0
    %v1843 = vmax.f32 %v1743, 0.0
    %v1844 = vmax.f32 %v1748, 0.0
    %v1845 = vmax.f32 %v1753, 0.0
    %v1846 = vmax.f32 %v1758, 0.0
    %v1847 = vmax.f32 %v1763, 0.0
    %v1848 = vmax.f32 %v1768, 0.0
    %v1849 = vmax.f32 %v1773, 0.0
    %v1850 = vmax.f32 %v1778, 0.0
    %v1851 = vmax.f32 %v1783, 0.0
    %v1852 = vmax.f32 %v1788, 0.0
    %v1853 = vmax.f32 %v1793, 0.0
    %v1854 = vmax.f32 %v1798, 0.0
    %v1855 = vmax.f32 %v1803, 0.0
    %v1856 = vmax.f32 %v1808, 0.0
    %v1857 = vmax.f32 %v1813, 0.0
    %v1858 = vmax.f32 %v1818, 0.0
    %v1859 = vmax.f32 %v1823, 0.0
    %v1860 = vmax.f32 %v1828, 0.0
    %v1861 = vld [vmem:[%s6] sm:$0xff]
    %v1862 = vld [vmem:[%s6 + $0x8] sm:$0xff]
    %v1863 = vld [vmem:[%s6 + $0x10] sm:$0xff]
    %v1864 = vld [vmem:[%s6 + $0x18] sm:$0xff]
    %v1865 = vld [vmem:[%s6 + $0x20] sm:$0xff]
    %v1866 = vld [vmem:[%s6 + $0x28] sm:$0xff]
    %v1867 = vld [vmem:[%s6 + $0x30] sm:$0xff]
    %v1868 = vld [vmem:[%s6 + $0x38] sm:$0xff]
    %v1869 = vld [vmem:[%s6 + $0x40] sm:$0xff]
    %v1870 = vld [vmem:[%s6 + $0x48] sm:$0xff]
    %v1871 = vld [vmem:[%s6 + $0x50] sm:$0xff]
    %v1872 = vld [vmem:[%s6 + $0x58] sm:$0xff]
    %v1873 = vld [vmem:[%s6 + $0x60] sm:$0xff]
    %v1874 = vld [vmem:[%s6 + $0x68] sm:$0xff]
    %v1875 = vld [vmem:[%s6 + $0x70] sm:$0xff]
    %v1876 = vld [vmem:[%s6 + $0x78] sm:$0xff]
    %v1877 = vld [vmem:[%s6 + $0x80] sm:$0xff]
    %v1878 = vld [vmem:[%s6 + $0x88] sm:$0xff]
    %v1879 = vld [vmem:[%s6 + $0x90] sm:$0xff]
    %v1880 = vld [vmem:[%s6 + $0x98] sm:$0xff]
    %v1881 = vld [vmem:[%s6 + $0xa0] sm:$0xff]
    %v1882 = vld [vmem:[%s6 + $0xa8] sm:$0xff]
    %v1883 = vld [vmem:[%s6 + $0xb0] sm:$0xff]
    %v1884 = vld [vmem:[%s6 + $0xb8] sm:$0xff]
    %v1885 = vld [vmem:[%s6 + $0xc0] sm:$0xff]
    %v1886 = vld [vmem:[%s6 + $0xc8] sm:$0xff]
    %v1887 = vld [vmem:[%s6 + $0xd0] sm:$0xff]
    %v1888 = vld [vmem:[%s6 + $0xd8] sm:$0xff]
    %v1889 = vld [vmem:[%s6 + $0xe0] sm:$0xff]
    %v1890 = vld [vmem:[%s6 + $0xe8] sm:$0xff]
    %v1891 = vld [vmem:[%s6 + $0xf0] sm:$0xff]
    %v1892 = vld [vmem:[%s6 + $0xf8] sm:$0xff]
    %v1893 = vld [vmem:[%s6 + $0x100] sm:$0xff]
    %v1894 = vld [vmem:[%s6 + $0x108] sm:$0xff]
    %v1895 = vld [vmem:[%s6 + $0x110] sm:$0xff]
    %v1896 = vld [vmem:[%s6 + $0x118] sm:$0xff]
    %v1897 = vld [vmem:[%s6 + $0x120] sm:$0xff]
    %v1898 = vld [vmem:[%s6 + $0x128] sm:$0xff]
    %v1899 = vld [vmem:[%s6 + $0x130] sm:$0xff]
    %v1900 = vld [vmem:[%s6 + $0x138] sm:$0xff]
    %v1901 = vld [vmem:[%s6 + $0x140] sm:$0xff]
    %v1902 = vld [vmem:[%s6 + $0x148] sm:$0xff]
    %v1903 = vld [vmem:[%s6 + $0x150] sm:$0xff]
    %v1904 = vld [vmem:[%s6 + $0x158] sm:$0xff]
    %v1905 = vld [vmem:[%s6 + $0x160] sm:$0xff]
    %v1906 = vld [vmem:[%s6 + $0x168] sm:$0xff]
    %v1907 = vld [vmem:[%s6 + $0x170] sm:$0xff]
    %v1908 = vld [vmem:[%s6 + $0x178] sm:$0xff]
    %v1909 = vld [vmem:[%s6 + $0x180] sm:$0xff]
    %v1910 = vld [vmem:[%s6 + $0x188] sm:$0xff]
    %v1911 = vld [vmem:[%s6 + $0x190] sm:$0xff]
    %v1912 = vld [vmem:[%s6 + $0x198] sm:$0xff]
    %v1913 = vld [vmem:[%s6 + $0x1a0] sm:$0xf]
    %v1914 = vld [vmem:[%s6 + $0x1a8] sm:$0xf]
    %v1915 = vld [vmem:[%s7] sm:$0xff]
    %v1916 = vld [vmem:[%s7 + $0x8] sm:$0xff]
    %v1917 = vld [vmem:[%s7 + $0x10] sm:$0xff]
    %v1918 = vld [vmem:[%s7 + $0x18] sm:$0xff]
    %v1919 = vld [vmem:[%s7 + $0x20] sm:$0xff]
    %v1920 = vld [vmem:[%s7 + $0x28] sm:$0xff]
    %v1921 = vld [vmem:[%s7 + $0x30] sm:$0xff]
    %v1922 = vld [vmem:[%s7 + $0x38] sm:$0xff]
    %v1923 = vld [vmem:[%s7 + $0x40] sm:$0xff]
    %v1924 = vld [vmem:[%s7 + $0x48] sm:$0xff]
    %v1925 = vld [vmem:[%s7 + $0x50] sm:$0xff]
    %v1926 = vld [vmem:[%s7 + $0x58] sm:$0xff]
    %v1927 = vld [vmem:[%s7 + $0x60] sm:$0xff]
    %v1928 = vld [vmem:[%s7 + $0x68] sm:$0xff]
    %v1929 = vld [vmem:[%s7 + $0x70] sm:$0xff]
    %v1930 = vld [vmem:[%s7 + $0x78] sm:$0xff]
    %v1931 = vld [vmem:[%s7 + $0x80] sm:$0xff]
    %v1932 = vld [vmem:[%s7 + $0x88] sm:$0xff]
    %v1933 = vld [vmem:[%s7 + $0x90] sm:$0xff]
    %v1934 = vld [vmem:[%s7 + $0x98] sm:$0xff]
    %v1935 = vld [vmem:[%s7 + $0xa0] sm:$0xff]
    %v1936 = vld [vmem:[%s7 + $0xa8] sm:$0xff]
    %v1937 = vld [vmem:[%s7 + $0xb0] sm:$0xff]
    %v1938 = vld [vmem:[%s7 + $0xb8] sm:$0xff]
    %v1939 = vld [vmem:[%s7 + $0xc0] sm:$0xff]
    %v1940 = vld [vmem:[%s7 + $0xc8] sm:$0xff]
    %v1941 = vld [vmem:[%s7 + $0xd0] sm:$0xf]
    %1943 = vset.pattern.permute.xlu0 0
    %1944 = vperm.xlu0 %1943, %v1915
    %v1945 = vpop.permute.xlu0 %1944
    %1948 = vset.pattern.permute.xlu0 0
    %1949 = vperm.xlu0 %1948, %v1916
    %v1950 = vpop.permute.xlu0 %1949
    %1953 = vset.pattern.permute.xlu0 0
    %1954 = vperm.xlu0 %1953, %v1917
    %v1955 = vpop.permute.xlu0 %1954
    %1958 = vset.pattern.permute.xlu0 0
    %1959 = vperm.xlu0 %1958, %v1918
    %v1960 = vpop.permute.xlu0 %1959
    %1963 = vset.pattern.permute.xlu0 0
    %1964 = vperm.xlu0 %1963, %v1919
    %v1965 = vpop.permute.xlu0 %1964
    %1968 = vset.pattern.permute.xlu0 0
    %1969 = vperm.xlu0 %1968, %v1920
    %v1970 = vpop.permute.xlu0 %1969
    %1973 = vset.pattern.permute.xlu0 0
    %1974 = vperm.xlu0 %1973, %v1921
    %v1975 = vpop.permute.xlu0 %1974
    %1978 = vset.pattern.permute.xlu0 0
    %1979 = vperm.xlu0 %1978, %v1922
    %v1980 = vpop.permute.xlu0 %1979
    %1983 = vset.pattern.permute.xlu0 0
    %1984 = vperm.xlu0 %1983, %v1923
    %v1985 = vpop.permute.xlu0 %1984
    %1988 = vset.pattern.permute.xlu0 0
    %1989 = vperm.xlu0 %1988, %v1924
    %v1990 = vpop.permute.xlu0 %1989
    %1993 = vset.pattern.permute.xlu0 0
    %1994 = vperm.xlu0 %1993, %v1925
    %v1995 = vpop.permute.xlu0 %1994
    %1998 = vset.pattern.permute.xlu0 0
    %1999 = vperm.xlu0 %1998, %v1926
    %v2000 = vpop.permute.xlu0 %1999
    %2003 = vset.pattern.permute.xlu0 0
    %2004 = vperm.xlu0 %2003, %v1927
    %v2005 = vpop.permute.xlu0 %2004
    %2008 = vset.pattern.permute.xlu0 0
    %2009 = vperm.xlu0 %2008, %v1928
    %v2010 = vpop.permute.xlu0 %2009
    %2013 = vset.pattern.permute.xlu0 0
    %2014 = vperm.xlu0 %2013, %v1929
    %v2015 = vpop.permute.xlu0 %2014
    %2018 = vset.pattern.permute.xlu0 0
    %2019 = vperm.xlu0 %2018, %v1930
    %v2020 = vpop.permute.xlu0 %2019
    %2023 = vset.pattern.permute.xlu0 0
    %2024 = vperm.xlu0 %2023, %v1931
    %v2025 = vpop.permute.xlu0 %2024
    %2028 = vset.pattern.permute.xlu0 0
    %2029 = vperm.xlu0 %2028, %v1932
    %v2030 = vpop.permute.xlu0 %2029
    %2033 = vset.pattern.permute.xlu0 0
    %2034 = vperm.xlu0 %2033, %v1933
    %v2035 = vpop.permute.xlu0 %2034
    %2038 = vset.pattern.permute.xlu0 0
    %2039 = vperm.xlu0 %2038, %v1934
    %v2040 = vpop.permute.xlu0 %2039
    %2043 = vset.pattern.permute.xlu0 0
    %2044 = vperm.xlu0 %2043, %v1935
    %v2045 = vpop.permute.xlu0 %2044
    %2048 = vset.pattern.permute.xlu0 0
    %2049 = vperm.xlu0 %2048, %v1936
    %v2050 = vpop.permute.xlu0 %2049
    %2053 = vset.pattern.permute.xlu0 0
    %2054 = vperm.xlu0 %2053, %v1937
    %v2055 = vpop.permute.xlu0 %2054
    %2058 = vset.pattern.permute.xlu0 0
    %2059 = vperm.xlu0 %2058, %v1938
    %v2060 = vpop.permute.xlu0 %2059
    %2063 = vset.pattern.permute.xlu0 0
    %2064 = vperm.xlu0 %2063, %v1939
    %v2065 = vpop.permute.xlu0 %2064
    %2068 = vset.pattern.permute.xlu0 0
    %2069 = vperm.xlu0 %2068, %v1940
    %v2070 = vpop.permute.xlu0 %2069
    %2073 = vset.pattern.permute.xlu0 0
    %2074 = vperm.xlu0 %2073, %v1941
    %v2075 = vpop.permute.xlu0 %2074
    %vm2077 = vcmask 883712
    %v2079 = vsel %vm2077, %v1862, 0
    %v2082 = vsel %vm2077, %v1864, 0
    %v2085 = vsel %vm2077, %v1866, 0
    %v2088 = vsel %vm2077, %v1868, 0
    %v2091 = vsel %vm2077, %v1870, 0
    %v2094 = vsel %vm2077, %v1872, 0
    %v2097 = vsel %vm2077, %v1874, 0
    %v2100 = vsel %vm2077, %v1876, 0
    %v2103 = vsel %vm2077, %v1878, 0
    %v2106 = vsel %vm2077, %v1880, 0
    %v2109 = vsel %vm2077, %v1882, 0
    %v2112 = vsel %vm2077, %v1884, 0
    %v2115 = vsel %vm2077, %v1886, 0
    %v2118 = vsel %vm2077, %v1888, 0
    %v2121 = vsel %vm2077, %v1890, 0
    %v2124 = vsel %vm2077, %v1892, 0
    %v2127 = vsel %vm2077, %v1894, 0
    %v2130 = vsel %vm2077, %v1896, 0
    %v2133 = vsel %vm2077, %v1898, 0
    %v2136 = vsel %vm2077, %v1900, 0
    %v2139 = vsel %vm2077, %v1902, 0
    %v2142 = vsel %vm2077, %v1904, 0
    %v2145 = vsel %vm2077, %v1906, 0
    %v2148 = vsel %vm2077, %v1908, 0
    %v2151 = vsel %vm2077, %v1910, 0
    %v2154 = vsel %vm2077, %v1912, 0
    %v2157 = vsel %vm2077, %v1914, 0
    %vm2159 = vcmask 1043456
    %v2161 = vsel %vm2159, %v1860, 0
    %2163 = vmatprep.subr.mxu0 0.0
    %2164 = vmatpush1.msra.mxu0 %v1831
    %2165 = vmatprep.subr.mxu0 0.0
    %2166 = vmatpush1.msra.mxu0 %v1832
    %2167 = vmatprep.subr.mxu0 0.0
    %2168 = vmatpush1.msra.mxu0 %v1833
    %2169 = vmatprep.subr.mxu0 0.0
    %2170 = vmatpush1.msra.mxu0 %v1834
    %2171 = vmatprep.subr.mxu0 0.0
    %2172 = vmatpush1.msra.mxu0 %v1835
    %2173 = vmatprep.subr.mxu0 0.0
    %2174 = vmatpush1.msra.mxu0 %v1836
    %2175 = vmatprep.subr.mxu0 0.0
    %2176 = vmatpush1.msra.mxu0 %v1837
    %2177 = vmatprep.subr.mxu0 0.0
    %2178 = vmatpush1.msra.mxu0 %v1838
    %2179 = vmatprep.subr.mxu0 0.0
    %2180 = vmatpush1.msra.mxu0 %v1839
    %2181 = vmatprep.subr.mxu0 0.0
    %2182 = vmatpush1.msra.mxu0 %v1840
    %2183 = vmatprep.subr.mxu0 0.0
    %2184 = vmatpush1.msra.mxu0 %v1841
    %2185 = vmatprep.subr.mxu0 0.0
    %2186 = vmatpush1.msra.mxu0 %v1842
    %2187 = vmatprep.subr.mxu0 0.0
    %2188 = vmatpush1.msra.mxu0 %v1843
    %2189 = vmatprep.subr.mxu0 0.0
    %2190 = vmatpush1.msra.mxu0 %v1844
    %2191 = vmatprep.subr.mxu0 0.0
    %2192 = vmatpush1.msra.mxu0 %v1845
    %2193 = vmatprep.subr.mxu0 0.0
    %2194 = vmatpush1.msra.mxu0 %v1846
    %2195 = vmatprep.subr.mxu0 0.0
    %2196 = vmatpush1.msra.mxu0 %v1847
    %2197 = vmatprep.subr.mxu0 0.0
    %2198 = vmatpush1.msra.mxu0 %v1848
    %2199 = vmatprep.subr.mxu0 0.0
    %2200 = vmatpush1.msra.mxu0 %v1849
    %2201 = vmatprep.subr.mxu0 0.0
    %2202 = vmatpush1.msra.mxu0 %v1850
    %2203 = vmatprep.subr.mxu0 0.0
    %2204 = vmatpush1.msra.mxu0 %v1851
    %2205 = vmatprep.subr.mxu0 0.0
    %2206 = vmatpush1.msra.mxu0 %v1852
    %2207 = vmatprep.subr.mxu0 0.0
    %2208 = vmatpush1.msra.mxu0 %v1853
    %2209 = vmatprep.subr.mxu0 0.0
    %2210 = vmatpush1.msra.mxu0 %v1854
    %2211 = vmatprep.subr.mxu0 0.0
    %2212 = vmatpush1.msra.mxu0 %v1855
    %2213 = vmatprep.subr.mxu0 0.0
    %2214 = vmatpush1.msra.mxu0 %v1856
    %2215 = vmatprep.subr.mxu0 0.0
    %2216 = vmatpush1.msra.mxu0 %v1857
    %2217 = vmatprep.subr.mxu0 0.0
    %2218 = vmatpush1.msra.mxu0 %v1858
    %2219 = vmatprep.subr.mxu0 0.0
    %2220 = vmatpush1.msra.mxu0 %v1859
    %2221 = vmatprep.subr.mxu0 0.0
    %2222 = vmatpush1.msra.mxu0 %v2161
    %2223 = vmatprep.subr.mxu0 0.0
    %2224 = vmatpush1.msra.mxu0 0.0
    %2225 = vmatprep.subr.mxu0 0.0
    %2226 = vmatpush1.msra.mxu0 0.0
    %2227 = vmatprep.mubr.f32.mxu0 %v2079
    %2228 = vmatmul.mubr.f32.gmra.mrb[0].mxu0 %v1861
    %v2229 = vpop.f32.mrb[0].mxu0
    %v2230 = vadd.f32 %v1945, %v2229
    %v2231 = vpop.f32.mrb[0].mxu0
    %2232 = vmatprep.mubr.f32.mxu0 %v2082
    %2233 = vmatmul.mubr.f32.gmra.mrb[0].mxu0 %v1863
    %v2234 = vpop.f32.mrb[0].mxu0
    %v2235 = vadd.f32 %v1950, %v2234
    %v2236 = vpop.f32.mrb[0].mxu0
    %2237 = vmatprep.mubr.f32.mxu0 %v2085
    %2238 = vmatmul.mubr.f32.gmra.mrb[0].mxu0 %v1865
    %v2239 = vpop.f32.mrb[0].mxu0
    %v2240 = vadd.f32 %v1955, %v2239
    %v2241 = vpop.f32.mrb[0].mxu0
    %2242 = vmatprep.mubr.f32.mxu0 %v2088
    %2243 = vmatmul.mubr.f32.gmra.mrb[0].mxu0 %v1867
    %v2244 = vpop.f32.mrb[0].mxu0
    %v2245 = vadd.f32 %v1960, %v2244
    %v2246 = vpop.f32.mrb[0].mxu0
    %2247 = vmatprep.mubr.f32.mxu0 %v2091
    %2248 = vmatmul.mubr.f32.gmra.mrb[0].mxu0 %v1869
    %v2249 = vpop.f32.mrb[0].mxu0
    %v2250 = vadd.f32 %v1965, %v2249
    %v2251 = vpop.f32.mrb[0].mxu0
    %2252 = vmatprep.mubr.f32.mxu0 %v2094
    %2253 = vmatmul.mubr.f32.gmra.mrb[0].mxu0 %v1871
    %v2254 = vpop.f32.mrb[0].mxu0
    %v2255 = vadd.f32 %v1970, %v2254
    %v2256 = vpop.f32.mrb[0].mxu0
    %2257 = vmatprep.mubr.f32.mxu0 %v2097
    %2258 = vmatmul.mubr.f32.gmra.mrb[0].mxu0 %v1873
    %v2259 = vpop.f32.mrb[0].mxu0
    %v2260 = vadd.f32 %v1975, %v2259
    %v2261 = vpop.f32.mrb[0].mxu0
    %2262 = vmatprep.mubr.f32.mxu0 %v2100
    %2263 = vmatmul.mubr.f32.gmra.mrb[0].mxu0 %v1875
    %v2264 = vpop.f32.mrb[0].mxu0
    %v2265 = vadd.f32 %v1980, %v2264
    %v2266 = vpop.f32.mrb[0].mxu0
    %2267 = vmatprep.mubr.f32.mxu0 %v2103
    %2268 = vmatmul.mubr.f32.gmra.mrb[0].mxu0 %v1877
    %v2269 = vpop.f32.mrb[0].mxu0
    %v2270 = vadd.f32 %v1985, %v2269
    %v2271 = vpop.f32.mrb[0].mxu0
    %2272 = vmatprep.mubr.f32.mxu0 %v2106
    %2273 = vmatmul.mubr.f32.gmra.mrb[0].mxu0 %v1879
    %v2274 = vpop.f32.mrb[0].mxu0
    %v2275 = vadd.f32 %v1990, %v2274
    %v2276 = vpop.f32.mrb[0].mxu0
    %2277 = vmatprep.mubr.f32.mxu0 %v2109
    %2278 = vmatmul.mubr.f32.gmra.mrb[0].mxu0 %v1881
    %v2279 = vpop.f32.mrb[0].mxu0
    %v2280 = vadd.f32 %v1995, %v2279
    %v2281 = vpop.f32.mrb[0].mxu0
    %2282 = vmatprep.mubr.f32.mxu0 %v2112
    %2283 = vmatmul.mubr.f32.gmra.mrb[0].mxu0 %v1883
    %v2284 = vpop.f32.mrb[0].mxu0
    %v2285 = vadd.f32 %v2000, %v2284
    %v2286 = vpop.f32.mrb[0].mxu0
    %2287 = vmatprep.mubr.f32.mxu0 %v2115
    %2288 = vmatmul.mubr.f32.gmra.mrb[0].mxu0 %v1885
    %v2289 = vpop.f32.mrb[0].mxu0
    %v2290 = vadd.f32 %v2005, %v2289
    %v2291 = vpop.f32.mrb[0].mxu0
    %2292 = vmatprep.mubr.f32.mxu0 %v2118
    %2293 = vmatmul.mubr.f32.gmra.mrb[0].mxu0 %v1887
    %v2294 = vpop.f32.mrb[0].mxu0
    %v2295 = vadd.f32 %v2010, %v2294
    %v2296 = vpop.f32.mrb[0].mxu0
    %2297 = vmatprep.mubr.f32.mxu0 %v2121
    %2298 = vmatmul.mubr.f32.gmra.mrb[0].mxu0 %v1889
    %v2299 = vpop.f32.mrb[0].mxu0
    %v2300 = vadd.f32 %v2015, %v2299
    %v2301 = vpop.f32.mrb[0].mxu0
    %2302 = vmatprep.mubr.f32.mxu0 %v2124
    %2303 = vmatmul.mubr.f32.gmra.mrb[0].mxu0 %v1891
    %v2304 = vpop.f32.mrb[0].mxu0
    %v2305 = vadd.f32 %v2020, %v2304
    %v2306 = vpop.f32.mrb[0].mxu0
    %2307 = vmatprep.mubr.f32.mxu0 %v2127
    %2308 = vmatmul.mubr.f32.gmra.mrb[0].mxu0 %v1893
    %v2309 = vpop.f32.mrb[0].mxu0
    %v2310 = vadd.f32 %v2025, %v2309
    %v2311 = vpop.f32.mrb[0].mxu0
    %2312 = vmatprep.mubr.f32.mxu0 %v2130
    %2313 = vmatmul.mubr.f32.gmra.mrb[0].mxu0 %v1895
    %v2314 = vpop.f32.mrb[0].mxu0
    %v2315 = vadd.f32 %v2030, %v2314
    %v2316 = vpop.f32.mrb[0].mxu0
    %2317 = vmatprep.mubr.f32.mxu0 %v2133
    %2318 = vmatmul.mubr.f32.gmra.mrb[0].mxu0 %v1897
    %v2319 = vpop.f32.mrb[0].mxu0
    %v2320 = vadd.f32 %v2035, %v2319
    %v2321 = vpop.f32.mrb[0].mxu0
    %2322 = vmatprep.mubr.f32.mxu0 %v2136
    %2323 = vmatmul.mubr.f32.gmra.mrb[0].mxu0 %v1899
    %v2324 = vpop.f32.mrb[0].mxu0
    %v2325 = vadd.f32 %v2040, %v2324
    %v2326 = vpop.f32.mrb[0].mxu0
    %2327 = vmatprep.mubr.f32.mxu0 %v2139
    %2328 = vmatmul.mubr.f32.gmra.mrb[0].mxu0 %v1901
    %v2329 = vpop.f32.mrb[0].mxu0
    %v2330 = vadd.f32 %v2045, %v2329
    %v2331 = vpop.f32.mrb[0].mxu0
    %2332 = vmatprep.mubr.f32.mxu0 %v2142
    %2333 = vmatmul.mubr.f32.gmra.mrb[0].mxu0 %v1903
    %v2334 = vpop.f32.mrb[0].mxu0
    %v2335 = vadd.f32 %v2050, %v2334
    %v2336 = vpop.f32.mrb[0].mxu0
    %2337 = vmatprep.mubr.f32.mxu0 %v2145
    %2338 = vmatmul.mubr.f32.gmra.mrb[0].mxu0 %v1905
    %v2339 = vpop.f32.mrb[0].mxu0
    %v2340 = vadd.f32 %v2055, %v2339
    %v2341 = vpop.f32.mrb[0].mxu0
    %2342 = vmatprep.mubr.f32.mxu0 %v2148
    %2343 = vmatmul.mubr.f32.gmra.mrb[0].mxu0 %v1907
    %v2344 = vpop.f32.mrb[0].mxu0
    %v2345 = vadd.f32 %v2060, %v2344
    %v2346 = vpop.f32.mrb[0].mxu0
    %2347 = vmatprep.mubr.f32.mxu0 %v2151
    %2348 = vmatmul.mubr.f32.gmra.mrb[0].mxu0 %v1909
    %v2349 = vpop.f32.mrb[0].mxu0
    %v2350 = vadd.f32 %v2065, %v2349
    %v2351 = vpop.f32.mrb[0].mxu0
    %2352 = vmatprep.mubr.f32.mxu0 %v2154
    %2353 = vmatmul.mubr.f32.gmra.mrb[0].mxu0 %v1911
    %v2354 = vpop.f32.mrb[0].mxu0
    %v2355 = vadd.f32 %v2070, %v2354
    %v2356 = vpop.f32.mrb[0].mxu0
    %2357 = vmatprep.mubr.f32.mxu0 %v2157
    %2358 = vmatmul.mubr.f32.gmra.mrb[0].mxu0 %v1913
    %v2359 = vpop.f32.mrb[0].mxu0
    %v2360 = vadd.f32 %v2075, %v2359
    %v2361 = vpop.f32.mrb[0].mxu0
    %2362 = vdwg.mxu0
    %v2363 = vmax.f32 %v2230, 0.0
    %v2364 = vmax.f32 %v2235, 0.0
    %v2365 = vmax.f32 %v2240, 0.0
    %v2366 = vmax.f32 %v2245, 0.0
    %v2367 = vmax.f32 %v2250, 0.0
    %v2368 = vmax.f32 %v2255, 0.0
    %v2369 = vmax.f32 %v2260, 0.0
    %v2370 = vmax.f32 %v2265, 0.0
    %v2371 = vmax.f32 %v2270, 0.0
    %v2372 = vmax.f32 %v2275, 0.0
    %v2373 = vmax.f32 %v2280, 0.0
    %v2374 = vmax.f32 %v2285, 0.0
    %v2375 = vmax.f32 %v2290, 0.0
    %v2376 = vmax.f32 %v2295, 0.0
    %v2377 = vmax.f32 %v2300, 0.0
    %v2378 = vmax.f32 %v2305, 0.0
    %v2379 = vmax.f32 %v2310, 0.0
    %v2380 = vmax.f32 %v2315, 0.0
    %v2381 = vmax.f32 %v2320, 0.0
    %v2382 = vmax.f32 %v2325, 0.0
    %v2383 = vmax.f32 %v2330, 0.0
    %v2384 = vmax.f32 %v2335, 0.0
    %v2385 = vmax.f32 %v2340, 0.0
    %v2386 = vmax.f32 %v2345, 0.0
    %v2387 = vmax.f32 %v2350, 0.0
    %v2388 = vmax.f32 %v2355, 0.0
    %v2389 = vmax.f32 %v2360, 0.0
    %v2390 = vld [vmem:[#allocation7] sm:$0xff]
    %v2391 = vld [vmem:[#allocation7 + $0x8] sm:$0xff]
    %v2392 = vld [vmem:[#allocation7 + $0x10] sm:$0xff]
    %v2393 = vld [vmem:[#allocation7 + $0x18] sm:$0xff]
    %v2394 = vld [vmem:[#allocation7 + $0x20] sm:$0xff]
    %v2395 = vld [vmem:[#allocation7 + $0x28] sm:$0xff]
    %v2396 = vld [vmem:[#allocation7 + $0x30] sm:$0xff]
    %v2397 = vld [vmem:[#allocation7 + $0x38] sm:$0xff]
    %v2398 = vld [vmem:[#allocation7 + $0x40] sm:$0xff]
    %v2399 = vld [vmem:[#allocation7 + $0x48] sm:$0xff]
    %v2400 = vld [vmem:[#allocation7 + $0x50] sm:$0xff]
    %v2401 = vld [vmem:[#allocation7 + $0x58] sm:$0xff]
    %v2402 = vld [vmem:[#allocation7 + $0x60] sm:$0xff]
    %v2403 = vld [vmem:[#allocation7 + $0x68] sm:$0xff]
    %v2404 = vld [vmem:[#allocation7 + $0x70] sm:$0xff]
    %v2405 = vld [vmem:[#allocation7 + $0x78] sm:$0xff]
    %v2406 = vld [vmem:[#allocation7 + $0x80] sm:$0xff]
    %v2407 = vld [vmem:[#allocation7 + $0x88] sm:$0xff]
    %v2408 = vld [vmem:[#allocation7 + $0x90] sm:$0xff]
    %v2409 = vld [vmem:[#allocation7 + $0x98] sm:$0xff]
    %v2410 = vld [vmem:[#allocation7 + $0xa0] sm:$0xff]
    %v2411 = vld [vmem:[#allocation7 + $0xa8] sm:$0xff]
    %v2412 = vld [vmem:[#allocation7 + $0xb0] sm:$0xff]
    %v2413 = vld [vmem:[#allocation7 + $0xb8] sm:$0xff]
    %v2414 = vld [vmem:[#allocation7 + $0xc0] sm:$0xff]
    %v2415 = vld [vmem:[#allocation7 + $0xc8] sm:$0xff]
    %v2416 = vld [vmem:[#allocation7 + $0xd0] sm:$0xff]
    %v2417 = vld [vmem:[#allocation7 + $0xd8] sm:$0xff]
    %v2418 = vld [vmem:[#allocation7 + $0xe0] sm:$0xff]
    %v2419 = vld [vmem:[#allocation7 + $0xe8] sm:$0xff]
    %v2420 = vld [vmem:[#allocation7 + $0xf0] sm:$0xff]
    %v2421 = vld [vmem:[#allocation7 + $0xf8] sm:$0xff]
    %v2422 = vld [vmem:[#allocation7 + $0x100] sm:$0xff]
    %v2423 = vld [vmem:[#allocation7 + $0x108] sm:$0xff]
    %v2424 = vld [vmem:[#allocation7 + $0x110] sm:$0xff]
    %v2425 = vld [vmem:[#allocation7 + $0x118] sm:$0xff]
    %v2426 = vld [vmem:[#allocation7 + $0x120] sm:$0xff]
    %v2427 = vld [vmem:[#allocation7 + $0x128] sm:$0xff]
    %v2428 = vld [vmem:[#allocation7 + $0x130] sm:$0xff]
    %v2429 = vld [vmem:[#allocation7 + $0x138] sm:$0xff]
    %v2430 = vld [vmem:[#allocation7 + $0x140] sm:$0xff]
    %v2431 = vld [vmem:[#allocation7 + $0x148] sm:$0xff]
    %v2432 = vld [vmem:[#allocation7 + $0x150] sm:$0xff]
    %v2433 = vld [vmem:[#allocation7 + $0x158] sm:$0xff]
    %v2434 = vld [vmem:[%s9] sm:$0xff]
    %v2435 = vld [vmem:[%s9 + $0x8] sm:$0xff]
    %v2436 = vld [vmem:[%s9 + $0x10] sm:$0xff]
    %v2437 = vld [vmem:[%s9 + $0x18] sm:$0xff]
    %v2438 = vld [vmem:[%s9 + $0x20] sm:$0xff]
    %v2439 = vld [vmem:[%s9 + $0x28] sm:$0xff]
    %v2440 = vld [vmem:[%s9 + $0x30] sm:$0xff]
    %v2441 = vld [vmem:[%s9 + $0x38] sm:$0xff]
    %v2442 = vld [vmem:[%s9 + $0x40] sm:$0xff]
    %v2443 = vld [vmem:[%s9 + $0x48] sm:$0xff]
    %v2444 = vld [vmem:[%s9 + $0x50] sm:$0xff]
    %v2445 = vld [vmem:[%s9 + $0x58] sm:$0xff]
    %v2446 = vld [vmem:[%s9 + $0x60] sm:$0xff]
    %v2447 = vld [vmem:[%s9 + $0x68] sm:$0xff]
    %v2448 = vld [vmem:[%s9 + $0x70] sm:$0xff]
    %v2449 = vld [vmem:[%s9 + $0x78] sm:$0xff]
    %v2450 = vld [vmem:[%s9 + $0x80] sm:$0xff]
    %v2451 = vld [vmem:[%s9 + $0x88] sm:$0xff]
    %v2452 = vld [vmem:[%s9 + $0x90] sm:$0xff]
    %v2453 = vld [vmem:[%s9 + $0x98] sm:$0xff]
    %v2454 = vld [vmem:[%s9 + $0xa0] sm:$0xff]
    %v2455 = vld [vmem:[%s9 + $0xa8] sm:$0xff]
    %2457 = vset.pattern.permute.xlu0 0
    %2458 = vperm.xlu0 %2457, %v2434
    %v2459 = vpop.permute.xlu0 %2458
    %2462 = vset.pattern.permute.xlu0 0
    %2463 = vperm.xlu0 %2462, %v2435
    %v2464 = vpop.permute.xlu0 %2463
    %2467 = vset.pattern.permute.xlu0 0
    %2468 = vperm.xlu0 %2467, %v2436
    %v2469 = vpop.permute.xlu0 %2468
    %2472 = vset.pattern.permute.xlu0 0
    %2473 = vperm.xlu0 %2472, %v2437
    %v2474 = vpop.permute.xlu0 %2473
    %2477 = vset.pattern.permute.xlu0 0
    %2478 = vperm.xlu0 %2477, %v2438
    %v2479 = vpop.permute.xlu0 %2478
    %2482 = vset.pattern.permute.xlu0 0
    %2483 = vperm.xlu0 %2482, %v2439
    %v2484 = vpop.permute.xlu0 %2483
    %2487 = vset.pattern.permute.xlu0 0
    %2488 = vperm.xlu0 %2487, %v2440
    %v2489 = vpop.permute.xlu0 %2488
    %2492 = vset.pattern.permute.xlu0 0
    %2493 = vperm.xlu0 %2492, %v2441
    %v2494 = vpop.permute.xlu0 %2493
    %2497 = vset.pattern.permute.xlu0 0
    %2498 = vperm.xlu0 %2497, %v2442
    %v2499 = vpop.permute.xlu0 %2498
    %2502 = vset.pattern.permute.xlu0 0
    %2503 = vperm.xlu0 %2502, %v2443
    %v2504 = vpop.permute.xlu0 %2503
    %2507 = vset.pattern.permute.xlu0 0
    %2508 = vperm.xlu0 %2507, %v2444
    %v2509 = vpop.permute.xlu0 %2508
    %2512 = vset.pattern.permute.xlu0 0
    %2513 = vperm.xlu0 %2512, %v2445
    %v2514 = vpop.permute.xlu0 %2513
    %2517 = vset.pattern.permute.xlu0 0
    %2518 = vperm.xlu0 %2517, %v2446
    %v2519 = vpop.permute.xlu0 %2518
    %2522 = vset.pattern.permute.xlu0 0
    %2523 = vperm.xlu0 %2522, %v2447
    %v2524 = vpop.permute.xlu0 %2523
    %2527 = vset.pattern.permute.xlu0 0
    %2528 = vperm.xlu0 %2527, %v2448
    %v2529 = vpop.permute.xlu0 %2528
    %2532 = vset.pattern.permute.xlu0 0
    %2533 = vperm.xlu0 %2532, %v2449
    %v2534 = vpop.permute.xlu0 %2533
    %2537 = vset.pattern.permute.xlu0 0
    %2538 = vperm.xlu0 %2537, %v2450
    %v2539 = vpop.permute.xlu0 %2538
    %2542 = vset.pattern.permute.xlu0 0
    %2543 = vperm.xlu0 %2542, %v2451
    %v2544 = vpop.permute.xlu0 %2543
    %2547 = vset.pattern.permute.xlu0 0
    %2548 = vperm.xlu0 %2547, %v2452
    %v2549 = vpop.permute.xlu0 %2548
    %2552 = vset.pattern.permute.xlu0 0
    %2553 = vperm.xlu0 %2552, %v2453
    %v2554 = vpop.permute.xlu0 %2553
    %2557 = vset.pattern.permute.xlu0 0
    %2558 = vperm.xlu0 %2557, %v2454
    %v2559 = vpop.permute.xlu0 %2558
    %2562 = vset.pattern.permute.xlu0 0
    %2563 = vperm.xlu0 %2562, %v2455
    %v2564 = vpop.permute.xlu0 %2563
    %vm2566 = vcmask 687104
    %v2568 = vsel %vm2566, %v2391, 0
    %v2571 = vsel %vm2566, %v2393, 0
    %v2574 = vsel %vm2566, %v2395, 0
    %v2577 = vsel %vm2566, %v2397, 0
    %v2580 = vsel %vm2566, %v2399, 0
    %v2583 = vsel %vm2566, %v2401, 0
    %v2586 = vsel %vm2566, %v2403, 0
    %v2589 = vsel %vm2566, %v2405, 0
    %v2592 = vsel %vm2566, %v2407, 0
    %v2595 = vsel %vm2566, %v2409, 0
    %v2598 = vsel %vm2566, %v2411, 0
    %v2601 = vsel %vm2566, %v2413, 0
    %v2604 = vsel %vm2566, %v2415, 0
    %v2607 = vsel %vm2566, %v2417, 0
    %v2610 = vsel %vm2566, %v2419, 0
    %v2613 = vsel %vm2566, %v2421, 0
    %v2616 = vsel %vm2566, %v2423, 0
    %v2619 = vsel %vm2566, %v2425, 0
    %v2622 = vsel %vm2566, %v2427, 0
    %v2625 = vsel %vm2566, %v2429, 0
    %v2628 = vsel %vm2566, %v2431, 0
    %v2631 = vsel %vm2566, %v2433, 0
    %v2634 = vsel %vm2159, %v2389, 0
    %2636 = vmatprep.subr.mxu0 0.0
    %2637 = vmatpush1.msra.mxu0 %v2363
    %2638 = vmatprep.subr.mxu0 0.0
    %2639 = vmatpush1.msra.mxu0 %v2364
    %2640 = vmatprep.subr.mxu0 0.0
    %2641 = vmatpush1.msra.mxu0 %v2365
    %2642 = vmatprep.subr.mxu0 0.0
    %2643 = vmatpush1.msra.mxu0 %v2366
    %2644 = vmatprep.subr.mxu0 0.0
    %2645 = vmatpush1.msra.mxu0 %v2367
    %2646 = vmatprep.subr.mxu0 0.0
    %2647 = vmatpush1.msra.mxu0 %v2368
    %2648 = vmatprep.subr.mxu0 0.0
    %2649 = vmatpush1.msra.mxu0 %v2369
    %2650 = vmatprep.subr.mxu0 0.0
    %2651 = vmatpush1.msra.mxu0 %v2370
    %2652 = vmatprep.subr.mxu0 0.0
    %2653 = vmatpush1.msra.mxu0 %v2371
    %2654 = vmatprep.subr.mxu0 0.0
    %2655 = vmatpush1.msra.mxu0 %v2372
    %2656 = vmatprep.subr.mxu0 0.0
    %2657 = vmatpush1.msra.mxu0 %v2373
    %2658 = vmatprep.subr.mxu0 0.0
    %2659 = vmatpush1.msra.mxu0 %v2374
    %2660 = vmatprep.subr.mxu0 0.0
    %2661 = vmatpush1.msra.mxu0 %v2375
    %2662 = vmatprep.subr.mxu0 0.0
    %2663 = vmatpush1.msra.mxu0 %v2376
    %2664 = vmatprep.subr.mxu0 0.0
    %2665 = vmatpush1.msra.mxu0 %v2377
    %2666 = vmatprep.subr.mxu0 0.0
    %2667 = vmatpush1.msra.mxu0 %v2378
    %2668 = vmatprep.subr.mxu0 0.0
    %2669 = vmatpush1.msra.mxu0 %v2379
    %2670 = vmatprep.subr.mxu0 0.0
    %2671 = vmatpush1.msra.mxu0 %v2380
    %2672 = vmatprep.subr.mxu0 0.0
    %2673 = vmatpush1.msra.mxu0 %v2381
    %2674 = vmatprep.subr.mxu0 0.0
    %2675 = vmatpush1.msra.mxu0 %v2382
    %2676 = vmatprep.subr.mxu0 0.0
    %2677 = vmatpush1.msra.mxu0 %v2383
    %2678 = vmatprep.subr.mxu0 0.0
    %2679 = vmatpush1.msra.mxu0 %v2384
    %2680 = vmatprep.subr.mxu0 0.0
    %2681 = vmatpush1.msra.mxu0 %v2385
    %2682 = vmatprep.subr.mxu0 0.0
    %2683 = vmatpush1.msra.mxu0 %v2386
    %2684 = vmatprep.subr.mxu0 0.0
    %2685 = vmatpush1.msra.mxu0 %v2387
    %2686 = vmatprep.subr.mxu0 0.0
    %2687 = vmatpush1.msra.mxu0 %v2388
    %2688 = vmatprep.subr.mxu0 0.0
    %2689 = vmatpush1.msra.mxu0 %v2634
    %2690 = vmatprep.subr.mxu0 0.0
    %2691 = vmatpush1.msra.mxu0 0.0
    %2692 = vmatprep.subr.mxu0 0.0
    %2693 = vmatpush1.msra.mxu0 0.0
    %2694 = vmatprep.subr.mxu0 0.0
    %2695 = vmatpush1.msra.mxu0 0.0
    %2696 = vmatprep.subr.mxu0 0.0
    %2697 = vmatpush1.msra.mxu0 0.0
    %2698 = vmatprep.subr.mxu0 0.0
    %2699 = vmatpush1.msra.mxu0 0.0
    %2700 = vmatprep.mubr.f32.mxu0 %v2568
    %2701 = vmatmul.mubr.f32.gmra.mrb[0].mxu0 %v2390
    %v2702 = vpop.f32.mrb[0].mxu0
    %v2703 = vadd.f32 %v2459, %v2702
    %v2704 = vpop.f32.mrb[0].mxu0
    %2705 = vmatprep.mubr.f32.mxu0 %v2571
    %2706 = vmatmul.mubr.f32.gmra.mrb[0].mxu0 %v2392
    %v2707 = vpop.f32.mrb[0].mxu0
    %v2708 = vadd.f32 %v2464, %v2707
    %v2709 = vpop.f32.mrb[0].mxu0
    %2710 = vmatprep.mubr.f32.mxu0 %v2574
    %2711 = vmatmul.mubr.f32.gmra.mrb[0].mxu0 %v2394
    %v2712 = vpop.f32.mrb[0].mxu0
    %v2713 = vadd.f32 %v2469, %v2712
    %v2714 = vpop.f32.mrb[0].mxu0
    %2715 = vmatprep.mubr.f32.mxu0 %v2577
    %2716 = vmatmul.mubr.f32.gmra.mrb[0].mxu0 %v2396
    %v2717 = vpop.f32.mrb[0].mxu0
    %v2718 = vadd.f32 %v2474, %v2717
    %v2719 = vpop.f32.mrb[0].mxu0
    %2720 = vmatprep.mubr.f32.mxu0 %v2580
    %2721 = vmatmul.mubr.f32.gmra.mrb[0].mxu0 %v2398
    %v2722 = vpop.f32.mrb[0].mxu0
    %v2723 = vadd.f32 %v2479, %v2722
    %v2724 = vpop.f32.mrb[0].mxu0
    %2725 = vmatprep.mubr.f32.mxu0 %v2583
    %2726 = vmatmul.mubr.f32.gmra.mrb[0].mxu0 %v2400
    %v2727 = vpop.f32.mrb[0].mxu0
    %v2728 = vadd.f32 %v2484, %v2727
    %v2729 = vpop.f32.mrb[0].mxu0
    %2730 = vmatprep.mubr.f32.mxu0 %v2586
    %2731 = vmatmul.mubr.f32.gmra.mrb[0].mxu0 %v2402
    %v2732 = vpop.f32.mrb[0].mxu0
    %v2733 = vadd.f32 %v2489, %v2732
    %v2734 = vpop.f32.mrb[0].mxu0
    %2735 = vmatprep.mubr.f32.mxu0 %v2589
    %2736 = vmatmul.mubr.f32.gmra.mrb[0].mxu0 %v2404
    %v2737 = vpop.f32.mrb[0].mxu0
    %v2738 = vadd.f32 %v2494, %v2737
    %v2739 = vpop.f32.mrb[0].mxu0
    %2740 = vmatprep.mubr.f32.mxu0 %v2592
    %2741 = vmatmul.mubr.f32.gmra.mrb[0].mxu0 %v2406
    %v2742 = vpop.f32.mrb[0].mxu0
    %v2743 = vadd.f32 %v2499, %v2742
    %v2744 = vpop.f32.mrb[0].mxu0
    %2745 = vmatprep.mubr.f32.mxu0 %v2595
    %2746 = vmatmul.mubr.f32.gmra.mrb[0].mxu0 %v2408
    %v2747 = vpop.f32.mrb[0].mxu0
    %v2748 = vadd.f32 %v2504, %v2747
    %v2749 = vpop.f32.mrb[0].mxu0
    %2750 = vmatprep.mubr.f32.mxu0 %v2598
    %2751 = vmatmul.mubr.f32.gmra.mrb[0].mxu0 %v2410
    %v2752 = vpop.f32.mrb[0].mxu0
    %v2753 = vadd.f32 %v2509, %v2752
    %v2754 = vpop.f32.mrb[0].mxu0
    %2755 = vmatprep.mubr.f32.mxu0 %v2601
    %2756 = vmatmul.mubr.f32.gmra.mrb[0].mxu0 %v2412
    %v2757 = vpop.f32.mrb[0].mxu0
    %v2758 = vadd.f32 %v2514, %v2757
    %v2759 = vpop.f32.mrb[0].mxu0
    %2760 = vmatprep.mubr.f32.mxu0 %v2604
    %2761 = vmatmul.mubr.f32.gmra.mrb[0].mxu0 %v2414
    %v2762 = vpop.f32.mrb[0].mxu0
    %v2763 = vadd.f32 %v2519, %v2762
    %v2764 = vpop.f32.mrb[0].mxu0
    %2765 = vmatprep.mubr.f32.mxu0 %v2607
    %2766 = vmatmul.mubr.f32.gmra.mrb[0].mxu0 %v2416
    %v2767 = vpop.f32.mrb[0].mxu0
    %v2768 = vadd.f32 %v2524, %v2767
    %v2769 = vpop.f32.mrb[0].mxu0
    %2770 = vmatprep.mubr.f32.mxu0 %v2610
    %2771 = vmatmul.mubr.f32.gmra.mrb[0].mxu0 %v2418
    %v2772 = vpop.f32.mrb[0].mxu0
    %v2773 = vadd.f32 %v2529, %v2772
    %v2774 = vpop.f32.mrb[0].mxu0
    %2775 = vmatprep.mubr.f32.mxu0 %v2613
    %2776 = vmatmul.mubr.f32.gmra.mrb[0].mxu0 %v2420
    %v2777 = vpop.f32.mrb[0].mxu0
    %v2778 = vadd.f32 %v2534, %v2777
    %v2779 = vpop.f32.mrb[0].mxu0
    %2780 = vmatprep.mubr.f32.mxu0 %v2616
    %2781 = vmatmul.mubr.f32.gmra.mrb[0].mxu0 %v2422
    %v2782 = vpop.f32.mrb[0].mxu0
    %v2783 = vadd.f32 %v2539, %v2782
    %v2784 = vpop.f32.mrb[0].mxu0
    %2785 = vmatprep.mubr.f32.mxu0 %v2619
    %2786 = vmatmul.mubr.f32.gmra.mrb[0].mxu0 %v2424
    %v2787 = vpop.f32.mrb[0].mxu0
    %v2788 = vadd.f32 %v2544, %v2787
    %v2789 = vpop.f32.mrb[0].mxu0
    %2790 = vmatprep.mubr.f32.mxu0 %v2622
    %2791 = vmatmul.mubr.f32.gmra.mrb[0].mxu0 %v2426
    %v2792 = vpop.f32.mrb[0].mxu0
    %v2793 = vadd.f32 %v2549, %v2792
    %v2794 = vpop.f32.mrb[0].mxu0
    %2795 = vmatprep.mubr.f32.mxu0 %v2625
    %2796 = vmatmul.mubr.f32.gmra.mrb[0].mxu0 %v2428
    %v2797 = vpop.f32.mrb[0].mxu0
    %v2798 = vadd.f32 %v2554, %v2797
    %v2799 = vpop.f32.mrb[0].mxu0
    %2800 = vmatprep.mubr.f32.mxu0 %v2628
    %2801 = vmatmul.mubr.f32.gmra.mrb[0].mxu0 %v2430
    %v2802 = vpop.f32.mrb[0].mxu0
    %v2803 = vadd.f32 %v2559, %v2802
    %v2804 = vpop.f32.mrb[0].mxu0
    %2805 = vmatprep.mubr.f32.mxu0 %v2631
    %2806 = vmatmul.mubr.f32.gmra.mrb[0].mxu0 %v2432
    %v2807 = vpop.f32.mrb[0].mxu0
    %v2808 = vadd.f32 %v2564, %v2807
    %v2809 = vpop.f32.mrb[0].mxu0
    %2810 = vdwg.mxu0
    %v2811 = vmax.f32 %v2703, 0.0
    %v2812 = vmax.f32 %v2708, 0.0
    %v2813 = vmax.f32 %v2713, 0.0
    %v2814 = vmax.f32 %v2718, 0.0
    %v2815 = vmax.f32 %v2723, 0.0
    %v2816 = vmax.f32 %v2728, 0.0
    %v2817 = vmax.f32 %v2733, 0.0
    %v2818 = vmax.f32 %v2738, 0.0
    %v2819 = vmax.f32 %v2743, 0.0
    %v2820 = vmax.f32 %v2748, 0.0
    %v2821 = vmax.f32 %v2753, 0.0
    %v2822 = vmax.f32 %v2758, 0.0
    %v2823 = vmax.f32 %v2763, 0.0
    %v2824 = vmax.f32 %v2768, 0.0
    %v2825 = vmax.f32 %v2773, 0.0
    %v2826 = vmax.f32 %v2778, 0.0
    %v2827 = vmax.f32 %v2783, 0.0
    %v2828 = vmax.f32 %v2788, 0.0
    %v2829 = vmax.f32 %v2793, 0.0
    %v2830 = vmax.f32 %v2798, 0.0
    %v2831 = vmax.f32 %v2803, 0.0
    %v2832 = vmax.f32 %v2808, 0.0
    %v2833 = vld [vmem:[%s10] sm:$0xff]
    %v2834 = vld [vmem:[%s10 + $0x8] sm:$0xff]
    %v2835 = vld [vmem:[%s10 + $0x10] sm:$0xff]
    %v2836 = vld [vmem:[%s10 + $0x18] sm:$0xff]
    %v2837 = vld [vmem:[%s10 + $0x20] sm:$0xff]
    %v2838 = vld [vmem:[%s10 + $0x28] sm:$0xff]
    %v2839 = vld [vmem:[%s10 + $0x30] sm:$0xff]
    %v2840 = vld [vmem:[%s10 + $0x38] sm:$0xff]
    %v2841 = vld [vmem:[%s10 + $0x40] sm:$0xff]
    %v2842 = vld [vmem:[%s10 + $0x48] sm:$0xff]
    %v2843 = vld [vmem:[%s10 + $0x50] sm:$0xff]
    %v2844 = vld [vmem:[%s10 + $0x58] sm:$0xff]
    %v2845 = vld [vmem:[%s10 + $0x60] sm:$0xff]
    %v2846 = vld [vmem:[%s10 + $0x68] sm:$0xff]
    %v2847 = vld [vmem:[%s10 + $0x70] sm:$0xff]
    %v2848 = vld [vmem:[%s10 + $0x78] sm:$0xff]
    %v2849 = vld [vmem:[%s10 + $0x80] sm:$0xff]
    %v2850 = vld [vmem:[%s10 + $0x88] sm:$0xff]
    %v2851 = vld [vmem:[%s10 + $0x90] sm:$0xff]
    %v2852 = vld [vmem:[%s10 + $0x98] sm:$0xff]
    %v2853 = vld [vmem:[%s10 + $0xa0] sm:$0xff]
    %v2854 = vld [vmem:[%s10 + $0xa8] sm:$0xff]
    %v2855 = vld [vmem:[%s10 + $0xb0] sm:$0xff]
    %v2856 = vld [vmem:[%s10 + $0xb8] sm:$0xff]
    %v2857 = vld [vmem:[%s10 + $0xc0] sm:$0xff]
    %v2858 = vld [vmem:[%s10 + $0xc8] sm:$0xff]
    %v2859 = vld [vmem:[%s10 + $0xd0] sm:$0xf]
    %v2860 = vld [vmem:[%s10 + $0xd8] sm:$0xf]
    %v2861 = vld [vmem:[%s11] sm:$0xff]
    %v2862 = vld [vmem:[%s11 + $0x8] sm:$0xff]
    %v2863 = vld [vmem:[%s11 + $0x10] sm:$0xff]
    %v2864 = vld [vmem:[%s11 + $0x18] sm:$0xff]
    %v2865 = vld [vmem:[%s11 + $0x20] sm:$0xff]
    %v2866 = vld [vmem:[%s11 + $0x28] sm:$0xff]
    %v2867 = vld [vmem:[%s11 + $0x30] sm:$0xff]
    %v2868 = vld [vmem:[%s11 + $0x38] sm:$0xff]
    %v2869 = vld [vmem:[%s11 + $0x40] sm:$0xff]
    %v2870 = vld [vmem:[%s11 + $0x48] sm:$0xff]
    %v2871 = vld [vmem:[%s11 + $0x50] sm:$0xff]
    %v2872 = vld [vmem:[%s11 + $0x58] sm:$0xff]
    %v2873 = vld [vmem:[%s11 + $0x60] sm:$0xff]
    %v2874 = vld [vmem:[%s11 + $0x68] sm:$0xf]
    %2876 = vset.pattern.permute.xlu0 0
    %2877 = vperm.xlu0 %2876, %v2861
    %v2878 = vpop.permute.xlu0 %2877
    %2881 = vset.pattern.permute.xlu0 0
    %2882 = vperm.xlu0 %2881, %v2862
    %v2883 = vpop.permute.xlu0 %2882
    %2886 = vset.pattern.permute.xlu0 0
    %2887 = vperm.xlu0 %2886, %v2863
    %v2888 = vpop.permute.xlu0 %2887
    %2891 = vset.pattern.permute.xlu0 0
    %2892 = vperm.xlu0 %2891, %v2864
    %v2893 = vpop.permute.xlu0 %2892
    %2896 = vset.pattern.permute.xlu0 0
    %2897 = vperm.xlu0 %2896, %v2865
    %v2898 = vpop.permute.xlu0 %2897
    %2901 = vset.pattern.permute.xlu0 0
    %2902 = vperm.xlu0 %2901, %v2866
    %v2903 = vpop.permute.xlu0 %2902
    %2906 = vset.pattern.permute.xlu0 0
    %2907 = vperm.xlu0 %2906, %v2867
    %v2908 = vpop.permute.xlu0 %2907
    %2911 = vset.pattern.permute.xlu0 0
    %2912 = vperm.xlu0 %2911, %v2868
    %v2913 = vpop.permute.xlu0 %2912
    %2916 = vset.pattern.permute.xlu0 0
    %2917 = vperm.xlu0 %2916, %v2869
    %v2918 = vpop.permute.xlu0 %2917
    %2921 = vset.pattern.permute.xlu0 0
    %2922 = vperm.xlu0 %2921, %v2870
    %v2923 = vpop.permute.xlu0 %2922
    %2926 = vset.pattern.permute.xlu0 0
    %2927 = vperm.xlu0 %2926, %v2871
    %v2928 = vpop.permute.xlu0 %2927
    %2931 = vset.pattern.permute.xlu0 0
    %2932 = vperm.xlu0 %2931, %v2872
    %v2933 = vpop.permute.xlu0 %2932
    %2936 = vset.pattern.permute.xlu0 0
    %2937 = vperm.xlu0 %2936, %v2873
    %v2938 = vpop.permute.xlu0 %2937
    %2941 = vset.pattern.permute.xlu0 0
    %2942 = vperm.xlu0 %2941, %v2874
    %v2943 = vpop.permute.xlu0 %2942
    %vm2945 = vcmask 392192
    %v2947 = vsel %vm2945, %v2834, 0
    %v2950 = vsel %vm2945, %v2836, 0
    %v2953 = vsel %vm2945, %v2838, 0
    %v2956 = vsel %vm2945, %v2840, 0
    %v2959 = vsel %vm2945, %v2842, 0
    %v2962 = vsel %vm2945, %v2844, 0
    %v2965 = vsel %vm2945, %v2846, 0
    %v2968 = vsel %vm2945, %v2848, 0
    %v2971 = vsel %vm2945, %v2850, 0
    %v2974 = vsel %vm2945, %v2852, 0
    %v2977 = vsel %vm2945, %v2854, 0
    %v2980 = vsel %vm2945, %v2856, 0
    %v2983 = vsel %vm2945, %v2858, 0
    %v2986 = vsel %vm2945, %v2860, 0
    %2988 = vmatprep.subr.mxu0 0.0
    %2989 = vmatpush1.msra.mxu0 %v2811
    %2990 = vmatprep.subr.mxu0 0.0
    %2991 = vmatpush1.msra.mxu0 %v2812
    %2992 = vmatprep.subr.mxu0 0.0
    %2993 = vmatpush1.msra.mxu0 %v2813
    %2994 = vmatprep.subr.mxu0 0.0
    %2995 = vmatpush1.msra.mxu0 %v2814
    %2996 = vmatprep.subr.mxu0 0.0
    %2997 = vmatpush1.msra.mxu0 %v2815
    %2998 = vmatprep.subr.mxu0 0.0
    %2999 = vmatpush1.msra.mxu0 %v2816
    %3000 = vmatprep.subr.mxu0 0.0
    %3001 = vmatpush1.msra.mxu0 %v2817
    %3002 = vmatprep.subr.mxu0 0.0
    %3003 = vmatpush1.msra.mxu0 %v2818
    %3004 = vmatprep.subr.mxu0 0.0
    %3005 = vmatpush1.msra.mxu0 %v2819
    %3006 = vmatprep.subr.mxu0 0.0
    %3007 = vmatpush1.msra.mxu0 %v2820
    %3008 = vmatprep.subr.mxu0 0.0
    %3009 = vmatpush1.msra.mxu0 %v2821
    %3010 = vmatprep.subr.mxu0 0.0
    %3011 = vmatpush1.msra.mxu0 %v2822
    %3012 = vmatprep.subr.mxu0 0.0
    %3013 = vmatpush1.msra.mxu0 %v2823
    %3014 = vmatprep.subr.mxu0 0.0
    %3015 = vmatpush1.msra.mxu0 %v2824
    %3016 = vmatprep.subr.mxu0 0.0
    %3017 = vmatpush1.msra.mxu0 %v2825
    %3018 = vmatprep.subr.mxu0 0.0
    %3019 = vmatpush1.msra.mxu0 %v2826
    %3020 = vmatprep.subr.mxu0 0.0
    %3021 = vmatpush1.msra.mxu0 %v2827
    %3022 = vmatprep.subr.mxu0 0.0
    %3023 = vmatpush1.msra.mxu0 %v2828
    %3024 = vmatprep.subr.mxu0 0.0
    %3025 = vmatpush1.msra.mxu0 %v2829
    %3026 = vmatprep.subr.mxu0 0.0
    %3027 = vmatpush1.msra.mxu0 %v2830
    %3028 = vmatprep.subr.mxu0 0.0
    %3029 = vmatpush1.msra.mxu0 %v2831
    %3030 = vmatprep.subr.mxu0 0.0
    %3031 = vmatpush1.msra.mxu0 %v2832
    %3032 = vmatprep.subr.mxu0 0.0
    %3033 = vmatpush1.msra.mxu0 0.0
    %3034 = vmatprep.subr.mxu0 0.0
    %3035 = vmatpush1.msra.mxu0 0.0
    %3036 = vmatprep.subr.mxu0 0.0
    %3037 = vmatpush1.msra.mxu0 0.0
    %3038 = vmatprep.subr.mxu0 0.0
    %3039 = vmatpush1.msra.mxu0 0.0
    %3040 = vmatprep.subr.mxu0 0.0
    %3041 = vmatpush1.msra.mxu0 0.0
    %3042 = vmatprep.subr.mxu0 0.0
    %3043 = vmatpush1.msra.mxu0 0.0
    %3044 = vmatprep.subr.mxu0 0.0
    %3045 = vmatpush1.msra.mxu0 0.0
    %3046 = vmatprep.subr.mxu0 0.0
    %3047 = vmatpush1.msra.mxu0 0.0
    %3048 = vmatprep.subr.mxu0 0.0
    %3049 = vmatpush1.msra.mxu0 0.0
    %3050 = vmatprep.subr.mxu0 0.0
    %3051 = vmatpush1.msra.mxu0 0.0
    %3052 = vmatprep.mubr.f32.mxu0 %v2947
    %3053 = vmatmul.mubr.f32.gmra.mrb[0].mxu0 %v2833
    %v3054 = vpop.f32.mrb[0].mxu0
    %v3055 = vadd.f32 %v2878, %v3054
    %v3056 = vpop.f32.mrb[0].mxu0
    %3057 = vmatprep.mubr.f32.mxu0 %v2950
    %3058 = vmatmul.mubr.f32.gmra.mrb[0].mxu0 %v2835
    %v3059 = vpop.f32.mrb[0].mxu0
    %v3060 = vadd.f32 %v2883, %v3059
    %v3061 = vpop.f32.mrb[0].mxu0
    %3062 = vmatprep.mubr.f32.mxu0 %v2953
    %3063 = vmatmul.mubr.f32.gmra.mrb[0].mxu0 %v2837
    %v3064 = vpop.f32.mrb[0].mxu0
    %v3065 = vadd.f32 %v2888, %v3064
    %v3066 = vpop.f32.mrb[0].mxu0
    %3067 = vmatprep.mubr.f32.mxu0 %v2956
    %3068 = vmatmul.mubr.f32.gmra.mrb[0].mxu0 %v2839
    %v3069 = vpop.f32.mrb[0].mxu0
    %v3070 = vadd.f32 %v2893, %v3069
    %v3071 = vpop.f32.mrb[0].mxu0
    %3072 = vmatprep.mubr.f32.mxu0 %v2959
    %3073 = vmatmul.mubr.f32.gmra.mrb[0].mxu0 %v2841
    %v3074 = vpop.f32.mrb[0].mxu0
    %v3075 = vadd.f32 %v2898, %v3074
    %v3076 = vpop.f32.mrb[0].mxu0
    %3077 = vmatprep.mubr.f32.mxu0 %v2962
    %3078 = vmatmul.mubr.f32.gmra.mrb[0].mxu0 %v2843
    %v3079 = vpop.f32.mrb[0].mxu0
    %v3080 = vadd.f32 %v2903, %v3079
    %v3081 = vpop.f32.mrb[0].mxu0
    %3082 = vmatprep.mubr.f32.mxu0 %v2965
    %3083 = vmatmul.mubr.f32.gmra.mrb[0].mxu0 %v2845
    %v3084 = vpop.f32.mrb[0].mxu0
    %v3085 = vadd.f32 %v2908, %v3084
    %v3086 = vpop.f32.mrb[0].mxu0
    %3087 = vmatprep.mubr.f32.mxu0 %v2968
    %3088 = vmatmul.mubr.f32.gmra.mrb[0].mxu0 %v2847
    %v3089 = vpop.f32.mrb[0].mxu0
    %v3090 = vadd.f32 %v2913, %v3089
    %v3091 = vpop.f32.mrb[0].mxu0
    %3092 = vmatprep.mubr.f32.mxu0 %v2971
    %3093 = vmatmul.mubr.f32.gmra.mrb[0].mxu0 %v2849
    %v3094 = vpop.f32.mrb[0].mxu0
    %v3095 = vadd.f32 %v2918, %v3094
    %v3096 = vpop.f32.mrb[0].mxu0
    %3097 = vmatprep.mubr.f32.mxu0 %v2974
    %3098 = vmatmul.mubr.f32.gmra.mrb[0].mxu0 %v2851
    %v3099 = vpop.f32.mrb[0].mxu0
    %v3100 = vadd.f32 %v2923, %v3099
    %v3101 = vpop.f32.mrb[0].mxu0
    %3102 = vmatprep.mubr.f32.mxu0 %v2977
    %3103 = vmatmul.mubr.f32.gmra.mrb[0].mxu0 %v2853
    %v3104 = vpop.f32.mrb[0].mxu0
    %v3105 = vadd.f32 %v2928, %v3104
    %v3106 = vpop.f32.mrb[0].mxu0
    %3107 = vmatprep.mubr.f32.mxu0 %v2980
    %3108 = vmatmul.mubr.f32.gmra.mrb[0].mxu0 %v2855
    %v3109 = vpop.f32.mrb[0].mxu0
    %v3110 = vadd.f32 %v2933, %v3109
    %v3111 = vpop.f32.mrb[0].mxu0
    %3112 = vmatprep.mubr.f32.mxu0 %v2983
    %3113 = vmatmul.mubr.f32.gmra.mrb[0].mxu0 %v2857
    %v3114 = vpop.f32.mrb[0].mxu0
    %v3115 = vadd.f32 %v2938, %v3114
    %v3116 = vpop.f32.mrb[0].mxu0
    %3117 = vmatprep.mubr.f32.mxu0 %v2986
    %3118 = vmatmul.mubr.f32.gmra.mrb[0].mxu0 %v2859
    %v3119 = vpop.f32.mrb[0].mxu0
    %v3120 = vadd.f32 %v2943, %v3119
    %v3121 = vpop.f32.mrb[0].mxu0
    %3122 = vdwg.mxu0
    %v3123 = vmax.f32 %v3055, 0.0
    %v3124 = vmax.f32 %v3060, 0.0
    %v3125 = vmax.f32 %v3065, 0.0
    %v3126 = vmax.f32 %v3070, 0.0
    %v3127 = vmax.f32 %v3075, 0.0
    %v3128 = vmax.f32 %v3080, 0.0
    %v3129 = vmax.f32 %v3085, 0.0
    %v3130 = vmax.f32 %v3090, 0.0
    %v3131 = vmax.f32 %v3095, 0.0
    %v3132 = vmax.f32 %v3100, 0.0
    %v3133 = vmax.f32 %v3105, 0.0
    %v3134 = vmax.f32 %v3110, 0.0
    %v3135 = vmax.f32 %v3115, 0.0
    %v3136 = vmax.f32 %v3120, 0.0
    %v3137 = vld [vmem:[%s12] sm:$0x7]
    %v3138 = vld [vmem:[%s13] sm:$0x7]
    %3140 = vset.pattern.permute.xlu0 0
    %3141 = vperm.xlu0 %3140, %v3138
    %v3142 = vpop.permute.xlu0 %3141
    %v3145 = vsel %vm2077, %v3137, 0
    %v3148 = vsel %vm2159, %v3136, 0
    %3150 = vmatprep.subr.mxu0 0.0
    %3151 = vmatpush1.msra.mxu0 %v3123
    %3152 = vmatprep.subr.mxu0 0.0
    %3153 = vmatpush1.msra.mxu0 %v3124
    %3154 = vmatprep.subr.mxu0 0.0
    %3155 = vmatpush1.msra.mxu0 %v3125
    %3156 = vmatprep.subr.mxu0 0.0
    %3157 = vmatpush1.msra.mxu0 %v3126
    %3158 = vmatprep.subr.mxu0 0.0
    %3159 = vmatpush1.msra.mxu0 %v3127
    %3160 = vmatprep.subr.mxu0 0.0
    %3161 = vmatpush1.msra.mxu0 %v3128
    %3162 = vmatprep.subr.mxu0 0.0
    %3163 = vmatpush1.msra.mxu0 %v3129
    %3164 = vmatprep.subr.mxu0 0.0
    %3165 = vmatpush1.msra.mxu0 %v3130
    %3166 = vmatprep.subr.mxu0 0.0
    %3167 = vmatpush1.msra.mxu0 %v3131
    %3168 = vmatprep.subr.mxu0 0.0
    %3169 = vmatpush1.msra.mxu0 %v3132
    %3170 = vmatprep.subr.mxu0 0.0
    %3171 = vmatpush1.msra.mxu0 %v3133
    %3172 = vmatprep.subr.mxu0 0.0
    %3173 = vmatpush1.msra.mxu0 %v3134
    %3174 = vmatprep.subr.mxu0 0.0
    %3175 = vmatpush1.msra.mxu0 %v3135
    %3176 = vmatprep.subr.mxu0 0.0
    %3177 = vmatpush1.msra.mxu0 %v3148
    %3178 = vmatprep.subr.mxu0 0.0
    %3179 = vmatpush1.msra.mxu0 0.0
    %3180 = vmatprep.subr.mxu0 0.0
    %3181 = vmatpush1.msra.mxu0 0.0
    %3182 = vmatprep.subr.mxu0 0.0
    %3183 = vmatpush1.msra.mxu0 0.0
    %3184 = vmatprep.subr.mxu0 0.0
    %3185 = vmatpush1.msra.mxu0 0.0
    %3186 = vmatprep.subr.mxu0 0.0
    %3187 = vmatpush1.msra.mxu0 0.0
    %3188 = vmatprep.subr.mxu0 0.0
    %3189 = vmatpush1.msra.mxu0 0.0
    %3190 = vmatprep.subr.mxu0 0.0
    %3191 = vmatpush1.msra.mxu0 0.0
    %3192 = vmatprep.subr.mxu0 0.0
    %3193 = vmatpush1.msra.mxu0 0.0
    %3194 = vmatprep.subr.mxu0 0.0
    %3195 = vmatpush1.msra.mxu0 0.0
    %3196 = vmatprep.subr.mxu0 0.0
    %3197 = vmatpush1.msra.mxu0 0.0
    %3198 = vmatprep.subr.mxu0 0.0
    %3199 = vmatpush1.msra.mxu0 0.0
    %3200 = vmatprep.subr.mxu0 0.0
    %3201 = vmatpush1.msra.mxu0 0.0
    %3202 = vmatprep.subr.mxu0 0.0
    %3203 = vmatpush1.msra.mxu0 0.0
    %3204 = vmatprep.subr.mxu0 0.0
    %3205 = vmatpush1.msra.mxu0 0.0
    %3206 = vmatprep.subr.mxu0 0.0
    %3207 = vmatpush1.msra.mxu0 0.0
    %3208 = vmatprep.subr.mxu0 0.0
    %3209 = vmatpush1.msra.mxu0 0.0
    %3210 = vmatprep.subr.mxu0 0.0
    %3211 = vmatpush1.msra.mxu0 0.0
    %3212 = vmatprep.subr.mxu0 0.0
    %3213 = vmatpush1.msra.mxu0 0.0
    %3214 = vmatprep.mubr.f32.mxu0 0.0
    %3215 = vmatmul.mubr.f32.gmra.mrb[0].mxu0 %v3145
    %v3216 = vpop.f32.mrb[0].mxu0
    %v3217 = vadd.f32 %v3142, %v3216
    %v3218 = vpop.f32.mrb[0].mxu0
    %3219 = vdwg.mxu0
    %vm3220 = vcmask 59392
    %3221 = vst.msk [vmem:[#allocation9] sm:$0x7] %vm3220, %v3217
    // Predicated region
    $region62: #{tpu_custom_call.1} parent=1 // pred_check
      _
    $region63: #{tpu_custom_call.1} parent=1 // pred_check_branch
      %3223 = sbr.rel (0) target = $region65
    $region64: #{tpu_custom_call.1} parent=1 // pred_region
      %s3225 = ssub.s32 64, 64
      %3226 = vsyncadd [#allocation6], %s3225
      %s3228 = sshll.u32 [#allocation9], 4
      %s3229 = int_to_ptr.vmem [resolvable:$true] %s3228
      %3231 = dma.vmem_to_hbm [thread:$0]  %s3229, 64, %s14, [#allocation6]
    $region65: #{tpu_custom_call.1} parent=1 // pred_fallthru
      _
    // Predicated region
    $region66: #{tpu_custom_call.1} parent=1 // pred_check
      _
    $region67: #{tpu_custom_call.1} parent=1 // pred_check_branch
      %3233 = sbr.rel (0) target = $region69
    $region68: #{tpu_custom_call.1} parent=1 // pred_region
      %3234 = dma.done [#allocation6], 64
    $region69: #{tpu_custom_call.1} parent=1 // pred_fallthru
      _
    %3235 = vsyncpa [#allocation5], 1
    %3236 = vsyncpa [#allocation8], 1
    %3237 = vsyncpa [#allocation6], 1

</llo_original>
